<compile_context>
chip_gen: v7x
topology: tpu7x:2x2x1
jax: 0.10.0
libtpu: 0.0.40
codegen_flags: <defaults>
</compile_context>

<pallas_src>
import jax
import jax.numpy as jnp
import numpy as np
from jax.experimental import pallas as pl
from jax.experimental.pallas import tpu as pltpu

EPS = 1e-5
LANES = 128      # TPU lane width: channel dim is padded to a multiple of this
HALO = 8         # sublane-aligned zero-halo width (W direction) in the stash


# ----------------------------------------------------------------------------
# Pallas kernel: fused Bottleneck forward (stride == 1), `n` images per step
# ----------------------------------------------------------------------------
def bottleneck_kernel(x_ref, w1_ref, b1_ref, wd_ref, b2_ref, w3_ref, b3_ref,
                      o_ref, hbuf_ref):
    n, H, W, C = x_ref.shape               # C is lane-padded (multiple of 128)
    M = n * H * W

    # --- 1x1 grouped conv (+ channel shuffle + BN scale folded into columns)
    #     MXU matmul: bf16 inputs, f32 accumulate, M = n*H*W, K = N = C.
    x_bf = x_ref[...]                      # (n, H, W, C) bf16
    x2d = x_bf.reshape(M, C)               # layout-preserving (W % 8 == 0)
    h1 = jnp.dot(x2d, w1_ref[...], preferred_element_type=jnp.float32)
    h1 = jnp.maximum(h1 + b1_ref[0], 0.0)  # bias only; scale already in w1
    h1_4d = h1.reshape(n, H, W, C)

    # --- 3x3 depthwise conv, stride=1, padding=1 (BN scale folded into taps) -
    # Stash h1 with a 1-row H halo and an 8-wide (sublane-aligned) W halo so
    # every tap is a plain window load (no concatenate row-shift copies);
    # only the halo region is zero-filled.
    zero_strip = jnp.zeros((n, H + 2, HALO, C), jnp.float32)
    zero_row = jnp.zeros((n, 1, W, C), jnp.float32)
    hbuf_ref[:, :, 0:HALO, :] = zero_strip
    hbuf_ref[:, :, HALO + W:HALO + W + HALO, :] = zero_strip
    hbuf_ref[:, 0:1, HALO:HALO + W, :] = zero_row
    hbuf_ref[:, H + 1:H + 2, HALO:HALO + W, :] = zero_row
    hbuf_ref[:, 1:1 + H, HALO:HALO + W, :] = h1_4d
    # TODO(synk): only the first iteration per core actually needs the halo
    # zeroed; there is no safe per-core "first step" predicate under megacore
    # sharding, so it is (cheaply) rewritten every step.

    wd = wd_ref[...]                        # (16, C); rows 0..8 = taps * bn2_scale
    acc = jnp.zeros((n, H, W, C), jnp.float32)
    for dy in (-1, 0, 1):
        for dx in (-1, 0, 1):
            if dy == 0 and dx == 0:
                tap = h1_4d                 # center tap reused from registers
            else:
                tap = hbuf_ref[:, 1 + dy:1 + dy + H, HALO + dx:HALO + dx + W, :]
            acc = acc + tap * wd[(dy + 1) * 3 + (dx + 1)]
    # TODO(synk): dx=+-1 window loads are sublane-offset 7/9; pltpu.roll along
    # the W axis (+ boundary mask) would move that shift onto the idle XLU.
    # TODO(synk): on v6e/v7x the stash + taps could be bf16 (halves VMEM
    # traffic); kept f32 here so the same kernel does not regress on v5e.
    h2 = jnp.maximum(acc + b2_ref[0], 0.0)

    # --- 1x1 grouped conv (BN scale folded into columns) + bias, no ReLU ----
    h2d = h2.reshape(M, C).astype(jnp.bfloat16)
    h3 = jnp.dot(h2d, w3_ref[...], preferred_element_type=jnp.float32)
    h3 = h3 + b3_ref[0]

    # --- residual add + ReLU (stride == 1 branch); lane-dense bf16 store ----
    y = jnp.maximum(h3 + x2d.astype(jnp.float32), 0.0)
    o_ref[...] = y.reshape(n, H, W, C).astype(o_ref.dtype)

    # TODO(synk): stride == 2 branch (AvgPool2d(3,2,1) + channel concat instead
    # of the residual add) is not implemented; this kernel covers stride == 1.


# ----------------------------------------------------------------------------
# Parameter construction / folding (plain JAX glue, host side)
# ----------------------------------------------------------------------------
def _bn_fold(gamma, beta, mean, var):
    scale = gamma / jnp.sqrt(var + EPS)
    bias = beta - mean * scale
    return scale, bias


def _grouped_1x1_to_dense(w, in_c, out_c, groups):
    """Grouped 1x1 conv weight (out_c, in_c//groups, 1, 1) -> dense (in_c, out_c)
    block-diagonal matrix for an NHWC matmul.
    TODO(synk): at real ShuffleNet widths use per-group matmuls instead of a
    block-diagonal dense matrix (75% of the dense MXU work multiplies zeros),
    and avoid the 16->128 lane pad (7/8 of DMA bytes are currently zeros)."""
    cpg_in = in_c // groups
    cpg_out = out_c // groups
    w2d = w[:, :, 0, 0]
    dense = jnp.zeros((in_c, out_c), jnp.float32)
    for g in range(groups):
        blk = w2d[g * cpg_out:(g + 1) * cpg_out, :]
        dense = dense.at[g * cpg_in:(g + 1) * cpg_in,
                         g * cpg_out:(g + 1) * cpg_out].set(blk.T)
    return dense


def make_params(key, in_c, hide_c, out_c, groups):
    """Deterministic synthetic parameters matching the PyTorch module shapes."""
    ks = jax.random.split(key, 15)

    def bn(k0, k1, k2, k3, c):
        gamma = 1.0 + 0.1 * jax.random.normal(k0, (c,), jnp.float32)
        beta = 0.1 * jax.random.normal(k1, (c,), jnp.float32)
        mean = 0.1 * jax.random.normal(k2, (c,), jnp.float32)
        var = 1.0 + 0.1 * jnp.abs(jax.random.normal(k3, (c,), jnp.float32))
        return gamma, beta, mean, var

    return {
        'w1': 0.3 * jax.random.normal(ks[0], (hide_c, in_c // groups, 1, 1), jnp.float32),
        'bn1': bn(ks[1], ks[2], ks[3], ks[4], hide_c),
        'wd': 0.3 * jax.random.normal(ks[5], (hide_c, 1, 3, 3), jnp.float32),
        'bn2': bn(ks[6], ks[7], ks[8], ks[9], hide_c),
        'w3': 0.3 * jax.random.normal(ks[10], (out_c, hide_c // groups, 1, 1), jnp.float32),
        'bn3': bn(ks[11], ks[12], ks[13], ks[14], out_c),
    }


def fold_params(params, in_c, hide_c, out_c, groups, cp):
    """Fold BN scale into the weights (columns of w1/w3, per-channel depthwise
    taps), fold the channel shuffle into w1's columns, turn grouped 1x1 convs
    into dense (block-diagonal) matmuls, then zero-pad every channel dim to
    `cp`.  Only biases remain as separate (f32) kernel operands; matmul
    weights are stored bf16 for the MXU."""
    s1, b1 = _bn_fold(*params['bn1'])
    s2, b2 = _bn_fold(*params['bn2'])
    s3, b3 = _bn_fold(*params['bn3'])

    w1_dense = _grouped_1x1_to_dense(params['w1'], in_c, hide_c, groups)
    w3_dense = _grouped_1x1_to_dense(params['w3'], hide_c, out_c, groups)

    # channel shuffle: new channel n reads old channel perm[n]
    perm = jnp.arange(hide_c).reshape(groups, hide_c // groups).T.reshape(-1)
    w1_eff = w1_dense[:, perm] * s1[perm][None, :]        # BN1 scale folded in
    b1_eff = b1[perm]
    w3_eff = w3_dense * s3[None, :]                       # BN3 scale folded in

    # depthwise weights (hide_c, 1, 3, 3) -> (9, hide_c), row = ky*3 + kx,
    # with BN2 scale folded into every tap.
    wd9 = jnp.transpose(params['wd'][:, 0, :, :], (1, 2, 0)).reshape(9, hide_c)
    wd9 = wd9 * s2[None, :]

    def pad_mat(m, rows, cols):
        return jnp.zeros((rows, cols), jnp.float32).at[:m.shape[0], :m.shape[1]].set(m)

    def pad_vec(v, cols):
        return jnp.zeros((1, cols), jnp.float32).at[0, :v.shape[0]].set(v)

    return dict(
        w1=pad_mat(w1_eff, cp, cp).astype(jnp.bfloat16),
        b1=pad_vec(b1_eff, cp),
        wd=pad_mat(wd9, 16, cp),
        b2=pad_vec(b2, cp),
        w3=pad_mat(w3_eff, cp, cp).astype(jnp.bfloat16),
        b3=pad_vec(b3, cp),
    )


# ----------------------------------------------------------------------------
# Wrapper: NHWC in / NHWC out (keep the model NHWC end-to-end)
# ----------------------------------------------------------------------------
def bottleneck_pallas(x_nhwc, folded, in_c, out_c, cp, imgs_per_step=2):
    B, H, W, _ = x_nhwc.shape
    imgs = imgs_per_step if B % imgs_per_step == 0 else 1

    # lane-dense channel padding + bf16 activation I/O (halves HBM traffic);
    # in a full network this padded bf16 NHWC layout would be kept end-to-end.
    x = jnp.pad(x_nhwc, ((0, 0), (0, 0), (0, 0), (0, cp - in_c))).astype(jnp.bfloat16)

    blk4 = lambda b: (b, 0, 0, 0)
    full2 = lambda b: (0, 0)

    out = pl.pallas_call(
        bottleneck_kernel,
        out_shape=jax.ShapeDtypeStruct((B, H, W, cp), jnp.bfloat16),
        grid=(B // imgs,),
        in_specs=[
            pl.BlockSpec((imgs, H, W, cp), blk4),  # x, `imgs` images per step (bf16)
            pl.BlockSpec((cp, cp), full2),         # w1 (shuffle + BN1 scale folded, bf16)
            pl.BlockSpec((1, cp), full2),          # b1
            pl.BlockSpec((16, cp), full2),         # depthwise taps * BN2 scale (rows 0..8)
            pl.BlockSpec((1, cp), full2),          # b2
            pl.BlockSpec((cp, cp), full2),         # w3 (BN3 scale folded, bf16)
            pl.BlockSpec((1, cp), full2),          # b3
        ],
        out_specs=pl.BlockSpec((imgs, H, W, cp), blk4),
        scratch_shapes=[pltpu.VMEM((imgs, H + 2, W + 2 * HALO, cp), jnp.float32)],
        compiler_params=pltpu.CompilerParams(
            dimension_semantics=("parallel",),
            vmem_limit_bytes=32 * 1024 * 1024),
    )(x, folded['w1'], folded['b1'], folded['wd'], folded['b2'],
      folded['w3'], folded['b3'])

    # TODO(synk): for large spatial sizes (e.g. 56x56) add an H-row grid axis
    # with a 1-row halo so the per-step block stays within v7x's 64 MiB VMEM.
    return out[..., :out_c].astype(jnp.float32)


# ----------------------------------------------------------------------------
# Pure-JAX reference (mirrors the PyTorch module, NCHW) for validation
# ----------------------------------------------------------------------------
def bottleneck_reference(x, params, groups):
    def cbr(h, w, bn, stride, grp, act):
        kh, kw = w.shape[2], w.shape[3]
        y = jax.lax.conv_general_dilated(
            h, w, (stride, stride),
            padding=[(kh // 2, kh // 2), (kw // 2, kw // 2)],
            dimension_numbers=('NCHW', 'OIHW', 'NCHW'),
            feature_group_count=grp)
        gamma, beta, mean, var = bn
        scale = gamma / jnp.sqrt(var + EPS)
        bias = beta - mean * scale
        y = y * scale[None, :, None, None] + bias[None, :, None, None]
        return jnp.maximum(y, 0.0) if act else y

    b, c_in, hh, ww = x.shape
    h = cbr(x, params['w1'], params['bn1'], 1, groups, True)
    c = h.shape[1]
    h = h.reshape(b, groups, c // groups, hh, ww)
    h = jnp.transpose(h, (0, 2, 1, 3, 4)).reshape(b, c, hh, ww)
    h = cbr(h, params['wd'], params['bn2'], 1, c, True)               # depthwise
    h = cbr(h, params['w3'], params['bn3'], 1, groups, False)
    return jnp.maximum(h + x, 0.0)                                    # stride==1


# ----------------------------------------------------------------------------
if __name__ == "__main__":
    B, IN_C, HIDE_C, OUT_C, H, W = 4, 16, 16, 16, 16, 16
    GROUPS = 4                       # stride = 1 -> residual branch
    CP = max(LANES, -(-max(IN_C, HIDE_C, OUT_C) // LANES) * LANES)

    key = jax.random.PRNGKey(0)
    kx, kp = jax.random.split(key)
    x_nchw = jax.random.normal(kx, (B, IN_C, H, W), jnp.float32)
    x_nhwc = jnp.transpose(x_nchw, (0, 2, 3, 1))      # kernel-side layout, done once

    params = make_params(kp, IN_C, HIDE_C, OUT_C, GROUPS)
    folded = fold_params(params, IN_C, HIDE_C, OUT_C, GROUPS, CP)

    y_nhwc = jax.block_until_ready(bottleneck_pallas(x_nhwc, folded, IN_C, OUT_C, CP))

    y_ref_nchw = jax.block_until_ready(bottleneck_reference(x_nchw, params, GROUPS))
    y_ref_nhwc = jnp.transpose(y_ref_nchw, (0, 2, 3, 1))

    # bf16 activations/weights on the MXU path + bf16 output -> loosened
    # tolerance vs. the f32 reference (inference-grade).
    np.testing.assert_allclose(np.asarray(y_nhwc), np.asarray(y_ref_nhwc),
                               rtol=5e-2, atol=1e-1)

    print("KERNEL_OK")
</pallas_src>

<mosaic_0001>
module attributes {stable_mosaic.version = 11 : i64} {
  func.func @bottleneck_kernel(%arg0: i32, %arg1: memref<2x16x16x128xbf16, #tpu.memory_space<vmem>>, %arg2: memref<128x128xbf16, #tpu.memory_space<vmem>>, %arg3: memref<1x128xf32, #tpu.memory_space<vmem>>, %arg4: memref<16x128xf32, #tpu.memory_space<vmem>>, %arg5: memref<1x128xf32, #tpu.memory_space<vmem>>, %arg6: memref<128x128xbf16, #tpu.memory_space<vmem>>, %arg7: memref<1x128xf32, #tpu.memory_space<vmem>>, %arg8: memref<2x16x16x128xbf16, #tpu.memory_space<vmem>>, %arg9: memref<2x18x32x128xf32, #tpu.memory_space<vmem>>) attributes {dimension_semantics = [#tpu.dimension_semantics<parallel>], iteration_bounds = array<i64: 2>, scalar_prefetch = 0 : i64, scratch_operands = 1 : i64, tpu.core_type = #tpu.core_type<tc>, window_params = [{transform_indices = @transform_0, window_bounds = array<i64: 2, 16, 16, 128>}, {pipeline_mode = #tpu.pipeline_mode<synchronous>, transform_indices = @transform_1, window_bounds = array<i64: 128, 128>}, {pipeline_mode = #tpu.pipeline_mode<synchronous>, transform_indices = @transform_2, window_bounds = array<i64: 1, 128>}, {pipeline_mode = #tpu.pipeline_mode<synchronous>, transform_indices = @transform_3, window_bounds = array<i64: 16, 128>}, {pipeline_mode = #tpu.pipeline_mode<synchronous>, transform_indices = @transform_4, window_bounds = array<i64: 1, 128>}, {pipeline_mode = #tpu.pipeline_mode<synchronous>, transform_indices = @transform_5, window_bounds = array<i64: 128, 128>}, {pipeline_mode = #tpu.pipeline_mode<synchronous>, transform_indices = @transform_6, window_bounds = array<i64: 1, 128>}, {transform_indices = @transform_7, window_bounds = array<i64: 2, 16, 16, 128>}]} {
    %c0 = arith.constant 0 : index
    %c0_0 = arith.constant 0 : index
    %c0_1 = arith.constant 0 : index
    %c0_2 = arith.constant 0 : index
    %0 = vector.load %arg1[%c0, %c0_0, %c0_1, %c0_2] : memref<2x16x16x128xbf16, #tpu.memory_space<vmem>>, vector<2x16x16x128xbf16>
    %1 = vector.shape_cast %0 : vector<2x16x16x128xbf16> to vector<512x128xbf16>
    %c0_3 = arith.constant 0 : index
    %c0_4 = arith.constant 0 : index
    %2 = vector.load %arg2[%c0_3, %c0_4] : memref<128x128xbf16, #tpu.memory_space<vmem>>, vector<128x128xbf16>
    %cst = arith.constant dense<0.000000e+00> : vector<512x128xf32>
    %3 = tpu.matmul %1, %2, %cst {dimension_numbers = #tpu.dot_dimension_numbers<[1], [0], [0], [1], [0, 0, 1, 1], [], []>} : vector<512x128xbf16>, vector<128x128xbf16>, vector<512x128xf32> -> vector<512x128xf32>
    %c0_5 = arith.constant 0 : index
    %c0_6 = arith.constant 0 : index
    %4 = vector.load %arg3[%c0_5, %c0_6] : memref<1x128xf32, #tpu.memory_space<vmem>>, vector<1x128xf32>
    %5 = vector.shape_cast %4 : vector<1x128xf32> to vector<128xf32>
    %6 = vector.shape_cast %5 : vector<128xf32> to vector<1x128xf32>
    %7 = vector.broadcast %6 : vector<1x128xf32> to vector<512x128xf32>
    %8 = arith.addf %3, %7 : vector<512x128xf32>
    %cst_7 = arith.constant 0.000000e+00 : f32
    %9 = vector.broadcast %cst_7 : f32 to vector<512x128xf32>
    %10 = arith.maximumf %8, %9 : vector<512x128xf32>
    %11 = vector.shape_cast %10 : vector<512x128xf32> to vector<2x16x16x128xf32>
    %cst_8 = arith.constant 0.000000e+00 : f32
    %12 = vector.broadcast %cst_8 : f32 to vector<2x18x8x128xf32>
    %cst_9 = arith.constant 0.000000e+00 : f32
    %13 = vector.broadcast %cst_9 : f32 to vector<2x1x16x128xf32>
    %c0_10 = arith.constant 0 : index
    %c0_11 = arith.constant 0 : index
    %c0_12 = arith.constant 0 : index
    %c0_13 = arith.constant 0 : index
    %14 = vector.load %arg9[%c0_10, %c0_11, %c0_12, %c0_13] : memref<2x18x32x128xf32, #tpu.memory_space<vmem>>, vector<2x18x8x128xf32>
    tpu.vector_store %arg9[%c0_10, %c0_11, %c0_12, %c0_13], %12 {strides = array<i32>} : memref<2x18x32x128xf32, #tpu.memory_space<vmem>>, vector<2x18x8x128xf32>,
    %c0_14 = arith.constant 0 : index
    %c0_15 = arith.constant 0 : index
    %c24 = arith.constant 24 : index
    %c0_16 = arith.constant 0 : index
    %15 = vector.load %arg9[%c0_14, %c0_15, %c24, %c0_16] : memref<2x18x32x128xf32, #tpu.memory_space<vmem>>, vector<2x18x8x128xf32>
    tpu.vector_store %arg9[%c0_14, %c0_15, %c24, %c0_16], %12 {strides = array<i32>} : memref<2x18x32x128xf32, #tpu.memory_space<vmem>>, vector<2x18x8x128xf32>,
    %c0_17 = arith.constant 0 : index
    %c0_18 = arith.constant 0 : index
    %c8 = arith.constant 8 : index
    %c0_19 = arith.constant 0 : index
    %16 = vector.load %arg9[%c0_17, %c0_18, %c8, %c0_19] : memref<2x18x32x128xf32, #tpu.memory_space<vmem>>, vector<2x1x16x128xf32>
    tpu.vector_store %arg9[%c0_17, %c0_18, %c8, %c0_19], %13 {strides = array<i32>} : memref<2x18x32x128xf32, #tpu.memory_space<vmem>>, vector<2x1x16x128xf32>,
    %c0_20 = arith.constant 0 : index
    %c17 = arith.constant 17 : index
    %c8_21 = arith.constant 8 : index
    %c0_22 = arith.constant 0 : index
    %17 = vector.load %arg9[%c0_20, %c17, %c8_21, %c0_22] : memref<2x18x32x128xf32, #tpu.memory_space<vmem>>, vector<2x1x16x128xf32>
    tpu.vector_store %arg9[%c0_20, %c17, %c8_21, %c0_22], %13 {strides = array<i32>} : memref<2x18x32x128xf32, #tpu.memory_space<vmem>>, vector<2x1x16x128xf32>,
    %c0_23 = arith.constant 0 : index
    %c1 = arith.constant 1 : index
    %c8_24 = arith.constant 8 : index
    %c0_25 = arith.constant 0 : index
    %18 = vector.load %arg9[%c0_23, %c1, %c8_24, %c0_25] : memref<2x18x32x128xf32, #tpu.memory_space<vmem>>, vector<2x16x16x128xf32>
    tpu.vector_store %arg9[%c0_23, %c1, %c8_24, %c0_25], %11 {strides = array<i32>} : memref<2x18x32x128xf32, #tpu.memory_space<vmem>>, vector<2x16x16x128xf32>,
    %c0_26 = arith.constant 0 : index
    %c0_27 = arith.constant 0 : index
    %19 = vector.load %arg4[%c0_26, %c0_27] : memref<16x128xf32, #tpu.memory_space<vmem>>, vector<16x128xf32>
    %cst_28 = arith.constant 0.000000e+00 : f32
    %20 = vector.broadcast %cst_28 : f32 to vector<2x16x16x128xf32>
    %c0_29 = arith.constant 0 : index
    %c0_30 = arith.constant 0 : index
    %c7 = arith.constant 7 : index
    %c0_31 = arith.constant 0 : index
    %21 = vector.load %arg9[%c0_29, %c0_30, %c7, %c0_31] : memref<2x18x32x128xf32, #tpu.memory_space<vmem>>, vector<2x16x16x128xf32>
    %22 = vector.extract_strided_slice %19 {offsets = [0, 0], sizes = [1, 128], strides = [1, 1]} : vector<16x128xf32> to vector<1x128xf32>
    %23 = vector.shape_cast %22 : vector<1x128xf32> to vector<128xf32>
    %24 = vector.shape_cast %23 : vector<128xf32> to vector<1x1x1x128xf32>
    %25 = vector.broadcast %24 : vector<1x1x1x128xf32> to vector<2x16x16x128xf32>
    %26 = arith.mulf %21, %25 : vector<2x16x16x128xf32>
    %27 = arith.addf %20, %26 : vector<2x16x16x128xf32>
    %c0_32 = arith.constant 0 : index
    %c0_33 = arith.constant 0 : index
    %c8_34 = arith.constant 8 : index
    %c0_35 = arith.constant 0 : index
    %28 = vector.load %arg9[%c0_32, %c0_33, %c8_34, %c0_35] : memref<2x18x32x128xf32, #tpu.memory_space<vmem>>, vector<2x16x16x128xf32>
    %29 = vector.extract_strided_slice %19 {offsets = [1, 0], sizes = [1, 128], strides = [1, 1]} : vector<16x128xf32> to vector<1x128xf32>
    %30 = vector.shape_cast %29 : vector<1x128xf32> to vector<128xf32>
    %31 = vector.shape_cast %30 : vector<128xf32> to vector<1x1x1x128xf32>
    %32 = vector.broadcast %31 : vector<1x1x1x128xf32> to vector<2x16x16x128xf32>
    %33 = arith.mulf %28, %32 : vector<2x16x16x128xf32>
    %34 = arith.addf %27, %33 : vector<2x16x16x128xf32>
    %c0_36 = arith.constant 0 : index
    %c0_37 = arith.constant 0 : index
    %c9 = arith.constant 9 : index
    %c0_38 = arith.constant 0 : index
    %35 = vector.load %arg9[%c0_36, %c0_37, %c9, %c0_38] : memref<2x18x32x128xf32, #tpu.memory_space<vmem>>, vector<2x16x16x128xf32>
    %36 = vector.extract_strided_slice %19 {offsets = [2, 0], sizes = [1, 128], strides = [1, 1]} : vector<16x128xf32> to vector<1x128xf32>
    %37 = vector.shape_cast %36 : vector<1x128xf32> to vector<128xf32>
    %38 = vector.shape_cast %37 : vector<128xf32> to vector<1x1x1x128xf32>
    %39 = vector.broadcast %38 : vector<1x1x1x128xf32> to vector<2x16x16x128xf32>
    %40 = arith.mulf %35, %39 : vector<2x16x16x128xf32>
    %41 = arith.addf %34, %40 : vector<2x16x16x128xf32>
    %c0_39 = arith.constant 0 : index
    %c1_40 = arith.constant 1 : index
    %c7_41 = arith.constant 7 : index
    %c0_42 = arith.constant 0 : index
    %42 = vector.load %arg9[%c0_39, %c1_40, %c7_41, %c0_42] : memref<2x18x32x128xf32, #tpu.memory_space<vmem>>, vector<2x16x16x128xf32>
    %43 = vector.extract_strided_slice %19 {offsets = [3, 0], sizes = [1, 128], strides = [1, 1]} : vector<16x128xf32> to vector<1x128xf32>
    %44 = vector.shape_cast %43 : vector<1x128xf32> to vector<128xf32>
    %45 = vector.shape_cast %44 : vector<128xf32> to vector<1x1x1x128xf32>
    %46 = vector.broadcast %45 : vector<1x1x1x128xf32> to vector<2x16x16x128xf32>
    %47 = arith.mulf %42, %46 : vector<2x16x16x128xf32>
    %48 = arith.addf %41, %47 : vector<2x16x16x128xf32>
    %49 = vector.extract_strided_slice %19 {offsets = [4, 0], sizes = [1, 128], strides = [1, 1]} : vector<16x128xf32> to vector<1x128xf32>
    %50 = vector.shape_cast %49 : vector<1x128xf32> to vector<128xf32>
    %51 = vector.shape_cast %50 : vector<128xf32> to vector<1x1x1x128xf32>
    %52 = vector.broadcast %51 : vector<1x1x1x128xf32> to vector<2x16x16x128xf32>
    %53 = arith.mulf %11, %52 : vector<2x16x16x128xf32>
    %54 = arith.addf %48, %53 : vector<2x16x16x128xf32>
    %c0_43 = arith.constant 0 : index
    %c1_44 = arith.constant 1 : index
    %c9_45 = arith.constant 9 : index
    %c0_46 = arith.constant 0 : index
    %55 = vector.load %arg9[%c0_43, %c1_44, %c9_45, %c0_46] : memref<2x18x32x128xf32, #tpu.memory_space<vmem>>, vector<2x16x16x128xf32>
    %56 = vector.extract_strided_slice %19 {offsets = [5, 0], sizes = [1, 128], strides = [1, 1]} : vector<16x128xf32> to vector<1x128xf32>
    %57 = vector.shape_cast %56 : vector<1x128xf32> to vector<128xf32>
    %58 = vector.shape_cast %57 : vector<128xf32> to vector<1x1x1x128xf32>
    %59 = vector.broadcast %58 : vector<1x1x1x128xf32> to vector<2x16x16x128xf32>
    %60 = arith.mulf %55, %59 : vector<2x16x16x128xf32>
    %61 = arith.addf %54, %60 : vector<2x16x16x128xf32>
    %c0_47 = arith.constant 0 : index
    %c2 = arith.constant 2 : index
    %c7_48 = arith.constant 7 : index
    %c0_49 = arith.constant 0 : index
    %62 = vector.load %arg9[%c0_47, %c2, %c7_48, %c0_49] : memref<2x18x32x128xf32, #tpu.memory_space<vmem>>, vector<2x16x16x128xf32>
    %63 = vector.extract_strided_slice %19 {offsets = [6, 0], sizes = [1, 128], strides = [1, 1]} : vector<16x128xf32> to vector<1x128xf32>
    %64 = vector.shape_cast %63 : vector<1x128xf32> to vector<128xf32>
    %65 = vector.shape_cast %64 : vector<128xf32> to vector<1x1x1x128xf32>
    %66 = vector.broadcast %65 : vector<1x1x1x128xf32> to vector<2x16x16x128xf32>
    %67 = arith.mulf %62, %66 : vector<2x16x16x128xf32>
    %68 = arith.addf %61, %67 : vector<2x16x16x128xf32>
    %c0_50 = arith.constant 0 : index
    %c2_51 = arith.constant 2 : index
    %c8_52 = arith.constant 8 : index
    %c0_53 = arith.constant 0 : index
    %69 = vector.load %arg9[%c0_50, %c2_51, %c8_52, %c0_53] : memref<2x18x32x128xf32, #tpu.memory_space<vmem>>, vector<2x16x16x128xf32>
    %70 = vector.extract_strided_slice %19 {offsets = [7, 0], sizes = [1, 128], strides = [1, 1]} : vector<16x128xf32> to vector<1x128xf32>
    %71 = vector.shape_cast %70 : vector<1x128xf32> to vector<128xf32>
    %72 = vector.shape_cast %71 : vector<128xf32> to vector<1x1x1x128xf32>
    %73 = vector.broadcast %72 : vector<1x1x1x128xf32> to vector<2x16x16x128xf32>
    %74 = arith.mulf %69, %73 : vector<2x16x16x128xf32>
    %75 = arith.addf %68, %74 : vector<2x16x16x128xf32>
    %c0_54 = arith.constant 0 : index
    %c2_55 = arith.constant 2 : index
    %c9_56 = arith.constant 9 : index
    %c0_57 = arith.constant 0 : index
    %76 = vector.load %arg9[%c0_54, %c2_55, %c9_56, %c0_57] : memref<2x18x32x128xf32, #tpu.memory_space<vmem>>, vector<2x16x16x128xf32>
    %77 = vector.extract_strided_slice %19 {offsets = [8, 0], sizes = [1, 128], strides = [1, 1]} : vector<16x128xf32> to vector<1x128xf32>
    %78 = vector.shape_cast %77 : vector<1x128xf32> to vector<128xf32>
    %79 = vector.shape_cast %78 : vector<128xf32> to vector<1x1x1x128xf32>
    %80 = vector.broadcast %79 : vector<1x1x1x128xf32> to vector<2x16x16x128xf32>
    %81 = arith.mulf %76, %80 : vector<2x16x16x128xf32>
    %82 = arith.addf %75, %81 : vector<2x16x16x128xf32>
    %c0_58 = arith.constant 0 : index
    %c0_59 = arith.constant 0 : index
    %83 = vector.load %arg5[%c0_58, %c0_59] : memref<1x128xf32, #tpu.memory_space<vmem>>, vector<1x128xf32>
    %84 = vector.shape_cast %83 : vector<1x128xf32> to vector<128xf32>
    %85 = vector.shape_cast %84 : vector<128xf32> to vector<1x1x1x128xf32>
    %86 = vector.broadcast %85 : vector<1x1x1x128xf32> to vector<2x16x16x128xf32>
    %87 = arith.addf %82, %86 : vector<2x16x16x128xf32>
    %cst_60 = arith.constant 0.000000e+00 : f32
    %88 = vector.broadcast %cst_60 : f32 to vector<2x16x16x128xf32>
    %89 = arith.maximumf %87, %88 : vector<2x16x16x128xf32>
    %90 = vector.shape_cast %89 : vector<2x16x16x128xf32> to vector<512x128xf32>
    %91 = arith.truncf %90 : vector<512x128xf32> to vector<512x128xbf16>
    %c0_61 = arith.constant 0 : index
    %c0_62 = arith.constant 0 : index
    %92 = vector.load %arg6[%c0_61, %c0_62] : memref<128x128xbf16, #tpu.memory_space<vmem>>, vector<128x128xbf16>
    %cst_63 = arith.constant dense<0.000000e+00> : vector<512x128xf32>
    %93 = tpu.matmul %91, %92, %cst_63 {dimension_numbers = #tpu.dot_dimension_numbers<[1], [0], [0], [1], [0, 0, 1, 1], [], []>} : vector<512x128xbf16>, vector<128x128xbf16>, vector<512x128xf32> -> vector<512x128xf32>
    %c0_64 = arith.constant 0 : index
    %c0_65 = arith.constant 0 : index
    %94 = vector.load %arg7[%c0_64, %c0_65] : memref<1x128xf32, #tpu.memory_space<vmem>>, vector<1x128xf32>
    %95 = vector.shape_cast %94 : vector<1x128xf32> to vector<128xf32>
    %96 = vector.shape_cast %95 : vector<128xf32> to vector<1x128xf32>
    %97 = vector.broadcast %96 : vector<1x128xf32> to vector<512x128xf32>
    %98 = arith.addf %93, %97 : vector<512x128xf32>
    %99 = arith.extf %1 : vector<512x128xbf16> to vector<512x128xf32>
    %100 = arith.addf %98, %99 : vector<512x128xf32>
    %cst_66 = arith.constant 0.000000e+00 : f32
    %101 = vector.broadcast %cst_66 : f32 to vector<512x128xf32>
    %102 = arith.maximumf %100, %101 : vector<512x128xf32>
    %103 = vector.shape_cast %102 : vector<512x128xf32> to vector<2x16x16x128xf32>
    %104 = arith.truncf %103 : vector<2x16x16x128xf32> to vector<2x16x16x128xbf16>
    %c0_67 = arith.constant 0 : index
    %c0_68 = arith.constant 0 : index
    %c0_69 = arith.constant 0 : index
    %c0_70 = arith.constant 0 : index
    %105 = vector.load %arg8[%c0_67, %c0_68, %c0_69, %c0_70] : memref<2x16x16x128xbf16, #tpu.memory_space<vmem>>, vector<2x16x16x128xbf16>
    tpu.vector_store %arg8[%c0_67, %c0_68, %c0_69, %c0_70], %104 {strides = array<i32>} : memref<2x16x16x128xbf16, #tpu.memory_space<vmem>>, vector<2x16x16x128xbf16>,
    return
  }
  func.func @transform_0(%arg0: i32) -> (i32, i32, i32, i32) {
    %c0_i32 = arith.constant 0 : i32
    %c0_i32_0 = arith.constant 0 : i32
    %c0_i32_1 = arith.constant 0 : i32
    %c0_i32_2 = arith.constant 0 : i32
    return %arg0, %c0_i32, %c0_i32_0, %c0_i32_1 : i32, i32, i32, i32
  }
  func.func @transform_1(%arg0: i32) -> (i32, i32) {
    %c0_i32 = arith.constant 0 : i32
    %c0_i32_0 = arith.constant 0 : i32
    %c0_i32_1 = arith.constant 0 : i32
    return %c0_i32, %c0_i32_0 : i32, i32
  }
  func.func @transform_2(%arg0: i32) -> (i32, i32) {
    %c0_i32 = arith.constant 0 : i32
    %c0_i32_0 = arith.constant 0 : i32
    %c0_i32_1 = arith.constant 0 : i32
    return %c0_i32, %c0_i32_0 : i32, i32
  }
  func.func @transform_3(%arg0: i32) -> (i32, i32) {
    %c0_i32 = arith.constant 0 : i32
    %c0_i32_0 = arith.constant 0 : i32
    %c0_i32_1 = arith.constant 0 : i32
    return %c0_i32, %c0_i32_0 : i32, i32
  }
  func.func @transform_4(%arg0: i32) -> (i32, i32) {
    %c0_i32 = arith.constant 0 : i32
    %c0_i32_0 = arith.constant 0 : i32
    %c0_i32_1 = arith.constant 0 : i32
    return %c0_i32, %c0_i32_0 : i32, i32
  }
  func.func @transform_5(%arg0: i32) -> (i32, i32) {
    %c0_i32 = arith.constant 0 : i32
    %c0_i32_0 = arith.constant 0 : i32
    %c0_i32_1 = arith.constant 0 : i32
    return %c0_i32, %c0_i32_0 : i32, i32
  }
  func.func @transform_6(%arg0: i32) -> (i32, i32) {
    %c0_i32 = arith.constant 0 : i32
    %c0_i32_0 = arith.constant 0 : i32
    %c0_i32_1 = arith.constant 0 : i32
    return %c0_i32, %c0_i32_0 : i32, i32
  }
  func.func @transform_7(%arg0: i32) -> (i32, i32, i32, i32) {
    %c0_i32 = arith.constant 0 : i32
    %c0_i32_0 = arith.constant 0 : i32
    %c0_i32_1 = arith.constant 0 : i32
    %c0_i32_2 = arith.constant 0 : i32
    return %arg0, %c0_i32, %c0_i32_0, %c0_i32_1 : i32, i32, i32, i32
  }
}

</mosaic_0001>

<llo_original>
// kernel: tpu_custom_call.1
$region0: #{tpu_custom_call.1}
  #allocation0 [shape = 'u32[]', space=smem, size = 0x4, offset = 0x4, fixed_abs, tag = 'smem constant byte address 0x4 - core index']
  #allocation1 [shape = 'u32[144,128]{1,0:T(1,128)}', space=vmem, size = 0x12000, scoped, tag = 'internal scratch']
  #allocation2 [shape = 'f32[2,18,32,128]{3,2,1,0:T(8,128)}', space=vmem, size = 0x90000, scoped, tag = 'scratch operand']
  %s0 = inlined_call_operand.hbm [shape: bf16[4,16,16,128], index: 0, kind: input, shape index: {}]
  %s1 = inlined_call_operand.hbm [shape: bf16[128,128], index: 1, kind: input, shape index: {}]
  %s2 = inlined_call_operand.vmem [shape: f32[1,128], index: 2, kind: input, shape index: {}]
  %s3 = inlined_call_operand.hbm [shape: f32[16,128], index: 3, kind: input, shape index: {}]
  %s4 = inlined_call_operand.vmem [shape: f32[1,128], index: 4, kind: input, shape index: {}]
  %s5 = inlined_call_operand.hbm [shape: bf16[128,128], index: 5, kind: input, shape index: {}]
  %s6 = inlined_call_operand.vmem [shape: f32[1,128], index: 6, kind: input, shape index: {}]
  %s7 = inlined_call_operand.hbm [shape: bf16[4,16,16,128], index: 7, kind: output, shape index: {}]
  %s8 = sld [smem:[#allocation0]]
  $region77: #{tpu_custom_call.1} parent=0
    _
  %s10 = ssub.s32 1, %s8
  %s11 = scalar_select 0, %s10, %s8
  $region1: #{tpu_custom_call.1} parent=0
    #allocation3 [shape = 'u8[262144]{0}', space=vmem, size = 0x40000, scoped, tag = 'input window, operand 0']
    #allocation4 [shape = 's32[2]{0}', space=sflag, size = 0x8, scoped, tag = 'scoped memory for tpu_custom_call.1']
    #allocation5 [shape = 's32[2]{0}', space=sflag, size = 0x8, scoped, tag = 'scoped memory for tpu_custom_call.1']
    #allocation6 [shape = 'u8[32768]{0}', space=vmem, size = 0x8000, scoped, tag = 'input window, operand 1, single buffered']
    #allocation7 [shape = 's32[1]{0}', space=sflag, size = 0x4, scoped, tag = 'scoped memory for tpu_custom_call.1']
    #allocation8 [shape = 'u8[8192]{0}', space=vmem, size = 0x2000, scoped, tag = 'input window, operand 3, single buffered']
    #allocation9 [shape = 'u8[32768]{0}', space=vmem, size = 0x8000, scoped, tag = 'input window, operand 5, single buffered']
    #allocation10 [shape = 's32[1]{0}', space=sflag, size = 0x4, scoped, tag = 'scoped memory for tpu_custom_call.1']
    #allocation11 [shape = 'u8[262144]{0}', space=vmem, size = 0x40000, scoped, tag = 'output window, operand 0']
    %12 = vsyncpa [#allocation4], 0
    %s13 = scalar_lea.sflag [#allocation4], 1
    %14 = vsyncpa %s13, 0
    %15 = vsyncpa [#allocation7], 0
    %16 = vsyncpa [#allocation10], 0
    %17 = vsyncpa [#allocation5], 0
    %s18 = scalar_lea.sflag [#allocation5], 1
    %19 = vsyncpa %s18, 0
    loop: start=0, step=1, limit=4
    $region2: #{tpu_custom_call.1} parent=1 // loop_pre_header
      _
    $region3: #{tpu_custom_call.1} parent=1 // loop_header
      %s21 = sphi 0, %s25
      %p22 = scmp.ge.s32.totalorder %s21, 4
      %s31 = sphi 0, %s33
      %s34 = sphi 0, %s31
      %s35 = sphi 0, %s34
      %s51 = sphi 0, %s35
      %s55 = sphi 0, %s55
      %s57 = sphi 0, %s55
      %s58 = sphi 0, %s57
      %s72 = sphi 0, %s58
      %s76 = sphi 0, %s76
      %s78 = sphi 0, %s76
      %s79 = sphi 0, %s78
      %s93 = sphi 0, %s79
      %s97 = sphi 0, %s97
      %s99 = sphi 0, %s97
      %s100 = sphi 0, %s99
      %s114 = sphi 0, %s100
      %s118 = sphi 0, %s118
      %s120 = sphi 0, %s118
      %s121 = sphi 0, %s120
      %s135 = sphi 0, %s121
      %s139 = sphi 0, %s139
      %s141 = sphi 0, %s139
      %s142 = sphi 0, %s141
      %s156 = sphi 0, %s142
      %s160 = sphi 0, %s160
      %s162 = sphi 0, %s160
      %s163 = sphi 0, %s162
      %s177 = sphi 0, %s163
      %s183 = sphi 0, %s185
      %s186 = sphi 0, %s183
      %s187 = sphi 0, %s186
      %s203 = sphi 0, %s187
    $region4: #{tpu_custom_call.1} parent=1 // loop_header_branch
      %24 = sbr.rel (%p22) target = $region8
    $region5: #{tpu_custom_call.1} parent=1 // loop_body
      %s26 = ssub.s32 %s21, 1
      %s27 = ssub.s32 %s21, 2
      %s28 = sadd.s32 %s21, 1
      %s29 = ssub.s32 %s21, %s28
      %p30 = scmp.eq.s32.totalorder %s29, 0
      %s32 = sadd.s32 %s31, 1
      %s33 = scalar_select %p30, %s31, %s32
      %p36 = pneg %p30
      %p37 = scmp.eq.s32.totalorder %s21, 1
      %p38 = por %p36, %p37
      %p39 = scmp.ne.s32.totalorder %s31, %s34
      %p40 = scmp.eq.s32.totalorder %s21, 0
      %p41 = por %p39, %p40
      %p42 = scmp.ne.s32.totalorder %s31, %s34
      %p43 = scmp.eq.s32.totalorder %s26, 1
      %p44 = por %p42, %p43
      %p45 = scmp.ne.s32.totalorder %s34, %s35
      %p46 = scmp.eq.s32.totalorder %s26, 0
      %p47 = por %p45, %p46
      %p48 = scmp.ne.s32.totalorder %s34, %s35
      %p49 = scmp.eq.s32.totalorder %s27, 1
      %p50 = por %p48, %p49
      %p52 = scmp.ne.s32.totalorder %s35, %s51
      %p53 = scmp.eq.s32.totalorder %s27, 0
      %p54 = por %p52, %p53
      %s56 = sadd.s32 %s55, 1
      %p59 = scmp.eq.s32.totalorder %s21, 1
      %p60 = scmp.ne.s32.totalorder %s55, %s57
      %p61 = scmp.eq.s32.totalorder %s21, 0
      %p62 = por %p60, %p61
      %p63 = scmp.ne.s32.totalorder %s55, %s57
      %p64 = scmp.eq.s32.totalorder %s26, 1
      %p65 = por %p63, %p64
      %p66 = scmp.ne.s32.totalorder %s57, %s58
      %p67 = scmp.eq.s32.totalorder %s26, 0
      %p68 = por %p66, %p67
      %p69 = scmp.ne.s32.totalorder %s57, %s58
      %p70 = scmp.eq.s32.totalorder %s27, 1
      %p71 = por %p69, %p70
      %p73 = scmp.ne.s32.totalorder %s58, %s72
      %p74 = scmp.eq.s32.totalorder %s27, 0
      %p75 = por %p73, %p74
      %s77 = sadd.s32 %s76, 1
      %p80 = scmp.eq.s32.totalorder %s21, 1
      %p81 = scmp.ne.s32.totalorder %s76, %s78
      %p82 = scmp.eq.s32.totalorder %s21, 0
      %p83 = por %p81, %p82
      %p84 = scmp.ne.s32.totalorder %s76, %s78
      %p85 = scmp.eq.s32.totalorder %s26, 1
      %p86 = por %p84, %p85
      %p87 = scmp.ne.s32.totalorder %s78, %s79
      %p88 = scmp.eq.s32.totalorder %s26, 0
      %p89 = por %p87, %p88
      %p90 = scmp.ne.s32.totalorder %s78, %s79
      %p91 = scmp.eq.s32.totalorder %s27, 1
      %p92 = por %p90, %p91
      %p94 = scmp.ne.s32.totalorder %s79, %s93
      %p95 = scmp.eq.s32.totalorder %s27, 0
      %p96 = por %p94, %p95
      %s98 = sadd.s32 %s97, 1
      %p101 = scmp.eq.s32.totalorder %s21, 1
      %p102 = scmp.ne.s32.totalorder %s97, %s99
      %p103 = scmp.eq.s32.totalorder %s21, 0
      %p104 = por %p102, %p103
      %p105 = scmp.ne.s32.totalorder %s97, %s99
      %p106 = scmp.eq.s32.totalorder %s26, 1
      %p107 = por %p105, %p106
      %p108 = scmp.ne.s32.totalorder %s99, %s100
      %p109 = scmp.eq.s32.totalorder %s26, 0
      %p110 = por %p108, %p109
      %p111 = scmp.ne.s32.totalorder %s99, %s100
      %p112 = scmp.eq.s32.totalorder %s27, 1
      %p113 = por %p111, %p112
      %p115 = scmp.ne.s32.totalorder %s100, %s114
      %p116 = scmp.eq.s32.totalorder %s27, 0
      %p117 = por %p115, %p116
      %s119 = sadd.s32 %s118, 1
      %p122 = scmp.eq.s32.totalorder %s21, 1
      %p123 = scmp.ne.s32.totalorder %s118, %s120
      %p124 = scmp.eq.s32.totalorder %s21, 0
      %p125 = por %p123, %p124
      %p126 = scmp.ne.s32.totalorder %s118, %s120
      %p127 = scmp.eq.s32.totalorder %s26, 1
      %p128 = por %p126, %p127
      %p129 = scmp.ne.s32.totalorder %s120, %s121
      %p130 = scmp.eq.s32.totalorder %s26, 0
      %p131 = por %p129, %p130
      %p132 = scmp.ne.s32.totalorder %s120, %s121
      %p133 = scmp.eq.s32.totalorder %s27, 1
      %p134 = por %p132, %p133
      %p136 = scmp.ne.s32.totalorder %s121, %s135
      %p137 = scmp.eq.s32.totalorder %s27, 0
      %p138 = por %p136, %p137
      %s140 = sadd.s32 %s139, 1
      %p143 = scmp.eq.s32.totalorder %s21, 1
      %p144 = scmp.ne.s32.totalorder %s139, %s141
      %p145 = scmp.eq.s32.totalorder %s21, 0
      %p146 = por %p144, %p145
      %p147 = scmp.ne.s32.totalorder %s139, %s141
      %p148 = scmp.eq.s32.totalorder %s26, 1
      %p149 = por %p147, %p148
      %p150 = scmp.ne.s32.totalorder %s141, %s142
      %p151 = scmp.eq.s32.totalorder %s26, 0
      %p152 = por %p150, %p151
      %p153 = scmp.ne.s32.totalorder %s141, %s142
      %p154 = scmp.eq.s32.totalorder %s27, 1
      %p155 = por %p153, %p154
      %p157 = scmp.ne.s32.totalorder %s142, %s156
      %p158 = scmp.eq.s32.totalorder %s27, 0
      %p159 = por %p157, %p158
      %s161 = sadd.s32 %s160, 1
      %p164 = scmp.eq.s32.totalorder %s21, 1
      %p165 = scmp.ne.s32.totalorder %s160, %s162
      %p166 = scmp.eq.s32.totalorder %s21, 0
      %p167 = por %p165, %p166
      %p168 = scmp.ne.s32.totalorder %s160, %s162
      %p169 = scmp.eq.s32.totalorder %s26, 1
      %p170 = por %p168, %p169
      %p171 = scmp.ne.s32.totalorder %s162, %s163
      %p172 = scmp.eq.s32.totalorder %s26, 0
      %p173 = por %p171, %p172
      %p174 = scmp.ne.s32.totalorder %s162, %s163
      %p175 = scmp.eq.s32.totalorder %s27, 1
      %p176 = por %p174, %p175
      %p178 = scmp.ne.s32.totalorder %s163, %s177
      %p179 = scmp.eq.s32.totalorder %s27, 0
      %p180 = por %p178, %p179
      %s181 = ssub.s32 %s21, %s28
      %p182 = scmp.eq.s32.totalorder %s181, 0
      %s184 = sadd.s32 %s183, 1
      %s185 = scalar_select %p182, %s183, %s184
      %p188 = pneg %p182
      %p189 = scmp.eq.s32.totalorder %s21, 1
      %p190 = por %p188, %p189
      %p191 = scmp.ne.s32.totalorder %s183, %s186
      %p192 = scmp.eq.s32.totalorder %s21, 0
      %p193 = por %p191, %p192
      %p194 = scmp.ne.s32.totalorder %s183, %s186
      %p195 = scmp.eq.s32.totalorder %s26, 1
      %p196 = por %p194, %p195
      %p197 = scmp.ne.s32.totalorder %s186, %s187
      %p198 = scmp.eq.s32.totalorder %s26, 0
      %p199 = por %p197, %p198
      %p200 = scmp.ne.s32.totalorder %s186, %s187
      %p201 = scmp.eq.s32.totalorder %s27, 1
      %p202 = por %p200, %p201
      %p204 = scmp.ne.s32.totalorder %s187, %s203
      %p205 = scmp.eq.s32.totalorder %s27, 0
      %p206 = por %p204, %p205
      %p207 = scmp.le.s32.totalorder 1, %s21
      %p208 = scmp.lt.s32.totalorder %s21, 3
      %p209 = pnand %p207, %p208
      %p210 = pneg %p209
      // Predicated region
      $region9: #{tpu_custom_call.1} parent=5 // pred_check
        _
      $region10: #{tpu_custom_call.1} parent=5 // pred_check_branch
        %212 = sbr.rel (%p209) target = $region12
      $region11: #{tpu_custom_call.1} parent=5 // pred_region
        %s213 = ssub.s32 %s21, 1
        // Predicated region
        $region13: #{tpu_custom_call.1} parent=11 // pred_check
          %p214 = pneg %p68
        $region14: #{tpu_custom_call.1} parent=11 // pred_check_branch
          %216 = sbr.rel (%p214) target = $region16
        $region15: #{tpu_custom_call.1} parent=11 // pred_region
          %s218 = ssub.s32 1024, 1024
          %219 = vsyncadd [#allocation7], %s218
          %s220 = sshll.u32 [#allocation6], 4
          %s221 = int_to_ptr.vmem [resolvable:$true] %s220
          %226 = dma.hbm_to_vmem [thread:$0]  %s1, 1024, %s221, [#allocation7], 64, 64, 4
        $region16: #{tpu_custom_call.1} parent=11 // pred_fallthru
          _
        // Predicated region
        $region17: #{tpu_custom_call.1} parent=11 // pred_check
          %p227 = pneg %p89
        $region18: #{tpu_custom_call.1} parent=11 // pred_check_branch
          %229 = sbr.rel (%p227) target = $region20
        $region19: #{tpu_custom_call.1} parent=11 // pred_region
          _
        $region20: #{tpu_custom_call.1} parent=11 // pred_fallthru
          _
        // Predicated region
        $region21: #{tpu_custom_call.1} parent=11 // pred_check
          %p230 = pneg %p110
        $region22: #{tpu_custom_call.1} parent=11 // pred_check_branch
          %232 = sbr.rel (%p230) target = $region24
        $region23: #{tpu_custom_call.1} parent=11 // pred_region
          %s234 = ssub.s32 256, 256
          %235 = vsyncadd [#allocation7], %s234
          %s236 = sshll.u32 [#allocation8], 4
          %s237 = int_to_ptr.vmem [resolvable:$true] %s236
          %242 = dma.hbm_to_vmem [thread:$0]  %s3, 256, %s237, [#allocation7], 128, 128, 8
        $region24: #{tpu_custom_call.1} parent=11 // pred_fallthru
          _
        // Predicated region
        $region25: #{tpu_custom_call.1} parent=11 // pred_check
          %p243 = pneg %p131
        $region26: #{tpu_custom_call.1} parent=11 // pred_check_branch
          %245 = sbr.rel (%p243) target = $region28
        $region27: #{tpu_custom_call.1} parent=11 // pred_region
          _
        $region28: #{tpu_custom_call.1} parent=11 // pred_fallthru
          _
        // Predicated region
        $region29: #{tpu_custom_call.1} parent=11 // pred_check
          %p246 = pneg %p152
        $region30: #{tpu_custom_call.1} parent=11 // pred_check_branch
          %248 = sbr.rel (%p246) target = $region32
        $region31: #{tpu_custom_call.1} parent=11 // pred_region
          %s250 = ssub.s32 1024, 1024
          %251 = vsyncadd [#allocation10], %s250
          %s252 = sshll.u32 [#allocation9], 4
          %s253 = int_to_ptr.vmem [resolvable:$true] %s252
          %258 = dma.hbm_to_vmem [thread:$0]  %s5, 1024, %s253, [#allocation10], 64, 64, 4
        $region32: #{tpu_custom_call.1} parent=11 // pred_fallthru
          _
        // Predicated region
        $region33: #{tpu_custom_call.1} parent=11 // pred_check
          %p259 = pneg %p173
        $region34: #{tpu_custom_call.1} parent=11 // pred_check_branch
          %261 = sbr.rel (%p259) target = $region36
        $region35: #{tpu_custom_call.1} parent=11 // pred_region
          _
        $region36: #{tpu_custom_call.1} parent=11 // pred_fallthru
          _
      $region12: #{tpu_custom_call.1} parent=5 // pred_fallthru
        _
      %p262 = scmp.lt.s32.totalorder %s21, 2
      // Predicated region
      $region37: #{tpu_custom_call.1} parent=5 // pred_check
        %p263 = pneg %p262
      $region38: #{tpu_custom_call.1} parent=5 // pred_check_branch
        %265 = sbr.rel (%p263) target = $region40
      $region39: #{tpu_custom_call.1} parent=5 // pred_region
        // Predicated region
        $region41: #{tpu_custom_call.1} parent=39 // pred_check
          %p266 = pneg %p41
        $region42: #{tpu_custom_call.1} parent=39 // pred_check_branch
          %268 = sbr.rel (%p266) target = $region44
        $region43: #{tpu_custom_call.1} parent=39 // pred_region
          %s269 = sand.u32 %s31, 1
          %s270 = scalar_lea.sflag [#allocation4], %s269
          %s271 = sand.u32 %s31, 1
          %s272 = smul.addr %s271, 256
          %s273 = scalar_lea.vmem [#allocation3], %s272
          %s274 = smul.u32 2, %s21
          %s276 = ssub.s32 4096, 4096
          %277 = vsyncadd %s270, %s276
          %s278 = smul.addr %s274, 32
          %s279 = smul.addr %s278, 64
          %s280 = scalar_lea.hbm %s0, %s279
          %s281 = sshll.u32 %s273, 4
          %s282 = int_to_ptr.vmem [resolvable:$true] %s281
          %287 = dma.hbm_to_vmem [thread:$0]  %s280, 4096, %s282, %s270, 64, 64, 4
        $region44: #{tpu_custom_call.1} parent=39 // pred_fallthru
          _
      $region40: #{tpu_custom_call.1} parent=5 // pred_fallthru
        _
      %p288 = scmp.le.s32.totalorder 1, %s21
      %p289 = scmp.lt.s32.totalorder %s21, 3
      %p290 = pnand %p288, %p289
      %p291 = pneg %p290
      // Predicated region
      $region45: #{tpu_custom_call.1} parent=5 // pred_check
        _
      $region46: #{tpu_custom_call.1} parent=5 // pred_check_branch
        %293 = sbr.rel (%p290) target = $region48
      $region47: #{tpu_custom_call.1} parent=5 // pred_region
        %s294 = ssub.s32 %s21, 1
        %s295 = sand.u32 %s34, 1
        %s296 = scalar_lea.sflag [#allocation4], %s295
        %s297 = sand.u32 %s34, 1
        %s298 = smul.addr %s297, 256
        %s299 = scalar_lea.vmem [#allocation3], %s298
        // Predicated region
        $region49: #{tpu_custom_call.1} parent=47 // pred_check
          %p300 = pneg %p47
        $region50: #{tpu_custom_call.1} parent=47 // pred_check_branch
          %302 = sbr.rel (%p300) target = $region52
        $region51: #{tpu_custom_call.1} parent=47 // pred_region
          %303 = dma.done %s296, 4096
        $region52: #{tpu_custom_call.1} parent=47 // pred_fallthru
          _
        // Predicated region
        $region53: #{tpu_custom_call.1} parent=47 // pred_check
          %p304 = pneg %p68
        $region54: #{tpu_custom_call.1} parent=47 // pred_check_branch
          %306 = sbr.rel (%p304) target = $region56
        $region55: #{tpu_custom_call.1} parent=47 // pred_region
          %307 = dma.done [#allocation7], 1024
        $region56: #{tpu_custom_call.1} parent=47 // pred_fallthru
          _
        // Predicated region
        $region57: #{tpu_custom_call.1} parent=47 // pred_check
          %p308 = pneg %p110
        $region58: #{tpu_custom_call.1} parent=47 // pred_check_branch
          %310 = sbr.rel (%p308) target = $region60
        $region59: #{tpu_custom_call.1} parent=47 // pred_region
          %311 = dma.done [#allocation7], 256
        $region60: #{tpu_custom_call.1} parent=47 // pred_fallthru
          _
        // Predicated region
        $region61: #{tpu_custom_call.1} parent=47 // pred_check
          %p312 = pneg %p152
        $region62: #{tpu_custom_call.1} parent=47 // pred_check_branch
          %314 = sbr.rel (%p312) target = $region64
        $region63: #{tpu_custom_call.1} parent=47 // pred_region
          %315 = dma.done [#allocation10], 1024
        $region64: #{tpu_custom_call.1} parent=47 // pred_fallthru
          _
        %s316 = sand.u32 %s34, 1
        %s317 = scalar_lea.sflag [#allocation4], %s316
        %s318 = sand.u32 %s34, 1
        %s319 = smul.addr %s318, 256
        %s320 = scalar_lea.vmem [#allocation3], %s319
        %p321 = pneg %p47
        %p322 = pneg %p44
        %p323 = pneg %p68
        %p324 = pneg %p65
        %p325 = pneg %p89
        %p326 = pneg %p86
        %p327 = pneg %p110
        %p328 = pneg %p107
        %p329 = pneg %p131
        %p330 = pneg %p128
        %p331 = pneg %p152
        %p332 = pneg %p149
        %p333 = pneg %p173
        %p334 = pneg %p170
        %p335 = pneg %p199
        %p336 = pneg %p196
        %s337 = sand.u32 %s186, 1
        %s338 = scalar_lea.sflag [#allocation5], %s337
        %s339 = sand.u32 %s186, 1
        %s340 = smul.addr %s339, 256
        %s341 = scalar_lea.vmem [#allocation11], %s340
        %s342 = smul.u32 2, %s26
        %s343 = smul.u32 2, %s26
        %v345 = vld [vmem:[%s299] sm:$0xf]
        %v346 = vld [vmem:[%s299 + $0x4] sm:$0xf]
        %v347 = vld [vmem:[%s299 + $0x8] sm:$0xf]
        %v348 = vld [vmem:[%s299 + $0xc] sm:$0xf]
        %v349 = vld [vmem:[%s299 + $0x10] sm:$0xf]
        %v350 = vld [vmem:[%s299 + $0x14] sm:$0xf]
        %v351 = vld [vmem:[%s299 + $0x18] sm:$0xf]
        %v352 = vld [vmem:[%s299 + $0x1c] sm:$0xf]
        %v353 = vld [vmem:[%s299 + $0x20] sm:$0xf]
        %v354 = vld [vmem:[%s299 + $0x24] sm:$0xf]
        %v355 = vld [vmem:[%s299 + $0x28] sm:$0xf]
        %v356 = vld [vmem:[%s299 + $0x2c] sm:$0xf]
        %v357 = vld [vmem:[%s299 + $0x30] sm:$0xf]
        %v358 = vld [vmem:[%s299 + $0x34] sm:$0xf]
        %v359 = vld [vmem:[%s299 + $0x38] sm:$0xf]
        %v360 = vld [vmem:[%s299 + $0x3c] sm:$0xf]
        %v361 = vld [vmem:[%s299 + $0x40] sm:$0xf]
        %v362 = vld [vmem:[%s299 + $0x44] sm:$0xf]
        %v363 = vld [vmem:[%s299 + $0x48] sm:$0xf]
        %v364 = vld [vmem:[%s299 + $0x4c] sm:$0xf]
        %v365 = vld [vmem:[%s299 + $0x50] sm:$0xf]
        %v366 = vld [vmem:[%s299 + $0x54] sm:$0xf]
        %v367 = vld [vmem:[%s299 + $0x58] sm:$0xf]
        %v368 = vld [vmem:[%s299 + $0x5c] sm:$0xf]
        %v369 = vld [vmem:[%s299 + $0x60] sm:$0xf]
        %v370 = vld [vmem:[%s299 + $0x64] sm:$0xf]
        %v371 = vld [vmem:[%s299 + $0x68] sm:$0xf]
        %v372 = vld [vmem:[%s299 + $0x6c] sm:$0xf]
        %v373 = vld [vmem:[%s299 + $0x70] sm:$0xf]
        %v374 = vld [vmem:[%s299 + $0x74] sm:$0xf]
        %v375 = vld [vmem:[%s299 + $0x78] sm:$0xf]
        %v376 = vld [vmem:[%s299 + $0x7c] sm:$0xf]
        %v377 = vld [vmem:[%s299 + $0x80] sm:$0xf]
        %v378 = vld [vmem:[%s299 + $0x84] sm:$0xf]
        %v379 = vld [vmem:[%s299 + $0x88] sm:$0xf]
        %v380 = vld [vmem:[%s299 + $0x8c] sm:$0xf]
        %v381 = vld [vmem:[%s299 + $0x90] sm:$0xf]
        %v382 = vld [vmem:[%s299 + $0x94] sm:$0xf]
        %v383 = vld [vmem:[%s299 + $0x98] sm:$0xf]
        %v384 = vld [vmem:[%s299 + $0x9c] sm:$0xf]
        %v385 = vld [vmem:[%s299 + $0xa0] sm:$0xf]
        %v386 = vld [vmem:[%s299 + $0xa4] sm:$0xf]
        %v387 = vld [vmem:[%s299 + $0xa8] sm:$0xf]
        %v388 = vld [vmem:[%s299 + $0xac] sm:$0xf]
        %v389 = vld [vmem:[%s299 + $0xb0] sm:$0xf]
        %v390 = vld [vmem:[%s299 + $0xb4] sm:$0xf]
        %v391 = vld [vmem:[%s299 + $0xb8] sm:$0xf]
        %v392 = vld [vmem:[%s299 + $0xbc] sm:$0xf]
        %v393 = vld [vmem:[%s299 + $0xc0] sm:$0xf]
        %v394 = vld [vmem:[%s299 + $0xc4] sm:$0xf]
        %v395 = vld [vmem:[%s299 + $0xc8] sm:$0xf]
        %v396 = vld [vmem:[%s299 + $0xcc] sm:$0xf]
        %v397 = vld [vmem:[%s299 + $0xd0] sm:$0xf]
        %v398 = vld [vmem:[%s299 + $0xd4] sm:$0xf]
        %v399 = vld [vmem:[%s299 + $0xd8] sm:$0xf]
        %v400 = vld [vmem:[%s299 + $0xdc] sm:$0xf]
        %v401 = vld [vmem:[%s299 + $0xe0] sm:$0xf]
        %v402 = vld [vmem:[%s299 + $0xe4] sm:$0xf]
        %v403 = vld [vmem:[%s299 + $0xe8] sm:$0xf]
        %v404 = vld [vmem:[%s299 + $0xec] sm:$0xf]
        %v405 = vld [vmem:[%s299 + $0xf0] sm:$0xf]
        %v406 = vld [vmem:[%s299 + $0xf4] sm:$0xf]
        %v407 = vld [vmem:[%s299 + $0xf8] sm:$0xf]
        %v408 = vld [vmem:[%s299 + $0xfc] sm:$0xf]
        %v409 = vld [vmem:[#allocation6] sm:$0xf]
        %v410 = vld [vmem:[#allocation6 + $0x4] sm:$0xf]
        %v411 = vld [vmem:[#allocation6 + $0x8] sm:$0xf]
        %v412 = vld [vmem:[#allocation6 + $0xc] sm:$0xf]
        %v413 = vld [vmem:[#allocation6 + $0x10] sm:$0xf]
        %v414 = vld [vmem:[#allocation6 + $0x14] sm:$0xf]
        %v415 = vld [vmem:[#allocation6 + $0x18] sm:$0xf]
        %v416 = vld [vmem:[#allocation6 + $0x1c] sm:$0xf]
        %v417 = vld [vmem:[#allocation6 + $0x20] sm:$0xf]
        %v418 = vld [vmem:[#allocation6 + $0x24] sm:$0xf]
        %v419 = vld [vmem:[#allocation6 + $0x28] sm:$0xf]
        %v420 = vld [vmem:[#allocation6 + $0x2c] sm:$0xf]
        %v421 = vld [vmem:[#allocation6 + $0x30] sm:$0xf]
        %v422 = vld [vmem:[#allocation6 + $0x34] sm:$0xf]
        %v423 = vld [vmem:[#allocation6 + $0x38] sm:$0xf]
        %v424 = vld [vmem:[#allocation6 + $0x3c] sm:$0xf]
        %v425 = vld [vmem:[%s2] sm:$0x1]
        %v427 = vlaneseq
        %v428 = vshrl.u32 %v427, 7
        %v429 = vsub.s32 0, %v428
        %v430 = vrot.slane %v425, %v429
        %v496 = vunpack.c.l.b16 %v345
        %v497 = vunpack.c.l.b16 %v346
        %v498 = vunpack.c.l.b16 %v347
        %v499 = vunpack.c.l.b16 %v348
        %v500 = vunpack.c.l.b16 %v349
        %v501 = vunpack.c.l.b16 %v350
        %v502 = vunpack.c.l.b16 %v351
        %v503 = vunpack.c.l.b16 %v352
        %v504 = vunpack.c.l.b16 %v353
        %v505 = vunpack.c.l.b16 %v354
        %v506 = vunpack.c.l.b16 %v355
        %v507 = vunpack.c.l.b16 %v356
        %v508 = vunpack.c.l.b16 %v357
        %v509 = vunpack.c.l.b16 %v358
        %v510 = vunpack.c.l.b16 %v359
        %v511 = vunpack.c.l.b16 %v360
        %v512 = vunpack.c.l.b16 %v361
        %v513 = vunpack.c.l.b16 %v362
        %v514 = vunpack.c.l.b16 %v363
        %v515 = vunpack.c.l.b16 %v364
        %v516 = vunpack.c.l.b16 %v365
        %v517 = vunpack.c.l.b16 %v366
        %v518 = vunpack.c.l.b16 %v367
        %v519 = vunpack.c.l.b16 %v368
        %v520 = vunpack.c.l.b16 %v369
        %v521 = vunpack.c.l.b16 %v370
        %v522 = vunpack.c.l.b16 %v371
        %v523 = vunpack.c.l.b16 %v372
        %v524 = vunpack.c.l.b16 %v373
        %v525 = vunpack.c.l.b16 %v374
        %v526 = vunpack.c.l.b16 %v375
        %v527 = vunpack.c.l.b16 %v376
        %v528 = vunpack.c.l.b16 %v377
        %v529 = vunpack.c.l.b16 %v378
        %v530 = vunpack.c.l.b16 %v379
        %v531 = vunpack.c.l.b16 %v380
        %v532 = vunpack.c.l.b16 %v381
        %v533 = vunpack.c.l.b16 %v382
        %v534 = vunpack.c.l.b16 %v383
        %v535 = vunpack.c.l.b16 %v384
        %v536 = vunpack.c.l.b16 %v385
        %v537 = vunpack.c.l.b16 %v386
        %v538 = vunpack.c.l.b16 %v387
        %v539 = vunpack.c.l.b16 %v388
        %v540 = vunpack.c.l.b16 %v389
        %v541 = vunpack.c.l.b16 %v390
        %v542 = vunpack.c.l.b16 %v391
        %v543 = vunpack.c.l.b16 %v392
        %v544 = vunpack.c.l.b16 %v393
        %v545 = vunpack.c.l.b16 %v394
        %v546 = vunpack.c.l.b16 %v395
        %v547 = vunpack.c.l.b16 %v396
        %v548 = vunpack.c.l.b16 %v397
        %v549 = vunpack.c.l.b16 %v398
        %v550 = vunpack.c.l.b16 %v399
        %v551 = vunpack.c.l.b16 %v400
        %v552 = vunpack.c.l.b16 %v401
        %v553 = vunpack.c.l.b16 %v402
        %v554 = vunpack.c.l.b16 %v403
        %v555 = vunpack.c.l.b16 %v404
        %v556 = vunpack.c.l.b16 %v405
        %v557 = vunpack.c.l.b16 %v406
        %v558 = vunpack.c.l.b16 %v407
        %v559 = vunpack.c.l.b16 %v408
        %v560 = vpack.c.b16 %v497, %v496
        %v561 = vpack.c.b16 %v499, %v498
        %v562 = vpack.c.b16 %v501, %v500
        %v563 = vpack.c.b16 %v503, %v502
        %v564 = vpack.c.b16 %v505, %v504
        %v565 = vpack.c.b16 %v507, %v506
        %v566 = vpack.c.b16 %v509, %v508
        %v567 = vpack.c.b16 %v511, %v510
        %v568 = vpack.c.b16 %v513, %v512
        %v569 = vpack.c.b16 %v515, %v514
        %v570 = vpack.c.b16 %v517, %v516
        %v571 = vpack.c.b16 %v519, %v518
        %v572 = vpack.c.b16 %v521, %v520
        %v573 = vpack.c.b16 %v523, %v522
        %v574 = vpack.c.b16 %v525, %v524
        %v575 = vpack.c.b16 %v527, %v526
        %v576 = vpack.c.b16 %v529, %v528
        %v577 = vpack.c.b16 %v531, %v530
        %v578 = vpack.c.b16 %v533, %v532
        %v579 = vpack.c.b16 %v535, %v534
        %v580 = vpack.c.b16 %v537, %v536
        %v581 = vpack.c.b16 %v539, %v538
        %v582 = vpack.c.b16 %v541, %v540
        %v583 = vpack.c.b16 %v543, %v542
        %v584 = vpack.c.b16 %v545, %v544
        %v585 = vpack.c.b16 %v547, %v546
        %v586 = vpack.c.b16 %v549, %v548
        %v587 = vpack.c.b16 %v551, %v550
        %v588 = vpack.c.b16 %v553, %v552
        %v589 = vpack.c.b16 %v555, %v554
        %v590 = vpack.c.b16 %v557, %v556
        %v591 = vpack.c.b16 %v559, %v558
        %v640 = vunpack.c.l.b16 %v409
        %v641 = vunpack.c.l.b16 %v410
        %v642 = vunpack.c.l.b16 %v411
        %v643 = vunpack.c.l.b16 %v412
        %v644 = vunpack.c.l.b16 %v413
        %v645 = vunpack.c.l.b16 %v414
        %v646 = vunpack.c.l.b16 %v415
        %v647 = vunpack.c.l.b16 %v416
        %v648 = vunpack.c.l.b16 %v417
        %v649 = vunpack.c.l.b16 %v418
        %v650 = vunpack.c.l.b16 %v419
        %v651 = vunpack.c.l.b16 %v420
        %v652 = vunpack.c.l.b16 %v421
        %v653 = vunpack.c.l.b16 %v422
        %v654 = vunpack.c.l.b16 %v423
        %v655 = vunpack.c.l.b16 %v424
        %v656 = vpack.c.b16 %v641, %v640
        %v657 = vpack.c.b16 %v643, %v642
        %v658 = vpack.c.b16 %v645, %v644
        %v659 = vpack.c.b16 %v647, %v646
        %v660 = vpack.c.b16 %v649, %v648
        %v661 = vpack.c.b16 %v651, %v650
        %v662 = vpack.c.b16 %v653, %v652
        %v663 = vpack.c.b16 %v655, %v654
        %672 = vmatprep.subr.bf16.mxu0 0
        %673 = vmatpush1.bf16.msra.mxu0 %v656
        %674 = vmatprep.subr.bf16.mxu0 0
        %675 = vmatpush1.bf16.msra.mxu0 %v657
        %676 = vmatprep.subr.bf16.mxu0 0
        %677 = vmatpush1.bf16.msra.mxu0 %v658
        %678 = vmatprep.subr.bf16.mxu0 0
        %679 = vmatpush1.bf16.msra.mxu0 %v659
        %680 = vmatprep.subr.bf16.mxu0 0
        %681 = vmatpush1.bf16.msra.mxu0 %v660
        %682 = vmatprep.subr.bf16.mxu0 0
        %683 = vmatpush1.bf16.msra.mxu0 %v661
        %684 = vmatprep.subr.bf16.mxu0 0
        %685 = vmatpush1.bf16.msra.mxu0 %v662
        %686 = vmatprep.subr.bf16.mxu0 0
        %687 = vmatpush1.bf16.msra.mxu0 %v663
        %688 = vmatprep.subr.bf16.mxu0 0
        %689 = vmatpush1.bf16.msra.mxu0 0
        %690 = vmatprep.subr.bf16.mxu0 0
        %691 = vmatpush1.bf16.msra.mxu0 0
        %692 = vmatprep.subr.bf16.mxu0 0
        %693 = vmatpush1.bf16.msra.mxu0 0
        %694 = vmatprep.subr.bf16.mxu0 0
        %695 = vmatpush1.bf16.msra.mxu0 0
        %696 = vmatprep.subr.bf16.mxu0 0
        %697 = vmatpush1.bf16.msra.mxu0 0
        %698 = vmatprep.subr.bf16.mxu0 0
        %699 = vmatpush1.bf16.msra.mxu0 0
        %700 = vmatprep.subr.bf16.mxu0 0
        %701 = vmatpush1.bf16.msra.mxu0 0
        %702 = vmatprep.subr.bf16.mxu0 0
        %703 = vmatpush1.bf16.msra.mxu0 0
        %704 = vmatprep.mubr.bf16.mxu0 0
        %705 = vmatmul.mubr.bf16.gmra.mrb[0].mxu0 %v560
        %v706 = vpop.f32.mrb[0].mxu0
        %v707 = vadd.f32 %v430, %v706
        %v708 = vpop.f32.mrb[0].mxu0
        %v709 = vpop.f32.mrb[0].mxu0
        %v710 = vadd.f32 %v430, %v709
        %v711 = vpop.f32.mrb[0].mxu0
        %712 = vmatprep.mubr.bf16.mxu0 0
        %713 = vmatmul.mubr.bf16.gmra.mrb[0].mxu0 %v561
        %v714 = vpop.f32.mrb[0].mxu0
        %v715 = vadd.f32 %v430, %v714
        %v716 = vpop.f32.mrb[0].mxu0
        %v717 = vpop.f32.mrb[0].mxu0
        %v718 = vadd.f32 %v430, %v717
        %v719 = vpop.f32.mrb[0].mxu0
        %720 = vmatprep.mubr.bf16.mxu0 0
        %721 = vmatmul.mubr.bf16.gmra.mrb[0].mxu0 %v562
        %v722 = vpop.f32.mrb[0].mxu0
        %v723 = vadd.f32 %v430, %v722
        %v724 = vpop.f32.mrb[0].mxu0
        %v725 = vpop.f32.mrb[0].mxu0
        %v726 = vadd.f32 %v430, %v725
        %v727 = vpop.f32.mrb[0].mxu0
        %728 = vmatprep.mubr.bf16.mxu0 0
        %729 = vmatmul.mubr.bf16.gmra.mrb[0].mxu0 %v563
        %v730 = vpop.f32.mrb[0].mxu0
        %v731 = vadd.f32 %v430, %v730
        %v732 = vpop.f32.mrb[0].mxu0
        %v733 = vpop.f32.mrb[0].mxu0
        %v734 = vadd.f32 %v430, %v733
        %v735 = vpop.f32.mrb[0].mxu0
        %736 = vmatprep.mubr.bf16.mxu0 0
        %737 = vmatmul.mubr.bf16.gmra.mrb[0].mxu0 %v564
        %v738 = vpop.f32.mrb[0].mxu0
        %v739 = vadd.f32 %v430, %v738
        %v740 = vpop.f32.mrb[0].mxu0
        %v741 = vpop.f32.mrb[0].mxu0
        %v742 = vadd.f32 %v430, %v741
        %v743 = vpop.f32.mrb[0].mxu0
        %744 = vmatprep.mubr.bf16.mxu0 0
        %745 = vmatmul.mubr.bf16.gmra.mrb[0].mxu0 %v565
        %v746 = vpop.f32.mrb[0].mxu0
        %v747 = vadd.f32 %v430, %v746
        %v748 = vpop.f32.mrb[0].mxu0
        %v749 = vpop.f32.mrb[0].mxu0
        %v750 = vadd.f32 %v430, %v749
        %v751 = vpop.f32.mrb[0].mxu0
        %752 = vmatprep.mubr.bf16.mxu0 0
        %753 = vmatmul.mubr.bf16.gmra.mrb[0].mxu0 %v566
        %v754 = vpop.f32.mrb[0].mxu0
        %v755 = vadd.f32 %v430, %v754
        %v756 = vpop.f32.mrb[0].mxu0
        %v757 = vpop.f32.mrb[0].mxu0
        %v758 = vadd.f32 %v430, %v757
        %v759 = vpop.f32.mrb[0].mxu0
        %760 = vmatprep.mubr.bf16.mxu0 0
        %761 = vmatmul.mubr.bf16.gmra.mrb[0].mxu0 %v567
        %v762 = vpop.f32.mrb[0].mxu0
        %v763 = vadd.f32 %v430, %v762
        %v764 = vpop.f32.mrb[0].mxu0
        %v765 = vpop.f32.mrb[0].mxu0
        %v766 = vadd.f32 %v430, %v765
        %v767 = vpop.f32.mrb[0].mxu0
        %768 = vmatprep.mubr.bf16.mxu0 0
        %769 = vmatmul.mubr.bf16.gmra.mrb[0].mxu0 %v568
        %v770 = vpop.f32.mrb[0].mxu0
        %v771 = vadd.f32 %v430, %v770
        %v772 = vpop.f32.mrb[0].mxu0
        %v773 = vpop.f32.mrb[0].mxu0
        %v774 = vadd.f32 %v430, %v773
        %v775 = vpop.f32.mrb[0].mxu0
        %776 = vmatprep.mubr.bf16.mxu0 0
        %777 = vmatmul.mubr.bf16.gmra.mrb[0].mxu0 %v569
        %v778 = vpop.f32.mrb[0].mxu0
        %v779 = vadd.f32 %v430, %v778
        %v780 = vpop.f32.mrb[0].mxu0
        %v781 = vpop.f32.mrb[0].mxu0
        %v782 = vadd.f32 %v430, %v781
        %v783 = vpop.f32.mrb[0].mxu0
        %784 = vmatprep.mubr.bf16.mxu0 0
        %785 = vmatmul.mubr.bf16.gmra.mrb[0].mxu0 %v570
        %v786 = vpop.f32.mrb[0].mxu0
        %v787 = vadd.f32 %v430, %v786
        %v788 = vpop.f32.mrb[0].mxu0
        %v789 = vpop.f32.mrb[0].mxu0
        %v790 = vadd.f32 %v430, %v789
        %v791 = vpop.f32.mrb[0].mxu0
        %792 = vmatprep.mubr.bf16.mxu0 0
        %793 = vmatmul.mubr.bf16.gmra.mrb[0].mxu0 %v571
        %v794 = vpop.f32.mrb[0].mxu0
        %v795 = vadd.f32 %v430, %v794
        %v796 = vpop.f32.mrb[0].mxu0
        %v797 = vpop.f32.mrb[0].mxu0
        %v798 = vadd.f32 %v430, %v797
        %v799 = vpop.f32.mrb[0].mxu0
        %800 = vmatprep.mubr.bf16.mxu0 0
        %801 = vmatmul.mubr.bf16.gmra.mrb[0].mxu0 %v572
        %v802 = vpop.f32.mrb[0].mxu0
        %v803 = vadd.f32 %v430, %v802
        %v804 = vpop.f32.mrb[0].mxu0
        %v805 = vpop.f32.mrb[0].mxu0
        %v806 = vadd.f32 %v430, %v805
        %v807 = vpop.f32.mrb[0].mxu0
        %808 = vmatprep.mubr.bf16.mxu0 0
        %809 = vmatmul.mubr.bf16.gmra.mrb[0].mxu0 %v573
        %v810 = vpop.f32.mrb[0].mxu0
        %v811 = vadd.f32 %v430, %v810
        %v812 = vpop.f32.mrb[0].mxu0
        %v813 = vpop.f32.mrb[0].mxu0
        %v814 = vadd.f32 %v430, %v813
        %v815 = vpop.f32.mrb[0].mxu0
        %816 = vmatprep.mubr.bf16.mxu0 0
        %817 = vmatmul.mubr.bf16.gmra.mrb[0].mxu0 %v574
        %v818 = vpop.f32.mrb[0].mxu0
        %v819 = vadd.f32 %v430, %v818
        %v820 = vpop.f32.mrb[0].mxu0
        %v821 = vpop.f32.mrb[0].mxu0
        %v822 = vadd.f32 %v430, %v821
        %v823 = vpop.f32.mrb[0].mxu0
        %824 = vmatprep.mubr.bf16.mxu0 0
        %825 = vmatmul.mubr.bf16.gmra.mrb[0].mxu0 %v575
        %v826 = vpop.f32.mrb[0].mxu0
        %v827 = vadd.f32 %v430, %v826
        %v828 = vpop.f32.mrb[0].mxu0
        %v829 = vpop.f32.mrb[0].mxu0
        %v830 = vadd.f32 %v430, %v829
        %v831 = vpop.f32.mrb[0].mxu0
        %832 = vmatprep.mubr.bf16.mxu0 0
        %833 = vmatmul.mubr.bf16.gmra.mrb[0].mxu0 %v576
        %v834 = vpop.f32.mrb[0].mxu0
        %v835 = vadd.f32 %v430, %v834
        %v836 = vpop.f32.mrb[0].mxu0
        %v837 = vpop.f32.mrb[0].mxu0
        %v838 = vadd.f32 %v430, %v837
        %v839 = vpop.f32.mrb[0].mxu0
        %840 = vmatprep.mubr.bf16.mxu0 0
        %841 = vmatmul.mubr.bf16.gmra.mrb[0].mxu0 %v577
        %v842 = vpop.f32.mrb[0].mxu0
        %v843 = vadd.f32 %v430, %v842
        %v844 = vpop.f32.mrb[0].mxu0
        %v845 = vpop.f32.mrb[0].mxu0
        %v846 = vadd.f32 %v430, %v845
        %v847 = vpop.f32.mrb[0].mxu0
        %848 = vmatprep.mubr.bf16.mxu0 0
        %849 = vmatmul.mubr.bf16.gmra.mrb[0].mxu0 %v578
        %v850 = vpop.f32.mrb[0].mxu0
        %v851 = vadd.f32 %v430, %v850
        %v852 = vpop.f32.mrb[0].mxu0
        %v853 = vpop.f32.mrb[0].mxu0
        %v854 = vadd.f32 %v430, %v853
        %v855 = vpop.f32.mrb[0].mxu0
        %856 = vmatprep.mubr.bf16.mxu0 0
        %857 = vmatmul.mubr.bf16.gmra.mrb[0].mxu0 %v579
        %v858 = vpop.f32.mrb[0].mxu0
        %v859 = vadd.f32 %v430, %v858
        %v860 = vpop.f32.mrb[0].mxu0
        %v861 = vpop.f32.mrb[0].mxu0
        %v862 = vadd.f32 %v430, %v861
        %v863 = vpop.f32.mrb[0].mxu0
        %864 = vmatprep.mubr.bf16.mxu0 0
        %865 = vmatmul.mubr.bf16.gmra.mrb[0].mxu0 %v580
        %v866 = vpop.f32.mrb[0].mxu0
        %v867 = vadd.f32 %v430, %v866
        %v868 = vpop.f32.mrb[0].mxu0
        %v869 = vpop.f32.mrb[0].mxu0
        %v870 = vadd.f32 %v430, %v869
        %v871 = vpop.f32.mrb[0].mxu0
        %872 = vmatprep.mubr.bf16.mxu0 0
        %873 = vmatmul.mubr.bf16.gmra.mrb[0].mxu0 %v581
        %v874 = vpop.f32.mrb[0].mxu0
        %v875 = vadd.f32 %v430, %v874
        %v876 = vpop.f32.mrb[0].mxu0
        %v877 = vpop.f32.mrb[0].mxu0
        %v878 = vadd.f32 %v430, %v877
        %v879 = vpop.f32.mrb[0].mxu0
        %880 = vmatprep.mubr.bf16.mxu0 0
        %881 = vmatmul.mubr.bf16.gmra.mrb[0].mxu0 %v582
        %v882 = vpop.f32.mrb[0].mxu0
        %v883 = vadd.f32 %v430, %v882
        %v884 = vpop.f32.mrb[0].mxu0
        %v885 = vpop.f32.mrb[0].mxu0
        %v886 = vadd.f32 %v430, %v885
        %v887 = vpop.f32.mrb[0].mxu0
        %888 = vmatprep.mubr.bf16.mxu0 0
        %889 = vmatmul.mubr.bf16.gmra.mrb[0].mxu0 %v583
        %v890 = vpop.f32.mrb[0].mxu0
        %v891 = vadd.f32 %v430, %v890
        %v892 = vpop.f32.mrb[0].mxu0
        %v893 = vpop.f32.mrb[0].mxu0
        %v894 = vadd.f32 %v430, %v893
        %v895 = vpop.f32.mrb[0].mxu0
        %896 = vmatprep.mubr.bf16.mxu0 0
        %897 = vmatmul.mubr.bf16.gmra.mrb[0].mxu0 %v584
        %v898 = vpop.f32.mrb[0].mxu0
        %v899 = vadd.f32 %v430, %v898
        %v900 = vpop.f32.mrb[0].mxu0
        %v901 = vpop.f32.mrb[0].mxu0
        %v902 = vadd.f32 %v430, %v901
        %v903 = vpop.f32.mrb[0].mxu0
        %904 = vmatprep.mubr.bf16.mxu0 0
        %905 = vmatmul.mubr.bf16.gmra.mrb[0].mxu0 %v585
        %v906 = vpop.f32.mrb[0].mxu0
        %v907 = vadd.f32 %v430, %v906
        %v908 = vpop.f32.mrb[0].mxu0
        %v909 = vpop.f32.mrb[0].mxu0
        %v910 = vadd.f32 %v430, %v909
        %v911 = vpop.f32.mrb[0].mxu0
        %912 = vmatprep.mubr.bf16.mxu0 0
        %913 = vmatmul.mubr.bf16.gmra.mrb[0].mxu0 %v586
        %v914 = vpop.f32.mrb[0].mxu0
        %v915 = vadd.f32 %v430, %v914
        %v916 = vpop.f32.mrb[0].mxu0
        %v917 = vpop.f32.mrb[0].mxu0
        %v918 = vadd.f32 %v430, %v917
        %v919 = vpop.f32.mrb[0].mxu0
        %920 = vmatprep.mubr.bf16.mxu0 0
        %921 = vmatmul.mubr.bf16.gmra.mrb[0].mxu0 %v587
        %v922 = vpop.f32.mrb[0].mxu0
        %v923 = vadd.f32 %v430, %v922
        %v924 = vpop.f32.mrb[0].mxu0
        %v925 = vpop.f32.mrb[0].mxu0
        %v926 = vadd.f32 %v430, %v925
        %v927 = vpop.f32.mrb[0].mxu0
        %928 = vmatprep.mubr.bf16.mxu0 0
        %929 = vmatmul.mubr.bf16.gmra.mrb[0].mxu0 %v588
        %v930 = vpop.f32.mrb[0].mxu0
        %v931 = vadd.f32 %v430, %v930
        %v932 = vpop.f32.mrb[0].mxu0
        %v933 = vpop.f32.mrb[0].mxu0
        %v934 = vadd.f32 %v430, %v933
        %v935 = vpop.f32.mrb[0].mxu0
        %936 = vmatprep.mubr.bf16.mxu0 0
        %937 = vmatmul.mubr.bf16.gmra.mrb[0].mxu0 %v589
        %v938 = vpop.f32.mrb[0].mxu0
        %v939 = vadd.f32 %v430, %v938
        %v940 = vpop.f32.mrb[0].mxu0
        %v941 = vpop.f32.mrb[0].mxu0
        %v942 = vadd.f32 %v430, %v941
        %v943 = vpop.f32.mrb[0].mxu0
        %944 = vmatprep.mubr.bf16.mxu0 0
        %945 = vmatmul.mubr.bf16.gmra.mrb[0].mxu0 %v590
        %v946 = vpop.f32.mrb[0].mxu0
        %v947 = vadd.f32 %v430, %v946
        %v948 = vpop.f32.mrb[0].mxu0
        %v949 = vpop.f32.mrb[0].mxu0
        %v950 = vadd.f32 %v430, %v949
        %v951 = vpop.f32.mrb[0].mxu0
        %952 = vmatprep.mubr.bf16.mxu0 0
        %953 = vmatmul.mubr.bf16.gmra.mrb[0].mxu0 %v591
        %v954 = vpop.f32.mrb[0].mxu0
        %v955 = vadd.f32 %v430, %v954
        %v956 = vpop.f32.mrb[0].mxu0
        %v957 = vpop.f32.mrb[0].mxu0
        %v958 = vadd.f32 %v430, %v957
        %v959 = vpop.f32.mrb[0].mxu0
        %960 = vdwg.mxu0
        %v961 = vmax.f32 %v707, 0.0
        %v962 = vmax.f32 %v710, 0.0
        %v963 = vmax.f32 %v715, 0.0
        %v964 = vmax.f32 %v718, 0.0
        %v965 = vmax.f32 %v723, 0.0
        %v966 = vmax.f32 %v726, 0.0
        %v967 = vmax.f32 %v731, 0.0
        %v968 = vmax.f32 %v734, 0.0
        %v969 = vmax.f32 %v739, 0.0
        %v970 = vmax.f32 %v742, 0.0
        %v971 = vmax.f32 %v747, 0.0
        %v972 = vmax.f32 %v750, 0.0
        %v973 = vmax.f32 %v755, 0.0
        %v974 = vmax.f32 %v758, 0.0
        %v975 = vmax.f32 %v763, 0.0
        %v976 = vmax.f32 %v766, 0.0
        %v977 = vmax.f32 %v771, 0.0
        %v978 = vmax.f32 %v774, 0.0
        %v979 = vmax.f32 %v779, 0.0
        %v980 = vmax.f32 %v782, 0.0
        %v981 = vmax.f32 %v787, 0.0
        %v982 = vmax.f32 %v790, 0.0
        %v983 = vmax.f32 %v795, 0.0
        %v984 = vmax.f32 %v798, 0.0
        %v985 = vmax.f32 %v803, 0.0
        %v986 = vmax.f32 %v806, 0.0
        %v987 = vmax.f32 %v811, 0.0
        %v988 = vmax.f32 %v814, 0.0
        %v989 = vmax.f32 %v819, 0.0
        %v990 = vmax.f32 %v822, 0.0
        %v991 = vmax.f32 %v827, 0.0
        %v992 = vmax.f32 %v830, 0.0
        %v993 = vmax.f32 %v835, 0.0
        %v994 = vmax.f32 %v838, 0.0
        %v995 = vmax.f32 %v843, 0.0
        %v996 = vmax.f32 %v846, 0.0
        %v997 = vmax.f32 %v851, 0.0
        %v998 = vmax.f32 %v854, 0.0
        %v999 = vmax.f32 %v859, 0.0
        %v1000 = vmax.f32 %v862, 0.0
        %v1001 = vmax.f32 %v867, 0.0
        %v1002 = vmax.f32 %v870, 0.0
        %v1003 = vmax.f32 %v875, 0.0
        %v1004 = vmax.f32 %v878, 0.0
        %v1005 = vmax.f32 %v883, 0.0
        %v1006 = vmax.f32 %v886, 0.0
        %v1007 = vmax.f32 %v891, 0.0
        %v1008 = vmax.f32 %v894, 0.0
        %v1009 = vmax.f32 %v899, 0.0
        %v1010 = vmax.f32 %v902, 0.0
        %v1011 = vmax.f32 %v907, 0.0
        %v1012 = vmax.f32 %v910, 0.0
        %v1013 = vmax.f32 %v915, 0.0
        %v1014 = vmax.f32 %v918, 0.0
        %v1015 = vmax.f32 %v923, 0.0
        %v1016 = vmax.f32 %v926, 0.0
        %v1017 = vmax.f32 %v931, 0.0
        %v1018 = vmax.f32 %v934, 0.0
        %v1019 = vmax.f32 %v939, 0.0
        %v1020 = vmax.f32 %v942, 0.0
        %v1021 = vmax.f32 %v947, 0.0
        %v1022 = vmax.f32 %v950, 0.0
        %v1023 = vmax.f32 %v955, 0.0
        %v1024 = vmax.f32 %v958, 0.0
        %1025 = vst [vmem:[#allocation2] sm:$0xff] 0.0
        %1026 = vst [vmem:[#allocation2 + $0x20] sm:$0xff] 0.0
        %1027 = vst [vmem:[#allocation2 + $0x40] sm:$0xff] 0.0
        %1028 = vst [vmem:[#allocation2 + $0x60] sm:$0xff] 0.0
        %1029 = vst [vmem:[#allocation2 + $0x80] sm:$0xff] 0.0
        %1030 = vst [vmem:[#allocation2 + $0xa0] sm:$0xff] 0.0
        %1031 = vst [vmem:[#allocation2 + $0xc0] sm:$0xff] 0.0
        %1032 = vst [vmem:[#allocation2 + $0xe0] sm:$0xff] 0.0
        %1033 = vst [vmem:[#allocation2 + $0x100] sm:$0xff] 0.0
        %1034 = vst [vmem:[#allocation2 + $0x120] sm:$0xff] 0.0
        %1035 = vst [vmem:[#allocation2 + $0x140] sm:$0xff] 0.0
        %1036 = vst [vmem:[#allocation2 + $0x160] sm:$0xff] 0.0
        %1037 = vst [vmem:[#allocation2 + $0x180] sm:$0xff] 0.0
        %1038 = vst [vmem:[#allocation2 + $0x1a0] sm:$0xff] 0.0
        %1039 = vst [vmem:[#allocation2 + $0x1c0] sm:$0xff] 0.0
        %1040 = vst [vmem:[#allocation2 + $0x1e0] sm:$0xff] 0.0
        %1041 = vst [vmem:[#allocation2 + $0x200] sm:$0xff] 0.0
        %1042 = vst [vmem:[#allocation2 + $0x220] sm:$0xff] 0.0
        %1043 = vst [vmem:[#allocation2 + $0x240] sm:$0xff] 0.0
        %1044 = vst [vmem:[#allocation2 + $0x260] sm:$0xff] 0.0
        %1045 = vst [vmem:[#allocation2 + $0x280] sm:$0xff] 0.0
        %1046 = vst [vmem:[#allocation2 + $0x2a0] sm:$0xff] 0.0
        %1047 = vst [vmem:[#allocation2 + $0x2c0] sm:$0xff] 0.0
        %1048 = vst [vmem:[#allocation2 + $0x2e0] sm:$0xff] 0.0
        %1049 = vst [vmem:[#allocation2 + $0x300] sm:$0xff] 0.0
        %1050 = vst [vmem:[#allocation2 + $0x320] sm:$0xff] 0.0
        %1051 = vst [vmem:[#allocation2 + $0x340] sm:$0xff] 0.0
        %1052 = vst [vmem:[#allocation2 + $0x360] sm:$0xff] 0.0
        %1053 = vst [vmem:[#allocation2 + $0x380] sm:$0xff] 0.0
        %1054 = vst [vmem:[#allocation2 + $0x3a0] sm:$0xff] 0.0
        %1055 = vst [vmem:[#allocation2 + $0x3c0] sm:$0xff] 0.0
        %1056 = vst [vmem:[#allocation2 + $0x3e0] sm:$0xff] 0.0
        %1057 = vst [vmem:[#allocation2 + $0x400] sm:$0xff] 0.0
        %1058 = vst [vmem:[#allocation2 + $0x420] sm:$0xff] 0.0
        %1059 = vst [vmem:[#allocation2 + $0x440] sm:$0xff] 0.0
        %1060 = vst [vmem:[#allocation2 + $0x460] sm:$0xff] 0.0
        %1061 = vst [vmem:[#allocation2 + $0x18] sm:$0xff] 0.0
        %1062 = vst [vmem:[#allocation2 + $0x38] sm:$0xff] 0.0
        %1063 = vst [vmem:[#allocation2 + $0x58] sm:$0xff] 0.0
        %1064 = vst [vmem:[#allocation2 + $0x78] sm:$0xff] 0.0
        %1065 = vst [vmem:[#allocation2 + $0x98] sm:$0xff] 0.0
        %1066 = vst [vmem:[#allocation2 + $0xb8] sm:$0xff] 0.0
        %1067 = vst [vmem:[#allocation2 + $0xd8] sm:$0xff] 0.0
        %1068 = vst [vmem:[#allocation2 + $0xf8] sm:$0xff] 0.0
        %1069 = vst [vmem:[#allocation2 + $0x118] sm:$0xff] 0.0
        %1070 = vst [vmem:[#allocation2 + $0x138] sm:$0xff] 0.0
        %1071 = vst [vmem:[#allocation2 + $0x158] sm:$0xff] 0.0
        %1072 = vst [vmem:[#allocation2 + $0x178] sm:$0xff] 0.0
        %1073 = vst [vmem:[#allocation2 + $0x198] sm:$0xff] 0.0
        %1074 = vst [vmem:[#allocation2 + $0x1b8] sm:$0xff] 0.0
        %1075 = vst [vmem:[#allocation2 + $0x1d8] sm:$0xff] 0.0
        %1076 = vst [vmem:[#allocation2 + $0x1f8] sm:$0xff] 0.0
        %1077 = vst [vmem:[#allocation2 + $0x218] sm:$0xff] 0.0
        %1078 = vst [vmem:[#allocation2 + $0x238] sm:$0xff] 0.0
        %1079 = vst [vmem:[#allocation2 + $0x258] sm:$0xff] 0.0
        %1080 = vst [vmem:[#allocation2 + $0x278] sm:$0xff] 0.0
        %1081 = vst [vmem:[#allocation2 + $0x298] sm:$0xff] 0.0
        %1082 = vst [vmem:[#allocation2 + $0x2b8] sm:$0xff] 0.0
        %1083 = vst [vmem:[#allocation2 + $0x2d8] sm:$0xff] 0.0
        %1084 = vst [vmem:[#allocation2 + $0x2f8] sm:$0xff] 0.0
        %1085 = vst [vmem:[#allocation2 + $0x318] sm:$0xff] 0.0
        %1086 = vst [vmem:[#allocation2 + $0x338] sm:$0xff] 0.0
        %1087 = vst [vmem:[#allocation2 + $0x358] sm:$0xff] 0.0
        %1088 = vst [vmem:[#allocation2 + $0x378] sm:$0xff] 0.0
        %1089 = vst [vmem:[#allocation2 + $0x398] sm:$0xff] 0.0
        %1090 = vst [vmem:[#allocation2 + $0x3b8] sm:$0xff] 0.0
        %1091 = vst [vmem:[#allocation2 + $0x3d8] sm:$0xff] 0.0
        %1092 = vst [vmem:[#allocation2 + $0x3f8] sm:$0xff] 0.0
        %1093 = vst [vmem:[#allocation2 + $0x418] sm:$0xff] 0.0
        %1094 = vst [vmem:[#allocation2 + $0x438] sm:$0xff] 0.0
        %1095 = vst [vmem:[#allocation2 + $0x458] sm:$0xff] 0.0
        %1096 = vst [vmem:[#allocation2 + $0x478] sm:$0xff] 0.0
        %1097 = vst [vmem:[#allocation2 + $0x8] sm:$0xff] 0.0
        %1098 = vst [vmem:[#allocation2 + $0x10] sm:$0xff] 0.0
        %1099 = vst [vmem:[#allocation2 + $0x248] sm:$0xff] 0.0
        %1100 = vst [vmem:[#allocation2 + $0x250] sm:$0xff] 0.0
        %s1101 = scalar_lea.vmem [#allocation2], 544
        %1102 = vst [vmem:[%s1101 + $0x8] sm:$0xff] 0.0
        %1103 = vst [vmem:[%s1101 + $0x10] sm:$0xff] 0.0
        %1104 = vst [vmem:[%s1101 + $0x248] sm:$0xff] 0.0
        %1105 = vst [vmem:[%s1101 + $0x250] sm:$0xff] 0.0
        %s1106 = scalar_lea.vmem [#allocation2], 32
        %1107 = vst [vmem:[%s1106 + $0x8] sm:$0xff] %v961
        %1108 = vst [vmem:[%s1106 + $0x10] sm:$0xff] %v962
        %1109 = vst [vmem:[%s1106 + $0x28] sm:$0xff] %v963
        %1110 = vst [vmem:[%s1106 + $0x30] sm:$0xff] %v964
        %1111 = vst [vmem:[%s1106 + $0x48] sm:$0xff] %v965
        %1112 = vst [vmem:[%s1106 + $0x50] sm:$0xff] %v966
        %1113 = vst [vmem:[%s1106 + $0x68] sm:$0xff] %v967
        %1114 = vst [vmem:[%s1106 + $0x70] sm:$0xff] %v968
        %1115 = vst [vmem:[%s1106 + $0x88] sm:$0xff] %v969
        %1116 = vst [vmem:[%s1106 + $0x90] sm:$0xff] %v970
        %1117 = vst [vmem:[%s1106 + $0xa8] sm:$0xff] %v971
        %1118 = vst [vmem:[%s1106 + $0xb0] sm:$0xff] %v972
        %1119 = vst [vmem:[%s1106 + $0xc8] sm:$0xff] %v973
        %1120 = vst [vmem:[%s1106 + $0xd0] sm:$0xff] %v974
        %1121 = vst [vmem:[%s1106 + $0xe8] sm:$0xff] %v975
        %1122 = vst [vmem:[%s1106 + $0xf0] sm:$0xff] %v976
        %1123 = vst [vmem:[%s1106 + $0x108] sm:$0xff] %v977
        %1124 = vst [vmem:[%s1106 + $0x110] sm:$0xff] %v978
        %1125 = vst [vmem:[%s1106 + $0x128] sm:$0xff] %v979
        %1126 = vst [vmem:[%s1106 + $0x130] sm:$0xff] %v980
        %1127 = vst [vmem:[%s1106 + $0x148] sm:$0xff] %v981
        %1128 = vst [vmem:[%s1106 + $0x150] sm:$0xff] %v982
        %1129 = vst [vmem:[%s1106 + $0x168] sm:$0xff] %v983
        %1130 = vst [vmem:[%s1106 + $0x170] sm:$0xff] %v984
        %1131 = vst [vmem:[%s1106 + $0x188] sm:$0xff] %v985
        %1132 = vst [vmem:[%s1106 + $0x190] sm:$0xff] %v986
        %1133 = vst [vmem:[%s1106 + $0x1a8] sm:$0xff] %v987
        %1134 = vst [vmem:[%s1106 + $0x1b0] sm:$0xff] %v988
        %1135 = vst [vmem:[%s1106 + $0x1c8] sm:$0xff] %v989
        %1136 = vst [vmem:[%s1106 + $0x1d0] sm:$0xff] %v990
        %1137 = vst [vmem:[%s1106 + $0x1e8] sm:$0xff] %v991
        %1138 = vst [vmem:[%s1106 + $0x1f0] sm:$0xff] %v992
        %1139 = vst [vmem:[%s1106 + $0x248] sm:$0xff] %v993
        %1140 = vst [vmem:[%s1106 + $0x250] sm:$0xff] %v994
        %1141 = vst [vmem:[%s1106 + $0x268] sm:$0xff] %v995
        %1142 = vst [vmem:[%s1106 + $0x270] sm:$0xff] %v996
        %1143 = vst [vmem:[%s1106 + $0x288] sm:$0xff] %v997
        %1144 = vst [vmem:[%s1106 + $0x290] sm:$0xff] %v998
        %1145 = vst [vmem:[%s1106 + $0x2a8] sm:$0xff] %v999
        %1146 = vst [vmem:[%s1106 + $0x2b0] sm:$0xff] %v1000
        %1147 = vst [vmem:[%s1106 + $0x2c8] sm:$0xff] %v1001
        %1148 = vst [vmem:[%s1106 + $0x2d0] sm:$0xff] %v1002
        %1149 = vst [vmem:[%s1106 + $0x2e8] sm:$0xff] %v1003
        %1150 = vst [vmem:[%s1106 + $0x2f0] sm:$0xff] %v1004
        %1151 = vst [vmem:[%s1106 + $0x308] sm:$0xff] %v1005
        %1152 = vst [vmem:[%s1106 + $0x310] sm:$0xff] %v1006
        %1153 = vst [vmem:[%s1106 + $0x328] sm:$0xff] %v1007
        %1154 = vst [vmem:[%s1106 + $0x330] sm:$0xff] %v1008
        %1155 = vst [vmem:[%s1106 + $0x348] sm:$0xff] %v1009
        %1156 = vst [vmem:[%s1106 + $0x350] sm:$0xff] %v1010
        %1157 = vst [vmem:[%s1106 + $0x368] sm:$0xff] %v1011
        %1158 = vst [vmem:[%s1106 + $0x370] sm:$0xff] %v1012
        %1159 = vst [vmem:[%s1106 + $0x388] sm:$0xff] %v1013
        %1160 = vst [vmem:[%s1106 + $0x390] sm:$0xff] %v1014
        %1161 = vst [vmem:[%s1106 + $0x3a8] sm:$0xff] %v1015
        %1162 = vst [vmem:[%s1106 + $0x3b0] sm:$0xff] %v1016
        %1163 = vst [vmem:[%s1106 + $0x3c8] sm:$0xff] %v1017
        %1164 = vst [vmem:[%s1106 + $0x3d0] sm:$0xff] %v1018
        %1165 = vst [vmem:[%s1106 + $0x3e8] sm:$0xff] %v1019
        %1166 = vst [vmem:[%s1106 + $0x3f0] sm:$0xff] %v1020
        %1167 = vst [vmem:[%s1106 + $0x408] sm:$0xff] %v1021
        %1168 = vst [vmem:[%s1106 + $0x410] sm:$0xff] %v1022
        %1169 = vst [vmem:[%s1106 + $0x428] sm:$0xff] %v1023
        %1170 = vst [vmem:[%s1106 + $0x430] sm:$0xff] %v1024
        %v1171 = vld [vmem:[#allocation8] sm:$0xff]
        %v1172 = vld [vmem:[#allocation8 + $0x8] sm:$0xff]
        %v1173 = vld [vmem:[#allocation2 + $0x7] sm:$0xff]
        %v1174 = vld [vmem:[#allocation2 + $0xf] sm:$0xff]
        %v1175 = vld [vmem:[#allocation2 + $0x27] sm:$0xff]
        %v1176 = vld [vmem:[#allocation2 + $0x2f] sm:$0xff]
        %v1177 = vld [vmem:[#allocation2 + $0x47] sm:$0xff]
        %v1178 = vld [vmem:[#allocation2 + $0x4f] sm:$0xff]
        %v1179 = vld [vmem:[#allocation2 + $0x67] sm:$0xff]
        %v1180 = vld [vmem:[#allocation2 + $0x6f] sm:$0xff]
        %v1181 = vld [vmem:[#allocation2 + $0x87] sm:$0xff]
        %v1182 = vld [vmem:[#allocation2 + $0x8f] sm:$0xff]
        %v1183 = vld [vmem:[#allocation2 + $0xa7] sm:$0xff]
        %v1184 = vld [vmem:[#allocation2 + $0xaf] sm:$0xff]
        %v1185 = vld [vmem:[#allocation2 + $0xc7] sm:$0xff]
        %v1186 = vld [vmem:[#allocation2 + $0xcf] sm:$0xff]
        %v1187 = vld [vmem:[#allocation2 + $0xe7] sm:$0xff]
        %v1188 = vld [vmem:[#allocation2 + $0xef] sm:$0xff]
        %v1189 = vld [vmem:[#allocation2 + $0x107] sm:$0xff]
        %v1190 = vld [vmem:[#allocation2 + $0x10f] sm:$0xff]
        %v1191 = vld [vmem:[#allocation2 + $0x127] sm:$0xff]
        %v1192 = vld [vmem:[#allocation2 + $0x12f] sm:$0xff]
        %v1193 = vld [vmem:[#allocation2 + $0x147] sm:$0xff]
        %v1194 = vld [vmem:[#allocation2 + $0x14f] sm:$0xff]
        %v1195 = vld [vmem:[#allocation2 + $0x167] sm:$0xff]
        %v1196 = vld [vmem:[#allocation2 + $0x16f] sm:$0xff]
        %v1197 = vld [vmem:[#allocation2 + $0x187] sm:$0xff]
        %v1198 = vld [vmem:[#allocation2 + $0x18f] sm:$0xff]
        %v1199 = vld [vmem:[#allocation2 + $0x1a7] sm:$0xff]
        %v1200 = vld [vmem:[#allocation2 + $0x1af] sm:$0xff]
        %v1201 = vld [vmem:[#allocation2 + $0x1c7] sm:$0xff]
        %v1202 = vld [vmem:[#allocation2 + $0x1cf] sm:$0xff]
        %v1203 = vld [vmem:[#allocation2 + $0x1e7] sm:$0xff]
        %v1204 = vld [vmem:[#allocation2 + $0x1ef] sm:$0xff]
        %v1205 = vld [vmem:[#allocation2 + $0x247] sm:$0xff]
        %v1206 = vld [vmem:[#allocation2 + $0x24f] sm:$0xff]
        %v1207 = vld [vmem:[#allocation2 + $0x267] sm:$0xff]
        %v1208 = vld [vmem:[#allocation2 + $0x26f] sm:$0xff]
        %v1209 = vld [vmem:[#allocation2 + $0x287] sm:$0xff]
        %v1210 = vld [vmem:[#allocation2 + $0x28f] sm:$0xff]
        %v1211 = vld [vmem:[#allocation2 + $0x2a7] sm:$0xff]
        %v1212 = vld [vmem:[#allocation2 + $0x2af] sm:$0xff]
        %v1213 = vld [vmem:[#allocation2 + $0x2c7] sm:$0xff]
        %v1214 = vld [vmem:[#allocation2 + $0x2cf] sm:$0xff]
        %v1215 = vld [vmem:[#allocation2 + $0x2e7] sm:$0xff]
        %v1216 = vld [vmem:[#allocation2 + $0x2ef] sm:$0xff]
        %v1217 = vld [vmem:[#allocation2 + $0x307] sm:$0xff]
        %v1218 = vld [vmem:[#allocation2 + $0x30f] sm:$0xff]
        %v1219 = vld [vmem:[#allocation2 + $0x327] sm:$0xff]
        %v1220 = vld [vmem:[#allocation2 + $0x32f] sm:$0xff]
        %v1221 = vld [vmem:[#allocation2 + $0x347] sm:$0xff]
        %v1222 = vld [vmem:[#allocation2 + $0x34f] sm:$0xff]
        %v1223 = vld [vmem:[#allocation2 + $0x367] sm:$0xff]
        %v1224 = vld [vmem:[#allocation2 + $0x36f] sm:$0xff]
        %v1225 = vld [vmem:[#allocation2 + $0x387] sm:$0xff]
        %v1226 = vld [vmem:[#allocation2 + $0x38f] sm:$0xff]
        %v1227 = vld [vmem:[#allocation2 + $0x3a7] sm:$0xff]
        %v1228 = vld [vmem:[#allocation2 + $0x3af] sm:$0xff]
        %v1229 = vld [vmem:[#allocation2 + $0x3c7] sm:$0xff]
        %v1230 = vld [vmem:[#allocation2 + $0x3cf] sm:$0xff]
        %v1231 = vld [vmem:[#allocation2 + $0x3e7] sm:$0xff]
        %v1232 = vld [vmem:[#allocation2 + $0x3ef] sm:$0xff]
        %v1233 = vld [vmem:[#allocation2 + $0x407] sm:$0xff]
        %v1234 = vld [vmem:[#allocation2 + $0x40f] sm:$0xff]
        %v1235 = vld [vmem:[#allocation2 + $0x427] sm:$0xff]
        %v1236 = vld [vmem:[#allocation2 + $0x42f] sm:$0xff]
        %v1237 = vlaneseq
        %v1238 = vshrl.u32 %v1237, 7
        %v1239 = vsub.s32 0, %v1238
        %v1240 = vrot.slane %v1171, %v1239
        %v1241 = vmul.f32 %v1173, %v1240
        %v1242 = vmul.f32 %v1174, %v1240
        %v1243 = vmul.f32 %v1175, %v1240
        %v1244 = vmul.f32 %v1176, %v1240
        %v1245 = vmul.f32 %v1177, %v1240
        %v1246 = vmul.f32 %v1178, %v1240
        %v1247 = vmul.f32 %v1179, %v1240
        %v1248 = vmul.f32 %v1180, %v1240
        %v1249 = vmul.f32 %v1181, %v1240
        %v1250 = vmul.f32 %v1182, %v1240
        %v1251 = vmul.f32 %v1183, %v1240
        %v1252 = vmul.f32 %v1184, %v1240
        %v1253 = vmul.f32 %v1185, %v1240
        %v1254 = vmul.f32 %v1186, %v1240
        %v1255 = vmul.f32 %v1187, %v1240
        %v1256 = vmul.f32 %v1188, %v1240
        %v1257 = vmul.f32 %v1189, %v1240
        %v1258 = vmul.f32 %v1190, %v1240
        %v1259 = vmul.f32 %v1191, %v1240
        %v1260 = vmul.f32 %v1192, %v1240
        %v1261 = vmul.f32 %v1193, %v1240
        %v1262 = vmul.f32 %v1194, %v1240
        %v1263 = vmul.f32 %v1195, %v1240
        %v1264 = vmul.f32 %v1196, %v1240
        %v1265 = vmul.f32 %v1197, %v1240
        %v1266 = vmul.f32 %v1198, %v1240
        %v1267 = vmul.f32 %v1199, %v1240
        %v1268 = vmul.f32 %v1200, %v1240
        %v1269 = vmul.f32 %v1201, %v1240
        %v1270 = vmul.f32 %v1202, %v1240
        %v1271 = vmul.f32 %v1203, %v1240
        %v1272 = vmul.f32 %v1204, %v1240
        %v1273 = vmul.f32 %v1205, %v1240
        %v1274 = vmul.f32 %v1206, %v1240
        %v1275 = vmul.f32 %v1207, %v1240
        %v1276 = vmul.f32 %v1208, %v1240
        %v1277 = vmul.f32 %v1209, %v1240
        %v1278 = vmul.f32 %v1210, %v1240
        %v1279 = vmul.f32 %v1211, %v1240
        %v1280 = vmul.f32 %v1212, %v1240
        %v1281 = vmul.f32 %v1213, %v1240
        %v1282 = vmul.f32 %v1214, %v1240
        %v1283 = vmul.f32 %v1215, %v1240
        %v1284 = vmul.f32 %v1216, %v1240
        %v1285 = vmul.f32 %v1217, %v1240
        %v1286 = vmul.f32 %v1218, %v1240
        %v1287 = vmul.f32 %v1219, %v1240
        %v1288 = vmul.f32 %v1220, %v1240
        %v1289 = vmul.f32 %v1221, %v1240
        %v1290 = vmul.f32 %v1222, %v1240
        %v1291 = vmul.f32 %v1223, %v1240
        %v1292 = vmul.f32 %v1224, %v1240
        %v1293 = vmul.f32 %v1225, %v1240
        %v1294 = vmul.f32 %v1226, %v1240
        %v1295 = vmul.f32 %v1227, %v1240
        %v1296 = vmul.f32 %v1228, %v1240
        %v1297 = vmul.f32 %v1229, %v1240
        %v1298 = vmul.f32 %v1230, %v1240
        %v1299 = vmul.f32 %v1231, %v1240
        %v1300 = vmul.f32 %v1232, %v1240
        %v1301 = vmul.f32 %v1233, %v1240
        %v1302 = vmul.f32 %v1234, %v1240
        %v1303 = vmul.f32 %v1235, %v1240
        %v1304 = vmul.f32 %v1236, %v1240
        %v1305 = vadd.f32 %v1241, 0.0
        %v1306 = vadd.f32 %v1242, 0.0
        %v1307 = vadd.f32 %v1243, 0.0
        %v1308 = vadd.f32 %v1244, 0.0
        %v1309 = vadd.f32 %v1245, 0.0
        %v1310 = vadd.f32 %v1246, 0.0
        %v1311 = vadd.f32 %v1247, 0.0
        %v1312 = vadd.f32 %v1248, 0.0
        %v1313 = vadd.f32 %v1249, 0.0
        %v1314 = vadd.f32 %v1250, 0.0
        %v1315 = vadd.f32 %v1251, 0.0
        %v1316 = vadd.f32 %v1252, 0.0
        %v1317 = vadd.f32 %v1253, 0.0
        %v1318 = vadd.f32 %v1254, 0.0
        %v1319 = vadd.f32 %v1255, 0.0
        %v1320 = vadd.f32 %v1256, 0.0
        %v1321 = vadd.f32 %v1257, 0.0
        %v1322 = vadd.f32 %v1258, 0.0
        %v1323 = vadd.f32 %v1259, 0.0
        %v1324 = vadd.f32 %v1260, 0.0
        %v1325 = vadd.f32 %v1261, 0.0
        %v1326 = vadd.f32 %v1262, 0.0
        %v1327 = vadd.f32 %v1263, 0.0
        %v1328 = vadd.f32 %v1264, 0.0
        %v1329 = vadd.f32 %v1265, 0.0
        %v1330 = vadd.f32 %v1266, 0.0
        %v1331 = vadd.f32 %v1267, 0.0
        %v1332 = vadd.f32 %v1268, 0.0
        %v1333 = vadd.f32 %v1269, 0.0
        %v1334 = vadd.f32 %v1270, 0.0
        %v1335 = vadd.f32 %v1271, 0.0
        %v1336 = vadd.f32 %v1272, 0.0
        %v1337 = vadd.f32 %v1273, 0.0
        %v1338 = vadd.f32 %v1274, 0.0
        %v1339 = vadd.f32 %v1275, 0.0
        %v1340 = vadd.f32 %v1276, 0.0
        %v1341 = vadd.f32 %v1277, 0.0
        %v1342 = vadd.f32 %v1278, 0.0
        %v1343 = vadd.f32 %v1279, 0.0
        %v1344 = vadd.f32 %v1280, 0.0
        %v1345 = vadd.f32 %v1281, 0.0
        %v1346 = vadd.f32 %v1282, 0.0
        %v1347 = vadd.f32 %v1283, 0.0
        %v1348 = vadd.f32 %v1284, 0.0
        %v1349 = vadd.f32 %v1285, 0.0
        %v1350 = vadd.f32 %v1286, 0.0
        %v1351 = vadd.f32 %v1287, 0.0
        %v1352 = vadd.f32 %v1288, 0.0
        %v1353 = vadd.f32 %v1289, 0.0
        %v1354 = vadd.f32 %v1290, 0.0
        %v1355 = vadd.f32 %v1291, 0.0
        %v1356 = vadd.f32 %v1292, 0.0
        %v1357 = vadd.f32 %v1293, 0.0
        %v1358 = vadd.f32 %v1294, 0.0
        %v1359 = vadd.f32 %v1295, 0.0
        %v1360 = vadd.f32 %v1296, 0.0
        %v1361 = vadd.f32 %v1297, 0.0
        %v1362 = vadd.f32 %v1298, 0.0
        %v1363 = vadd.f32 %v1299, 0.0
        %v1364 = vadd.f32 %v1300, 0.0
        %v1365 = vadd.f32 %v1301, 0.0
        %v1366 = vadd.f32 %v1302, 0.0
        %v1367 = vadd.f32 %v1303, 0.0
        %v1368 = vadd.f32 %v1304, 0.0
        %v1369 = vld [vmem:[#allocation2 + $0x8] sm:$0xff]
        %v1370 = vld [vmem:[#allocation2 + $0x10] sm:$0xff]
        %v1371 = vld [vmem:[#allocation2 + $0x28] sm:$0xff]
        %v1372 = vld [vmem:[#allocation2 + $0x30] sm:$0xff]
        %v1373 = vld [vmem:[#allocation2 + $0x48] sm:$0xff]
        %v1374 = vld [vmem:[#allocation2 + $0x50] sm:$0xff]
        %v1375 = vld [vmem:[#allocation2 + $0x68] sm:$0xff]
        %v1376 = vld [vmem:[#allocation2 + $0x70] sm:$0xff]
        %v1377 = vld [vmem:[#allocation2 + $0x88] sm:$0xff]
        %v1378 = vld [vmem:[#allocation2 + $0x90] sm:$0xff]
        %v1379 = vld [vmem:[#allocation2 + $0xa8] sm:$0xff]
        %v1380 = vld [vmem:[#allocation2 + $0xb0] sm:$0xff]
        %v1381 = vld [vmem:[#allocation2 + $0xc8] sm:$0xff]
        %v1382 = vld [vmem:[#allocation2 + $0xd0] sm:$0xff]
        %v1383 = vld [vmem:[#allocation2 + $0xe8] sm:$0xff]
        %v1384 = vld [vmem:[#allocation2 + $0xf0] sm:$0xff]
        %v1385 = vld [vmem:[#allocation2 + $0x108] sm:$0xff]
        %v1386 = vld [vmem:[#allocation2 + $0x110] sm:$0xff]
        %v1387 = vld [vmem:[#allocation2 + $0x128] sm:$0xff]
        %v1388 = vld [vmem:[#allocation2 + $0x130] sm:$0xff]
        %v1389 = vld [vmem:[#allocation2 + $0x148] sm:$0xff]
        %v1390 = vld [vmem:[#allocation2 + $0x150] sm:$0xff]
        %v1391 = vld [vmem:[#allocation2 + $0x168] sm:$0xff]
        %v1392 = vld [vmem:[#allocation2 + $0x170] sm:$0xff]
        %v1393 = vld [vmem:[#allocation2 + $0x188] sm:$0xff]
        %v1394 = vld [vmem:[#allocation2 + $0x190] sm:$0xff]
        %v1395 = vld [vmem:[#allocation2 + $0x1a8] sm:$0xff]
        %v1396 = vld [vmem:[#allocation2 + $0x1b0] sm:$0xff]
        %v1397 = vld [vmem:[#allocation2 + $0x1c8] sm:$0xff]
        %v1398 = vld [vmem:[#allocation2 + $0x1d0] sm:$0xff]
        %v1399 = vld [vmem:[#allocation2 + $0x1e8] sm:$0xff]
        %v1400 = vld [vmem:[#allocation2 + $0x1f0] sm:$0xff]
        %v1401 = vld [vmem:[#allocation2 + $0x248] sm:$0xff]
        %v1402 = vld [vmem:[#allocation2 + $0x250] sm:$0xff]
        %v1403 = vld [vmem:[#allocation2 + $0x268] sm:$0xff]
        %v1404 = vld [vmem:[#allocation2 + $0x270] sm:$0xff]
        %v1405 = vld [vmem:[#allocation2 + $0x288] sm:$0xff]
        %v1406 = vld [vmem:[#allocation2 + $0x290] sm:$0xff]
        %v1407 = vld [vmem:[#allocation2 + $0x2a8] sm:$0xff]
        %v1408 = vld [vmem:[#allocation2 + $0x2b0] sm:$0xff]
        %v1409 = vld [vmem:[#allocation2 + $0x2c8] sm:$0xff]
        %v1410 = vld [vmem:[#allocation2 + $0x2d0] sm:$0xff]
        %v1411 = vld [vmem:[#allocation2 + $0x2e8] sm:$0xff]
        %v1412 = vld [vmem:[#allocation2 + $0x2f0] sm:$0xff]
        %v1413 = vld [vmem:[#allocation2 + $0x308] sm:$0xff]
        %v1414 = vld [vmem:[#allocation2 + $0x310] sm:$0xff]
        %v1415 = vld [vmem:[#allocation2 + $0x328] sm:$0xff]
        %v1416 = vld [vmem:[#allocation2 + $0x330] sm:$0xff]
        %v1417 = vld [vmem:[#allocation2 + $0x348] sm:$0xff]
        %v1418 = vld [vmem:[#allocation2 + $0x350] sm:$0xff]
        %v1419 = vld [vmem:[#allocation2 + $0x368] sm:$0xff]
        %v1420 = vld [vmem:[#allocation2 + $0x370] sm:$0xff]
        %v1421 = vld [vmem:[#allocation2 + $0x388] sm:$0xff]
        %v1422 = vld [vmem:[#allocation2 + $0x390] sm:$0xff]
        %v1423 = vld [vmem:[#allocation2 + $0x3a8] sm:$0xff]
        %v1424 = vld [vmem:[#allocation2 + $0x3b0] sm:$0xff]
        %v1425 = vld [vmem:[#allocation2 + $0x3c8] sm:$0xff]
        %v1426 = vld [vmem:[#allocation2 + $0x3d0] sm:$0xff]
        %v1427 = vld [vmem:[#allocation2 + $0x3e8] sm:$0xff]
        %v1428 = vld [vmem:[#allocation2 + $0x3f0] sm:$0xff]
        %v1429 = vld [vmem:[#allocation2 + $0x408] sm:$0xff]
        %v1430 = vld [vmem:[#allocation2 + $0x410] sm:$0xff]
        %v1431 = vld [vmem:[#allocation2 + $0x428] sm:$0xff]
        %v1432 = vld [vmem:[#allocation2 + $0x430] sm:$0xff]
        %v1433 = vlaneseq
        %v1434 = vshrl.u32 %v1433, 7
        %v1435 = vsub.s32 1, %v1434
        %v1436 = vrot.slane %v1171, %v1435
        %v1437 = vmul.f32 %v1369, %v1436
        %v1438 = vmul.f32 %v1370, %v1436
        %v1439 = vmul.f32 %v1371, %v1436
        %v1440 = vmul.f32 %v1372, %v1436
        %v1441 = vmul.f32 %v1373, %v1436
        %v1442 = vmul.f32 %v1374, %v1436
        %v1443 = vmul.f32 %v1375, %v1436
        %v1444 = vmul.f32 %v1376, %v1436
        %v1445 = vmul.f32 %v1377, %v1436
        %v1446 = vmul.f32 %v1378, %v1436
        %v1447 = vmul.f32 %v1379, %v1436
        %v1448 = vmul.f32 %v1380, %v1436
        %v1449 = vmul.f32 %v1381, %v1436
        %v1450 = vmul.f32 %v1382, %v1436
        %v1451 = vmul.f32 %v1383, %v1436
        %v1452 = vmul.f32 %v1384, %v1436
        %v1453 = vmul.f32 %v1385, %v1436
        %v1454 = vmul.f32 %v1386, %v1436
        %v1455 = vmul.f32 %v1387, %v1436
        %v1456 = vmul.f32 %v1388, %v1436
        %v1457 = vmul.f32 %v1389, %v1436
        %v1458 = vmul.f32 %v1390, %v1436
        %v1459 = vmul.f32 %v1391, %v1436
        %v1460 = vmul.f32 %v1392, %v1436
        %v1461 = vmul.f32 %v1393, %v1436
        %v1462 = vmul.f32 %v1394, %v1436
        %v1463 = vmul.f32 %v1395, %v1436
        %v1464 = vmul.f32 %v1396, %v1436
        %v1465 = vmul.f32 %v1397, %v1436
        %v1466 = vmul.f32 %v1398, %v1436
        %v1467 = vmul.f32 %v1399, %v1436
        %v1468 = vmul.f32 %v1400, %v1436
        %v1469 = vmul.f32 %v1401, %v1436
        %v1470 = vmul.f32 %v1402, %v1436
        %v1471 = vmul.f32 %v1403, %v1436
        %v1472 = vmul.f32 %v1404, %v1436
        %v1473 = vmul.f32 %v1405, %v1436
        %v1474 = vmul.f32 %v1406, %v1436
        %v1475 = vmul.f32 %v1407, %v1436
        %v1476 = vmul.f32 %v1408, %v1436
        %v1477 = vmul.f32 %v1409, %v1436
        %v1478 = vmul.f32 %v1410, %v1436
        %v1479 = vmul.f32 %v1411, %v1436
        %v1480 = vmul.f32 %v1412, %v1436
        %v1481 = vmul.f32 %v1413, %v1436
        %v1482 = vmul.f32 %v1414, %v1436
        %v1483 = vmul.f32 %v1415, %v1436
        %v1484 = vmul.f32 %v1416, %v1436
        %v1485 = vmul.f32 %v1417, %v1436
        %v1486 = vmul.f32 %v1418, %v1436
        %v1487 = vmul.f32 %v1419, %v1436
        %v1488 = vmul.f32 %v1420, %v1436
        %v1489 = vmul.f32 %v1421, %v1436
        %v1490 = vmul.f32 %v1422, %v1436
        %v1491 = vmul.f32 %v1423, %v1436
        %v1492 = vmul.f32 %v1424, %v1436
        %v1493 = vmul.f32 %v1425, %v1436
        %v1494 = vmul.f32 %v1426, %v1436
        %v1495 = vmul.f32 %v1427, %v1436
        %v1496 = vmul.f32 %v1428, %v1436
        %v1497 = vmul.f32 %v1429, %v1436
        %v1498 = vmul.f32 %v1430, %v1436
        %v1499 = vmul.f32 %v1431, %v1436
        %v1500 = vmul.f32 %v1432, %v1436
        %v1501 = vadd.f32 %v1305, %v1437
        %v1502 = vadd.f32 %v1306, %v1438
        %v1503 = vadd.f32 %v1307, %v1439
        %v1504 = vadd.f32 %v1308, %v1440
        %v1505 = vadd.f32 %v1309, %v1441
        %v1506 = vadd.f32 %v1310, %v1442
        %v1507 = vadd.f32 %v1311, %v1443
        %v1508 = vadd.f32 %v1312, %v1444
        %v1509 = vadd.f32 %v1313, %v1445
        %v1510 = vadd.f32 %v1314, %v1446
        %v1511 = vadd.f32 %v1315, %v1447
        %v1512 = vadd.f32 %v1316, %v1448
        %v1513 = vadd.f32 %v1317, %v1449
        %v1514 = vadd.f32 %v1318, %v1450
        %v1515 = vadd.f32 %v1319, %v1451
        %v1516 = vadd.f32 %v1320, %v1452
        %v1517 = vadd.f32 %v1321, %v1453
        %v1518 = vadd.f32 %v1322, %v1454
        %v1519 = vadd.f32 %v1323, %v1455
        %v1520 = vadd.f32 %v1324, %v1456
        %v1521 = vadd.f32 %v1325, %v1457
        %v1522 = vadd.f32 %v1326, %v1458
        %v1523 = vadd.f32 %v1327, %v1459
        %v1524 = vadd.f32 %v1328, %v1460
        %v1525 = vadd.f32 %v1329, %v1461
        %v1526 = vadd.f32 %v1330, %v1462
        %v1527 = vadd.f32 %v1331, %v1463
        %v1528 = vadd.f32 %v1332, %v1464
        %v1529 = vadd.f32 %v1333, %v1465
        %v1530 = vadd.f32 %v1334, %v1466
        %v1531 = vadd.f32 %v1335, %v1467
        %v1532 = vadd.f32 %v1336, %v1468
        %v1533 = vadd.f32 %v1337, %v1469
        %v1534 = vadd.f32 %v1338, %v1470
        %v1535 = vadd.f32 %v1339, %v1471
        %v1536 = vadd.f32 %v1340, %v1472
        %v1537 = vadd.f32 %v1341, %v1473
        %v1538 = vadd.f32 %v1342, %v1474
        %v1539 = vadd.f32 %v1343, %v1475
        %v1540 = vadd.f32 %v1344, %v1476
        %v1541 = vadd.f32 %v1345, %v1477
        %v1542 = vadd.f32 %v1346, %v1478
        %v1543 = vadd.f32 %v1347, %v1479
        %v1544 = vadd.f32 %v1348, %v1480
        %v1545 = vadd.f32 %v1349, %v1481
        %v1546 = vadd.f32 %v1350, %v1482
        %v1547 = vadd.f32 %v1351, %v1483
        %v1548 = vadd.f32 %v1352, %v1484
        %v1549 = vadd.f32 %v1353, %v1485
        %v1550 = vadd.f32 %v1354, %v1486
        %v1551 = vadd.f32 %v1355, %v1487
        %v1552 = vadd.f32 %v1356, %v1488
        %v1553 = vadd.f32 %v1357, %v1489
        %v1554 = vadd.f32 %v1358, %v1490
        %v1555 = vadd.f32 %v1359, %v1491
        %v1556 = vadd.f32 %v1360, %v1492
        %v1557 = vadd.f32 %v1361, %v1493
        %v1558 = vadd.f32 %v1362, %v1494
        %v1559 = vadd.f32 %v1363, %v1495
        %v1560 = vadd.f32 %v1364, %v1496
        %v1561 = vadd.f32 %v1365, %v1497
        %v1562 = vadd.f32 %v1366, %v1498
        %v1563 = vadd.f32 %v1367, %v1499
        %v1564 = vadd.f32 %v1368, %v1500
        %v1565 = vld [vmem:[#allocation2 + $0x9] sm:$0xff]
        %v1566 = vld [vmem:[#allocation2 + $0x11] sm:$0xff]
        %v1567 = vld [vmem:[#allocation2 + $0x29] sm:$0xff]
        %v1568 = vld [vmem:[#allocation2 + $0x31] sm:$0xff]
        %v1569 = vld [vmem:[#allocation2 + $0x49] sm:$0xff]
        %v1570 = vld [vmem:[#allocation2 + $0x51] sm:$0xff]
        %v1571 = vld [vmem:[#allocation2 + $0x69] sm:$0xff]
        %v1572 = vld [vmem:[#allocation2 + $0x71] sm:$0xff]
        %v1573 = vld [vmem:[#allocation2 + $0x89] sm:$0xff]
        %v1574 = vld [vmem:[#allocation2 + $0x91] sm:$0xff]
        %v1575 = vld [vmem:[#allocation2 + $0xa9] sm:$0xff]
        %v1576 = vld [vmem:[#allocation2 + $0xb1] sm:$0xff]
        %v1577 = vld [vmem:[#allocation2 + $0xc9] sm:$0xff]
        %v1578 = vld [vmem:[#allocation2 + $0xd1] sm:$0xff]
        %v1579 = vld [vmem:[#allocation2 + $0xe9] sm:$0xff]
        %v1580 = vld [vmem:[#allocation2 + $0xf1] sm:$0xff]
        %v1581 = vld [vmem:[#allocation2 + $0x109] sm:$0xff]
        %v1582 = vld [vmem:[#allocation2 + $0x111] sm:$0xff]
        %v1583 = vld [vmem:[#allocation2 + $0x129] sm:$0xff]
        %v1584 = vld [vmem:[#allocation2 + $0x131] sm:$0xff]
        %v1585 = vld [vmem:[#allocation2 + $0x149] sm:$0xff]
        %v1586 = vld [vmem:[#allocation2 + $0x151] sm:$0xff]
        %v1587 = vld [vmem:[#allocation2 + $0x169] sm:$0xff]
        %v1588 = vld [vmem:[#allocation2 + $0x171] sm:$0xff]
        %v1589 = vld [vmem:[#allocation2 + $0x189] sm:$0xff]
        %v1590 = vld [vmem:[#allocation2 + $0x191] sm:$0xff]
        %v1591 = vld [vmem:[#allocation2 + $0x1a9] sm:$0xff]
        %v1592 = vld [vmem:[#allocation2 + $0x1b1] sm:$0xff]
        %v1593 = vld [vmem:[#allocation2 + $0x1c9] sm:$0xff]
        %v1594 = vld [vmem:[#allocation2 + $0x1d1] sm:$0xff]
        %v1595 = vld [vmem:[#allocation2 + $0x1e9] sm:$0xff]
        %v1596 = vld [vmem:[#allocation2 + $0x1f1] sm:$0xff]
        %v1597 = vld [vmem:[#allocation2 + $0x249] sm:$0xff]
        %v1598 = vld [vmem:[#allocation2 + $0x251] sm:$0xff]
        %v1599 = vld [vmem:[#allocation2 + $0x269] sm:$0xff]
        %v1600 = vld [vmem:[#allocation2 + $0x271] sm:$0xff]
        %v1601 = vld [vmem:[#allocation2 + $0x289] sm:$0xff]
        %v1602 = vld [vmem:[#allocation2 + $0x291] sm:$0xff]
        %v1603 = vld [vmem:[#allocation2 + $0x2a9] sm:$0xff]
        %v1604 = vld [vmem:[#allocation2 + $0x2b1] sm:$0xff]
        %v1605 = vld [vmem:[#allocation2 + $0x2c9] sm:$0xff]
        %v1606 = vld [vmem:[#allocation2 + $0x2d1] sm:$0xff]
        %v1607 = vld [vmem:[#allocation2 + $0x2e9] sm:$0xff]
        %v1608 = vld [vmem:[#allocation2 + $0x2f1] sm:$0xff]
        %v1609 = vld [vmem:[#allocation2 + $0x309] sm:$0xff]
        %v1610 = vld [vmem:[#allocation2 + $0x311] sm:$0xff]
        %v1611 = vld [vmem:[#allocation2 + $0x329] sm:$0xff]
        %v1612 = vld [vmem:[#allocation2 + $0x331] sm:$0xff]
        %v1613 = vld [vmem:[#allocation2 + $0x349] sm:$0xff]
        %v1614 = vld [vmem:[#allocation2 + $0x351] sm:$0xff]
        %v1615 = vld [vmem:[#allocation2 + $0x369] sm:$0xff]
        %v1616 = vld [vmem:[#allocation2 + $0x371] sm:$0xff]
        %v1617 = vld [vmem:[#allocation2 + $0x389] sm:$0xff]
        %v1618 = vld [vmem:[#allocation2 + $0x391] sm:$0xff]
        %v1619 = vld [vmem:[#allocation2 + $0x3a9] sm:$0xff]
        %v1620 = vld [vmem:[#allocation2 + $0x3b1] sm:$0xff]
        %v1621 = vld [vmem:[#allocation2 + $0x3c9] sm:$0xff]
        %v1622 = vld [vmem:[#allocation2 + $0x3d1] sm:$0xff]
        %v1623 = vld [vmem:[#allocation2 + $0x3e9] sm:$0xff]
        %v1624 = vld [vmem:[#allocation2 + $0x3f1] sm:$0xff]
        %v1625 = vld [vmem:[#allocation2 + $0x409] sm:$0xff]
        %v1626 = vld [vmem:[#allocation2 + $0x411] sm:$0xff]
        %v1627 = vld [vmem:[#allocation2 + $0x429] sm:$0xff]
        %v1628 = vld [vmem:[#allocation2 + $0x431] sm:$0xff]
        %v1629 = vlaneseq
        %v1630 = vshrl.u32 %v1629, 7
        %v1631 = vsub.s32 2, %v1630
        %v1632 = vrot.slane %v1171, %v1631
        %v1633 = vmul.f32 %v1565, %v1632
        %v1634 = vmul.f32 %v1566, %v1632
        %v1635 = vmul.f32 %v1567, %v1632
        %v1636 = vmul.f32 %v1568, %v1632
        %v1637 = vmul.f32 %v1569, %v1632
        %v1638 = vmul.f32 %v1570, %v1632
        %v1639 = vmul.f32 %v1571, %v1632
        %v1640 = vmul.f32 %v1572, %v1632
        %v1641 = vmul.f32 %v1573, %v1632
        %v1642 = vmul.f32 %v1574, %v1632
        %v1643 = vmul.f32 %v1575, %v1632
        %v1644 = vmul.f32 %v1576, %v1632
        %v1645 = vmul.f32 %v1577, %v1632
        %v1646 = vmul.f32 %v1578, %v1632
        %v1647 = vmul.f32 %v1579, %v1632
        %v1648 = vmul.f32 %v1580, %v1632
        %v1649 = vmul.f32 %v1581, %v1632
        %v1650 = vmul.f32 %v1582, %v1632
        %v1651 = vmul.f32 %v1583, %v1632
        %v1652 = vmul.f32 %v1584, %v1632
        %v1653 = vmul.f32 %v1585, %v1632
        %v1654 = vmul.f32 %v1586, %v1632
        %v1655 = vmul.f32 %v1587, %v1632
        %v1656 = vmul.f32 %v1588, %v1632
        %v1657 = vmul.f32 %v1589, %v1632
        %v1658 = vmul.f32 %v1590, %v1632
        %v1659 = vmul.f32 %v1591, %v1632
        %v1660 = vmul.f32 %v1592, %v1632
        %v1661 = vmul.f32 %v1593, %v1632
        %v1662 = vmul.f32 %v1594, %v1632
        %v1663 = vmul.f32 %v1595, %v1632
        %v1664 = vmul.f32 %v1596, %v1632
        %v1665 = vmul.f32 %v1597, %v1632
        %v1666 = vmul.f32 %v1598, %v1632
        %v1667 = vmul.f32 %v1599, %v1632
        %v1668 = vmul.f32 %v1600, %v1632
        %v1669 = vmul.f32 %v1601, %v1632
        %v1670 = vmul.f32 %v1602, %v1632
        %v1671 = vmul.f32 %v1603, %v1632
        %v1672 = vmul.f32 %v1604, %v1632
        %v1673 = vmul.f32 %v1605, %v1632
        %v1674 = vmul.f32 %v1606, %v1632
        %v1675 = vmul.f32 %v1607, %v1632
        %v1676 = vmul.f32 %v1608, %v1632
        %v1677 = vmul.f32 %v1609, %v1632
        %v1678 = vmul.f32 %v1610, %v1632
        %v1679 = vmul.f32 %v1611, %v1632
        %v1680 = vmul.f32 %v1612, %v1632
        %v1681 = vmul.f32 %v1613, %v1632
        %v1682 = vmul.f32 %v1614, %v1632
        %v1683 = vmul.f32 %v1615, %v1632
        %v1684 = vmul.f32 %v1616, %v1632
        %v1685 = vmul.f32 %v1617, %v1632
        %v1686 = vmul.f32 %v1618, %v1632
        %v1687 = vmul.f32 %v1619, %v1632
        %v1688 = vmul.f32 %v1620, %v1632
        %v1689 = vmul.f32 %v1621, %v1632
        %v1690 = vmul.f32 %v1622, %v1632
        %v1691 = vmul.f32 %v1623, %v1632
        %v1692 = vmul.f32 %v1624, %v1632
        %v1693 = vmul.f32 %v1625, %v1632
        %v1694 = vmul.f32 %v1626, %v1632
        %v1695 = vmul.f32 %v1627, %v1632
        %v1696 = vmul.f32 %v1628, %v1632
        %v1697 = vadd.f32 %v1501, %v1633
        %v1698 = vadd.f32 %v1502, %v1634
        %v1699 = vadd.f32 %v1503, %v1635
        %v1700 = vadd.f32 %v1504, %v1636
        %v1701 = vadd.f32 %v1505, %v1637
        %v1702 = vadd.f32 %v1506, %v1638
        %v1703 = vadd.f32 %v1507, %v1639
        %v1704 = vadd.f32 %v1508, %v1640
        %v1705 = vadd.f32 %v1509, %v1641
        %v1706 = vadd.f32 %v1510, %v1642
        %v1707 = vadd.f32 %v1511, %v1643
        %v1708 = vadd.f32 %v1512, %v1644
        %v1709 = vadd.f32 %v1513, %v1645
        %v1710 = vadd.f32 %v1514, %v1646
        %v1711 = vadd.f32 %v1515, %v1647
        %v1712 = vadd.f32 %v1516, %v1648
        %v1713 = vadd.f32 %v1517, %v1649
        %v1714 = vadd.f32 %v1518, %v1650
        %v1715 = vadd.f32 %v1519, %v1651
        %v1716 = vadd.f32 %v1520, %v1652
        %v1717 = vadd.f32 %v1521, %v1653
        %v1718 = vadd.f32 %v1522, %v1654
        %v1719 = vadd.f32 %v1523, %v1655
        %v1720 = vadd.f32 %v1524, %v1656
        %v1721 = vadd.f32 %v1525, %v1657
        %v1722 = vadd.f32 %v1526, %v1658
        %v1723 = vadd.f32 %v1527, %v1659
        %v1724 = vadd.f32 %v1528, %v1660
        %v1725 = vadd.f32 %v1529, %v1661
        %v1726 = vadd.f32 %v1530, %v1662
        %v1727 = vadd.f32 %v1531, %v1663
        %v1728 = vadd.f32 %v1532, %v1664
        %v1729 = vadd.f32 %v1533, %v1665
        %v1730 = vadd.f32 %v1534, %v1666
        %v1731 = vadd.f32 %v1535, %v1667
        %v1732 = vadd.f32 %v1536, %v1668
        %v1733 = vadd.f32 %v1537, %v1669
        %v1734 = vadd.f32 %v1538, %v1670
        %v1735 = vadd.f32 %v1539, %v1671
        %v1736 = vadd.f32 %v1540, %v1672
        %v1737 = vadd.f32 %v1541, %v1673
        %v1738 = vadd.f32 %v1542, %v1674
        %v1739 = vadd.f32 %v1543, %v1675
        %v1740 = vadd.f32 %v1544, %v1676
        %v1741 = vadd.f32 %v1545, %v1677
        %v1742 = vadd.f32 %v1546, %v1678
        %v1743 = vadd.f32 %v1547, %v1679
        %v1744 = vadd.f32 %v1548, %v1680
        %v1745 = vadd.f32 %v1549, %v1681
        %v1746 = vadd.f32 %v1550, %v1682
        %v1747 = vadd.f32 %v1551, %v1683
        %v1748 = vadd.f32 %v1552, %v1684
        %v1749 = vadd.f32 %v1553, %v1685
        %v1750 = vadd.f32 %v1554, %v1686
        %v1751 = vadd.f32 %v1555, %v1687
        %v1752 = vadd.f32 %v1556, %v1688
        %v1753 = vadd.f32 %v1557, %v1689
        %v1754 = vadd.f32 %v1558, %v1690
        %v1755 = vadd.f32 %v1559, %v1691
        %v1756 = vadd.f32 %v1560, %v1692
        %v1757 = vadd.f32 %v1561, %v1693
        %v1758 = vadd.f32 %v1562, %v1694
        %v1759 = vadd.f32 %v1563, %v1695
        %v1760 = vadd.f32 %v1564, %v1696
        %v1761 = vld [vmem:[%s1106 + $0x7] sm:$0xff]
        %v1762 = vld [vmem:[%s1106 + $0xf] sm:$0xff]
        %v1763 = vld [vmem:[%s1106 + $0x27] sm:$0xff]
        %v1764 = vld [vmem:[%s1106 + $0x2f] sm:$0xff]
        %v1765 = vld [vmem:[%s1106 + $0x47] sm:$0xff]
        %v1766 = vld [vmem:[%s1106 + $0x4f] sm:$0xff]
        %v1767 = vld [vmem:[%s1106 + $0x67] sm:$0xff]
        %v1768 = vld [vmem:[%s1106 + $0x6f] sm:$0xff]
        %v1769 = vld [vmem:[%s1106 + $0x87] sm:$0xff]
        %v1770 = vld [vmem:[%s1106 + $0x8f] sm:$0xff]
        %v1771 = vld [vmem:[%s1106 + $0xa7] sm:$0xff]
        %v1772 = vld [vmem:[%s1106 + $0xaf] sm:$0xff]
        %v1773 = vld [vmem:[%s1106 + $0xc7] sm:$0xff]
        %v1774 = vld [vmem:[%s1106 + $0xcf] sm:$0xff]
        %v1775 = vld [vmem:[%s1106 + $0xe7] sm:$0xff]
        %v1776 = vld [vmem:[%s1106 + $0xef] sm:$0xff]
        %v1777 = vld [vmem:[%s1106 + $0x107] sm:$0xff]
        %v1778 = vld [vmem:[%s1106 + $0x10f] sm:$0xff]
        %v1779 = vld [vmem:[%s1106 + $0x127] sm:$0xff]
        %v1780 = vld [vmem:[%s1106 + $0x12f] sm:$0xff]
        %v1781 = vld [vmem:[%s1106 + $0x147] sm:$0xff]
        %v1782 = vld [vmem:[%s1106 + $0x14f] sm:$0xff]
        %v1783 = vld [vmem:[%s1106 + $0x167] sm:$0xff]
        %v1784 = vld [vmem:[%s1106 + $0x16f] sm:$0xff]
        %v1785 = vld [vmem:[%s1106 + $0x187] sm:$0xff]
        %v1786 = vld [vmem:[%s1106 + $0x18f] sm:$0xff]
        %v1787 = vld [vmem:[%s1106 + $0x1a7] sm:$0xff]
        %v1788 = vld [vmem:[%s1106 + $0x1af] sm:$0xff]
        %v1789 = vld [vmem:[%s1106 + $0x1c7] sm:$0xff]
        %v1790 = vld [vmem:[%s1106 + $0x1cf] sm:$0xff]
        %v1791 = vld [vmem:[%s1106 + $0x1e7] sm:$0xff]
        %v1792 = vld [vmem:[%s1106 + $0x1ef] sm:$0xff]
        %v1793 = vld [vmem:[%s1106 + $0x247] sm:$0xff]
        %v1794 = vld [vmem:[%s1106 + $0x24f] sm:$0xff]
        %v1795 = vld [vmem:[%s1106 + $0x267] sm:$0xff]
        %v1796 = vld [vmem:[%s1106 + $0x26f] sm:$0xff]
        %v1797 = vld [vmem:[%s1106 + $0x287] sm:$0xff]
        %v1798 = vld [vmem:[%s1106 + $0x28f] sm:$0xff]
        %v1799 = vld [vmem:[%s1106 + $0x2a7] sm:$0xff]
        %v1800 = vld [vmem:[%s1106 + $0x2af] sm:$0xff]
        %v1801 = vld [vmem:[%s1106 + $0x2c7] sm:$0xff]
        %v1802 = vld [vmem:[%s1106 + $0x2cf] sm:$0xff]
        %v1803 = vld [vmem:[%s1106 + $0x2e7] sm:$0xff]
        %v1804 = vld [vmem:[%s1106 + $0x2ef] sm:$0xff]
        %v1805 = vld [vmem:[%s1106 + $0x307] sm:$0xff]
        %v1806 = vld [vmem:[%s1106 + $0x30f] sm:$0xff]
        %v1807 = vld [vmem:[%s1106 + $0x327] sm:$0xff]
        %v1808 = vld [vmem:[%s1106 + $0x32f] sm:$0xff]
        %v1809 = vld [vmem:[%s1106 + $0x347] sm:$0xff]
        %v1810 = vld [vmem:[%s1106 + $0x34f] sm:$0xff]
        %v1811 = vld [vmem:[%s1106 + $0x367] sm:$0xff]
        %v1812 = vld [vmem:[%s1106 + $0x36f] sm:$0xff]
        %v1813 = vld [vmem:[%s1106 + $0x387] sm:$0xff]
        %v1814 = vld [vmem:[%s1106 + $0x38f] sm:$0xff]
        %v1815 = vld [vmem:[%s1106 + $0x3a7] sm:$0xff]
        %v1816 = vld [vmem:[%s1106 + $0x3af] sm:$0xff]
        %v1817 = vld [vmem:[%s1106 + $0x3c7] sm:$0xff]
        %v1818 = vld [vmem:[%s1106 + $0x3cf] sm:$0xff]
        %v1819 = vld [vmem:[%s1106 + $0x3e7] sm:$0xff]
        %v1820 = vld [vmem:[%s1106 + $0x3ef] sm:$0xff]
        %v1821 = vld [vmem:[%s1106 + $0x407] sm:$0xff]
        %v1822 = vld [vmem:[%s1106 + $0x40f] sm:$0xff]
        %v1823 = vld [vmem:[%s1106 + $0x427] sm:$0xff]
        %v1824 = vld [vmem:[%s1106 + $0x42f] sm:$0xff]
        %v1825 = vlaneseq
        %v1826 = vshrl.u32 %v1825, 7
        %v1827 = vsub.s32 3, %v1826
        %v1828 = vrot.slane %v1171, %v1827
        %v1829 = vmul.f32 %v1761, %v1828
        %v1830 = vmul.f32 %v1762, %v1828
        %v1831 = vmul.f32 %v1763, %v1828
        %v1832 = vmul.f32 %v1764, %v1828
        %v1833 = vmul.f32 %v1765, %v1828
        %v1834 = vmul.f32 %v1766, %v1828
        %v1835 = vmul.f32 %v1767, %v1828
        %v1836 = vmul.f32 %v1768, %v1828
        %v1837 = vmul.f32 %v1769, %v1828
        %v1838 = vmul.f32 %v1770, %v1828
        %v1839 = vmul.f32 %v1771, %v1828
        %v1840 = vmul.f32 %v1772, %v1828
        %v1841 = vmul.f32 %v1773, %v1828
        %v1842 = vmul.f32 %v1774, %v1828
        %v1843 = vmul.f32 %v1775, %v1828
        %v1844 = vmul.f32 %v1776, %v1828
        %v1845 = vmul.f32 %v1777, %v1828
        %v1846 = vmul.f32 %v1778, %v1828
        %v1847 = vmul.f32 %v1779, %v1828
        %v1848 = vmul.f32 %v1780, %v1828
        %v1849 = vmul.f32 %v1781, %v1828
        %v1850 = vmul.f32 %v1782, %v1828
        %v1851 = vmul.f32 %v1783, %v1828
        %v1852 = vmul.f32 %v1784, %v1828
        %v1853 = vmul.f32 %v1785, %v1828
        %v1854 = vmul.f32 %v1786, %v1828
        %v1855 = vmul.f32 %v1787, %v1828
        %v1856 = vmul.f32 %v1788, %v1828
        %v1857 = vmul.f32 %v1789, %v1828
        %v1858 = vmul.f32 %v1790, %v1828
        %v1859 = vmul.f32 %v1791, %v1828
        %v1860 = vmul.f32 %v1792, %v1828
        %v1861 = vmul.f32 %v1793, %v1828
        %v1862 = vmul.f32 %v1794, %v1828
        %v1863 = vmul.f32 %v1795, %v1828
        %v1864 = vmul.f32 %v1796, %v1828
        %v1865 = vmul.f32 %v1797, %v1828
        %v1866 = vmul.f32 %v1798, %v1828
        %v1867 = vmul.f32 %v1799, %v1828
        %v1868 = vmul.f32 %v1800, %v1828
        %v1869 = vmul.f32 %v1801, %v1828
        %v1870 = vmul.f32 %v1802, %v1828
        %v1871 = vmul.f32 %v1803, %v1828
        %v1872 = vmul.f32 %v1804, %v1828
        %v1873 = vmul.f32 %v1805, %v1828
        %v1874 = vmul.f32 %v1806, %v1828
        %v1875 = vmul.f32 %v1807, %v1828
        %v1876 = vmul.f32 %v1808, %v1828
        %v1877 = vmul.f32 %v1809, %v1828
        %v1878 = vmul.f32 %v1810, %v1828
        %v1879 = vmul.f32 %v1811, %v1828
        %v1880 = vmul.f32 %v1812, %v1828
        %v1881 = vmul.f32 %v1813, %v1828
        %v1882 = vmul.f32 %v1814, %v1828
        %v1883 = vmul.f32 %v1815, %v1828
        %v1884 = vmul.f32 %v1816, %v1828
        %v1885 = vmul.f32 %v1817, %v1828
        %v1886 = vmul.f32 %v1818, %v1828
        %v1887 = vmul.f32 %v1819, %v1828
        %v1888 = vmul.f32 %v1820, %v1828
        %v1889 = vmul.f32 %v1821, %v1828
        %v1890 = vmul.f32 %v1822, %v1828
        %v1891 = vmul.f32 %v1823, %v1828
        %v1892 = vmul.f32 %v1824, %v1828
        %v1893 = vadd.f32 %v1697, %v1829
        %v1894 = vadd.f32 %v1698, %v1830
        %v1895 = vadd.f32 %v1699, %v1831
        %v1896 = vadd.f32 %v1700, %v1832
        %v1897 = vadd.f32 %v1701, %v1833
        %v1898 = vadd.f32 %v1702, %v1834
        %v1899 = vadd.f32 %v1703, %v1835
        %v1900 = vadd.f32 %v1704, %v1836
        %v1901 = vadd.f32 %v1705, %v1837
        %v1902 = vadd.f32 %v1706, %v1838
        %v1903 = vadd.f32 %v1707, %v1839
        %v1904 = vadd.f32 %v1708, %v1840
        %v1905 = vadd.f32 %v1709, %v1841
        %v1906 = vadd.f32 %v1710, %v1842
        %v1907 = vadd.f32 %v1711, %v1843
        %v1908 = vadd.f32 %v1712, %v1844
        %v1909 = vadd.f32 %v1713, %v1845
        %v1910 = vadd.f32 %v1714, %v1846
        %v1911 = vadd.f32 %v1715, %v1847
        %v1912 = vadd.f32 %v1716, %v1848
        %v1913 = vadd.f32 %v1717, %v1849
        %v1914 = vadd.f32 %v1718, %v1850
        %v1915 = vadd.f32 %v1719, %v1851
        %v1916 = vadd.f32 %v1720, %v1852
        %v1917 = vadd.f32 %v1721, %v1853
        %v1918 = vadd.f32 %v1722, %v1854
        %v1919 = vadd.f32 %v1723, %v1855
        %v1920 = vadd.f32 %v1724, %v1856
        %v1921 = vadd.f32 %v1725, %v1857
        %v1922 = vadd.f32 %v1726, %v1858
        %v1923 = vadd.f32 %v1727, %v1859
        %v1924 = vadd.f32 %v1728, %v1860
        %v1925 = vadd.f32 %v1729, %v1861
        %v1926 = vadd.f32 %v1730, %v1862
        %v1927 = vadd.f32 %v1731, %v1863
        %v1928 = vadd.f32 %v1732, %v1864
        %v1929 = vadd.f32 %v1733, %v1865
        %v1930 = vadd.f32 %v1734, %v1866
        %v1931 = vadd.f32 %v1735, %v1867
        %v1932 = vadd.f32 %v1736, %v1868
        %v1933 = vadd.f32 %v1737, %v1869
        %v1934 = vadd.f32 %v1738, %v1870
        %v1935 = vadd.f32 %v1739, %v1871
        %v1936 = vadd.f32 %v1740, %v1872
        %v1937 = vadd.f32 %v1741, %v1873
        %v1938 = vadd.f32 %v1742, %v1874
        %v1939 = vadd.f32 %v1743, %v1875
        %v1940 = vadd.f32 %v1744, %v1876
        %v1941 = vadd.f32 %v1745, %v1877
        %v1942 = vadd.f32 %v1746, %v1878
        %v1943 = vadd.f32 %v1747, %v1879
        %v1944 = vadd.f32 %v1748, %v1880
        %v1945 = vadd.f32 %v1749, %v1881
        %v1946 = vadd.f32 %v1750, %v1882
        %v1947 = vadd.f32 %v1751, %v1883
        %v1948 = vadd.f32 %v1752, %v1884
        %v1949 = vadd.f32 %v1753, %v1885
        %v1950 = vadd.f32 %v1754, %v1886
        %v1951 = vadd.f32 %v1755, %v1887
        %v1952 = vadd.f32 %v1756, %v1888
        %v1953 = vadd.f32 %v1757, %v1889
        %v1954 = vadd.f32 %v1758, %v1890
        %v1955 = vadd.f32 %v1759, %v1891
        %v1956 = vadd.f32 %v1760, %v1892
        %v1957 = vlaneseq
        %v1958 = vshrl.u32 %v1957, 7
        %v1959 = vsub.s32 4, %v1958
        %v1960 = vrot.slane %v1171, %v1959
        %v1961 = vmul.f32 %v961, %v1960
        %v1962 = vmul.f32 %v962, %v1960
        %v1963 = vmul.f32 %v963, %v1960
        %v1964 = vmul.f32 %v964, %v1960
        %v1965 = vmul.f32 %v965, %v1960
        %v1966 = vmul.f32 %v966, %v1960
        %v1967 = vmul.f32 %v967, %v1960
        %v1968 = vmul.f32 %v968, %v1960
        %v1969 = vmul.f32 %v969, %v1960
        %v1970 = vmul.f32 %v970, %v1960
        %v1971 = vmul.f32 %v971, %v1960
        %v1972 = vmul.f32 %v972, %v1960
        %v1973 = vmul.f32 %v973, %v1960
        %v1974 = vmul.f32 %v974, %v1960
        %v1975 = vmul.f32 %v975, %v1960
        %v1976 = vmul.f32 %v976, %v1960
        %v1977 = vmul.f32 %v977, %v1960
        %v1978 = vmul.f32 %v978, %v1960
        %v1979 = vmul.f32 %v979, %v1960
        %v1980 = vmul.f32 %v980, %v1960
        %v1981 = vmul.f32 %v981, %v1960
        %v1982 = vmul.f32 %v982, %v1960
        %v1983 = vmul.f32 %v983, %v1960
        %v1984 = vmul.f32 %v984, %v1960
        %v1985 = vmul.f32 %v985, %v1960
        %v1986 = vmul.f32 %v986, %v1960
        %v1987 = vmul.f32 %v987, %v1960
        %v1988 = vmul.f32 %v988, %v1960
        %v1989 = vmul.f32 %v989, %v1960
        %v1990 = vmul.f32 %v990, %v1960
        %v1991 = vmul.f32 %v991, %v1960
        %v1992 = vmul.f32 %v992, %v1960
        %v1993 = vmul.f32 %v993, %v1960
        %v1994 = vmul.f32 %v994, %v1960
        %v1995 = vmul.f32 %v995, %v1960
        %v1996 = vmul.f32 %v996, %v1960
        %v1997 = vmul.f32 %v997, %v1960
        %v1998 = vmul.f32 %v998, %v1960
        %v1999 = vmul.f32 %v999, %v1960
        %v2000 = vmul.f32 %v1000, %v1960
        %v2001 = vmul.f32 %v1001, %v1960
        %v2002 = vmul.f32 %v1002, %v1960
        %v2003 = vmul.f32 %v1003, %v1960
        %v2004 = vmul.f32 %v1004, %v1960
        %v2005 = vmul.f32 %v1005, %v1960
        %v2006 = vmul.f32 %v1006, %v1960
        %v2007 = vmul.f32 %v1007, %v1960
        %v2008 = vmul.f32 %v1008, %v1960
        %v2009 = vmul.f32 %v1009, %v1960
        %v2010 = vmul.f32 %v1010, %v1960
        %v2011 = vmul.f32 %v1011, %v1960
        %v2012 = vmul.f32 %v1012, %v1960
        %v2013 = vmul.f32 %v1013, %v1960
        %v2014 = vmul.f32 %v1014, %v1960
        %v2015 = vmul.f32 %v1015, %v1960
        %v2016 = vmul.f32 %v1016, %v1960
        %v2017 = vmul.f32 %v1017, %v1960
        %v2018 = vmul.f32 %v1018, %v1960
        %v2019 = vmul.f32 %v1019, %v1960
        %v2020 = vmul.f32 %v1020, %v1960
        %v2021 = vmul.f32 %v1021, %v1960
        %v2022 = vmul.f32 %v1022, %v1960
        %v2023 = vmul.f32 %v1023, %v1960
        %v2024 = vmul.f32 %v1024, %v1960
        %v2025 = vadd.f32 %v1893, %v1961
        %v2026 = vadd.f32 %v1894, %v1962
        %v2027 = vadd.f32 %v1895, %v1963
        %v2028 = vadd.f32 %v1896, %v1964
        %v2029 = vadd.f32 %v1897, %v1965
        %v2030 = vadd.f32 %v1898, %v1966
        %v2031 = vadd.f32 %v1899, %v1967
        %v2032 = vadd.f32 %v1900, %v1968
        %v2033 = vadd.f32 %v1901, %v1969
        %v2034 = vadd.f32 %v1902, %v1970
        %v2035 = vadd.f32 %v1903, %v1971
        %v2036 = vadd.f32 %v1904, %v1972
        %v2037 = vadd.f32 %v1905, %v1973
        %v2038 = vadd.f32 %v1906, %v1974
        %v2039 = vadd.f32 %v1907, %v1975
        %v2040 = vadd.f32 %v1908, %v1976
        %v2041 = vadd.f32 %v1909, %v1977
        %v2042 = vadd.f32 %v1910, %v1978
        %v2043 = vadd.f32 %v1911, %v1979
        %v2044 = vadd.f32 %v1912, %v1980
        %v2045 = vadd.f32 %v1913, %v1981
        %v2046 = vadd.f32 %v1914, %v1982
        %v2047 = vadd.f32 %v1915, %v1983
        %v2048 = vadd.f32 %v1916, %v1984
        %v2049 = vadd.f32 %v1917, %v1985
        %v2050 = vadd.f32 %v1918, %v1986
        %v2051 = vadd.f32 %v1919, %v1987
        %v2052 = vadd.f32 %v1920, %v1988
        %v2053 = vadd.f32 %v1921, %v1989
        %v2054 = vadd.f32 %v1922, %v1990
        %v2055 = vadd.f32 %v1923, %v1991
        %v2056 = vadd.f32 %v1924, %v1992
        %v2057 = vadd.f32 %v1925, %v1993
        %v2058 = vadd.f32 %v1926, %v1994
        %v2059 = vadd.f32 %v1927, %v1995
        %v2060 = vadd.f32 %v1928, %v1996
        %v2061 = vadd.f32 %v1929, %v1997
        %v2062 = vadd.f32 %v1930, %v1998
        %v2063 = vadd.f32 %v1931, %v1999
        %v2064 = vadd.f32 %v1932, %v2000
        %v2065 = vadd.f32 %v1933, %v2001
        %v2066 = vadd.f32 %v1934, %v2002
        %v2067 = vadd.f32 %v1935, %v2003
        %v2068 = vadd.f32 %v1936, %v2004
        %v2069 = vadd.f32 %v1937, %v2005
        %v2070 = vadd.f32 %v1938, %v2006
        %v2071 = vadd.f32 %v1939, %v2007
        %v2072 = vadd.f32 %v1940, %v2008
        %v2073 = vadd.f32 %v1941, %v2009
        %v2074 = vadd.f32 %v1942, %v2010
        %v2075 = vadd.f32 %v1943, %v2011
        %v2076 = vadd.f32 %v1944, %v2012
        %v2077 = vadd.f32 %v1945, %v2013
        %v2078 = vadd.f32 %v1946, %v2014
        %v2079 = vadd.f32 %v1947, %v2015
        %v2080 = vadd.f32 %v1948, %v2016
        %v2081 = vadd.f32 %v1949, %v2017
        %v2082 = vadd.f32 %v1950, %v2018
        %v2083 = vadd.f32 %v1951, %v2019
        %v2084 = vadd.f32 %v1952, %v2020
        %v2085 = vadd.f32 %v1953, %v2021
        %v2086 = vadd.f32 %v1954, %v2022
        %v2087 = vadd.f32 %v1955, %v2023
        %v2088 = vadd.f32 %v1956, %v2024
        %v2089 = vld [vmem:[%s1106 + $0x9] sm:$0xff]
        %v2090 = vld [vmem:[%s1106 + $0x11] sm:$0xff]
        %v2091 = vld [vmem:[%s1106 + $0x29] sm:$0xff]
        %v2092 = vld [vmem:[%s1106 + $0x31] sm:$0xff]
        %v2093 = vld [vmem:[%s1106 + $0x49] sm:$0xff]
        %v2094 = vld [vmem:[%s1106 + $0x51] sm:$0xff]
        %v2095 = vld [vmem:[%s1106 + $0x69] sm:$0xff]
        %v2096 = vld [vmem:[%s1106 + $0x71] sm:$0xff]
        %v2097 = vld [vmem:[%s1106 + $0x89] sm:$0xff]
        %v2098 = vld [vmem:[%s1106 + $0x91] sm:$0xff]
        %v2099 = vld [vmem:[%s1106 + $0xa9] sm:$0xff]
        %v2100 = vld [vmem:[%s1106 + $0xb1] sm:$0xff]
        %v2101 = vld [vmem:[%s1106 + $0xc9] sm:$0xff]
        %v2102 = vld [vmem:[%s1106 + $0xd1] sm:$0xff]
        %v2103 = vld [vmem:[%s1106 + $0xe9] sm:$0xff]
        %v2104 = vld [vmem:[%s1106 + $0xf1] sm:$0xff]
        %v2105 = vld [vmem:[%s1106 + $0x109] sm:$0xff]
        %v2106 = vld [vmem:[%s1106 + $0x111] sm:$0xff]
        %v2107 = vld [vmem:[%s1106 + $0x129] sm:$0xff]
        %v2108 = vld [vmem:[%s1106 + $0x131] sm:$0xff]
        %v2109 = vld [vmem:[%s1106 + $0x149] sm:$0xff]
        %v2110 = vld [vmem:[%s1106 + $0x151] sm:$0xff]
        %v2111 = vld [vmem:[%s1106 + $0x169] sm:$0xff]
        %v2112 = vld [vmem:[%s1106 + $0x171] sm:$0xff]
        %v2113 = vld [vmem:[%s1106 + $0x189] sm:$0xff]
        %v2114 = vld [vmem:[%s1106 + $0x191] sm:$0xff]
        %v2115 = vld [vmem:[%s1106 + $0x1a9] sm:$0xff]
        %v2116 = vld [vmem:[%s1106 + $0x1b1] sm:$0xff]
        %v2117 = vld [vmem:[%s1106 + $0x1c9] sm:$0xff]
        %v2118 = vld [vmem:[%s1106 + $0x1d1] sm:$0xff]
        %v2119 = vld [vmem:[%s1106 + $0x1e9] sm:$0xff]
        %v2120 = vld [vmem:[%s1106 + $0x1f1] sm:$0xff]
        %v2121 = vld [vmem:[%s1106 + $0x249] sm:$0xff]
        %v2122 = vld [vmem:[%s1106 + $0x251] sm:$0xff]
        %v2123 = vld [vmem:[%s1106 + $0x269] sm:$0xff]
        %v2124 = vld [vmem:[%s1106 + $0x271] sm:$0xff]
        %v2125 = vld [vmem:[%s1106 + $0x289] sm:$0xff]
        %v2126 = vld [vmem:[%s1106 + $0x291] sm:$0xff]
        %v2127 = vld [vmem:[%s1106 + $0x2a9] sm:$0xff]
        %v2128 = vld [vmem:[%s1106 + $0x2b1] sm:$0xff]
        %v2129 = vld [vmem:[%s1106 + $0x2c9] sm:$0xff]
        %v2130 = vld [vmem:[%s1106 + $0x2d1] sm:$0xff]
        %v2131 = vld [vmem:[%s1106 + $0x2e9] sm:$0xff]
        %v2132 = vld [vmem:[%s1106 + $0x2f1] sm:$0xff]
        %v2133 = vld [vmem:[%s1106 + $0x309] sm:$0xff]
        %v2134 = vld [vmem:[%s1106 + $0x311] sm:$0xff]
        %v2135 = vld [vmem:[%s1106 + $0x329] sm:$0xff]
        %v2136 = vld [vmem:[%s1106 + $0x331] sm:$0xff]
        %v2137 = vld [vmem:[%s1106 + $0x349] sm:$0xff]
        %v2138 = vld [vmem:[%s1106 + $0x351] sm:$0xff]
        %v2139 = vld [vmem:[%s1106 + $0x369] sm:$0xff]
        %v2140 = vld [vmem:[%s1106 + $0x371] sm:$0xff]
        %v2141 = vld [vmem:[%s1106 + $0x389] sm:$0xff]
        %v2142 = vld [vmem:[%s1106 + $0x391] sm:$0xff]
        %v2143 = vld [vmem:[%s1106 + $0x3a9] sm:$0xff]
        %v2144 = vld [vmem:[%s1106 + $0x3b1] sm:$0xff]
        %v2145 = vld [vmem:[%s1106 + $0x3c9] sm:$0xff]
        %v2146 = vld [vmem:[%s1106 + $0x3d1] sm:$0xff]
        %v2147 = vld [vmem:[%s1106 + $0x3e9] sm:$0xff]
        %v2148 = vld [vmem:[%s1106 + $0x3f1] sm:$0xff]
        %v2149 = vld [vmem:[%s1106 + $0x409] sm:$0xff]
        %v2150 = vld [vmem:[%s1106 + $0x411] sm:$0xff]
        %v2151 = vld [vmem:[%s1106 + $0x429] sm:$0xff]
        %v2152 = vld [vmem:[%s1106 + $0x431] sm:$0xff]
        %v2153 = vlaneseq
        %v2154 = vshrl.u32 %v2153, 7
        %v2155 = vsub.s32 5, %v2154
        %v2156 = vrot.slane %v1171, %v2155
        %v2157 = vmul.f32 %v2089, %v2156
        %v2158 = vmul.f32 %v2090, %v2156
        %v2159 = vmul.f32 %v2091, %v2156
        %v2160 = vmul.f32 %v2092, %v2156
        %v2161 = vmul.f32 %v2093, %v2156
        %v2162 = vmul.f32 %v2094, %v2156
        %v2163 = vmul.f32 %v2095, %v2156
        %v2164 = vmul.f32 %v2096, %v2156
        %v2165 = vmul.f32 %v2097, %v2156
        %v2166 = vmul.f32 %v2098, %v2156
        %v2167 = vmul.f32 %v2099, %v2156
        %v2168 = vmul.f32 %v2100, %v2156
        %v2169 = vmul.f32 %v2101, %v2156
        %v2170 = vmul.f32 %v2102, %v2156
        %v2171 = vmul.f32 %v2103, %v2156
        %v2172 = vmul.f32 %v2104, %v2156
        %v2173 = vmul.f32 %v2105, %v2156
        %v2174 = vmul.f32 %v2106, %v2156
        %v2175 = vmul.f32 %v2107, %v2156
        %v2176 = vmul.f32 %v2108, %v2156
        %v2177 = vmul.f32 %v2109, %v2156
        %v2178 = vmul.f32 %v2110, %v2156
        %v2179 = vmul.f32 %v2111, %v2156
        %v2180 = vmul.f32 %v2112, %v2156
        %v2181 = vmul.f32 %v2113, %v2156
        %v2182 = vmul.f32 %v2114, %v2156
        %v2183 = vmul.f32 %v2115, %v2156
        %v2184 = vmul.f32 %v2116, %v2156
        %v2185 = vmul.f32 %v2117, %v2156
        %v2186 = vmul.f32 %v2118, %v2156
        %v2187 = vmul.f32 %v2119, %v2156
        %v2188 = vmul.f32 %v2120, %v2156
        %v2189 = vmul.f32 %v2121, %v2156
        %v2190 = vmul.f32 %v2122, %v2156
        %v2191 = vmul.f32 %v2123, %v2156
        %v2192 = vmul.f32 %v2124, %v2156
        %v2193 = vmul.f32 %v2125, %v2156
        %v2194 = vmul.f32 %v2126, %v2156
        %v2195 = vmul.f32 %v2127, %v2156
        %v2196 = vmul.f32 %v2128, %v2156
        %v2197 = vmul.f32 %v2129, %v2156
        %v2198 = vmul.f32 %v2130, %v2156
        %v2199 = vmul.f32 %v2131, %v2156
        %v2200 = vmul.f32 %v2132, %v2156
        %v2201 = vmul.f32 %v2133, %v2156
        %v2202 = vmul.f32 %v2134, %v2156
        %v2203 = vmul.f32 %v2135, %v2156
        %v2204 = vmul.f32 %v2136, %v2156
        %v2205 = vmul.f32 %v2137, %v2156
        %v2206 = vmul.f32 %v2138, %v2156
        %v2207 = vmul.f32 %v2139, %v2156
        %v2208 = vmul.f32 %v2140, %v2156
        %v2209 = vmul.f32 %v2141, %v2156
        %v2210 = vmul.f32 %v2142, %v2156
        %v2211 = vmul.f32 %v2143, %v2156
        %v2212 = vmul.f32 %v2144, %v2156
        %v2213 = vmul.f32 %v2145, %v2156
        %v2214 = vmul.f32 %v2146, %v2156
        %v2215 = vmul.f32 %v2147, %v2156
        %v2216 = vmul.f32 %v2148, %v2156
        %v2217 = vmul.f32 %v2149, %v2156
        %v2218 = vmul.f32 %v2150, %v2156
        %v2219 = vmul.f32 %v2151, %v2156
        %v2220 = vmul.f32 %v2152, %v2156
        %v2221 = vadd.f32 %v2025, %v2157
        %v2222 = vadd.f32 %v2026, %v2158
        %v2223 = vadd.f32 %v2027, %v2159
        %v2224 = vadd.f32 %v2028, %v2160
        %v2225 = vadd.f32 %v2029, %v2161
        %v2226 = vadd.f32 %v2030, %v2162
        %v2227 = vadd.f32 %v2031, %v2163
        %v2228 = vadd.f32 %v2032, %v2164
        %v2229 = vadd.f32 %v2033, %v2165
        %v2230 = vadd.f32 %v2034, %v2166
        %v2231 = vadd.f32 %v2035, %v2167
        %v2232 = vadd.f32 %v2036, %v2168
        %v2233 = vadd.f32 %v2037, %v2169
        %v2234 = vadd.f32 %v2038, %v2170
        %v2235 = vadd.f32 %v2039, %v2171
        %v2236 = vadd.f32 %v2040, %v2172
        %v2237 = vadd.f32 %v2041, %v2173
        %v2238 = vadd.f32 %v2042, %v2174
        %v2239 = vadd.f32 %v2043, %v2175
        %v2240 = vadd.f32 %v2044, %v2176
        %v2241 = vadd.f32 %v2045, %v2177
        %v2242 = vadd.f32 %v2046, %v2178
        %v2243 = vadd.f32 %v2047, %v2179
        %v2244 = vadd.f32 %v2048, %v2180
        %v2245 = vadd.f32 %v2049, %v2181
        %v2246 = vadd.f32 %v2050, %v2182
        %v2247 = vadd.f32 %v2051, %v2183
        %v2248 = vadd.f32 %v2052, %v2184
        %v2249 = vadd.f32 %v2053, %v2185
        %v2250 = vadd.f32 %v2054, %v2186
        %v2251 = vadd.f32 %v2055, %v2187
        %v2252 = vadd.f32 %v2056, %v2188
        %v2253 = vadd.f32 %v2057, %v2189
        %v2254 = vadd.f32 %v2058, %v2190
        %v2255 = vadd.f32 %v2059, %v2191
        %v2256 = vadd.f32 %v2060, %v2192
        %v2257 = vadd.f32 %v2061, %v2193
        %v2258 = vadd.f32 %v2062, %v2194
        %v2259 = vadd.f32 %v2063, %v2195
        %v2260 = vadd.f32 %v2064, %v2196
        %v2261 = vadd.f32 %v2065, %v2197
        %v2262 = vadd.f32 %v2066, %v2198
        %v2263 = vadd.f32 %v2067, %v2199
        %v2264 = vadd.f32 %v2068, %v2200
        %v2265 = vadd.f32 %v2069, %v2201
        %v2266 = vadd.f32 %v2070, %v2202
        %v2267 = vadd.f32 %v2071, %v2203
        %v2268 = vadd.f32 %v2072, %v2204
        %v2269 = vadd.f32 %v2073, %v2205
        %v2270 = vadd.f32 %v2074, %v2206
        %v2271 = vadd.f32 %v2075, %v2207
        %v2272 = vadd.f32 %v2076, %v2208
        %v2273 = vadd.f32 %v2077, %v2209
        %v2274 = vadd.f32 %v2078, %v2210
        %v2275 = vadd.f32 %v2079, %v2211
        %v2276 = vadd.f32 %v2080, %v2212
        %v2277 = vadd.f32 %v2081, %v2213
        %v2278 = vadd.f32 %v2082, %v2214
        %v2279 = vadd.f32 %v2083, %v2215
        %v2280 = vadd.f32 %v2084, %v2216
        %v2281 = vadd.f32 %v2085, %v2217
        %v2282 = vadd.f32 %v2086, %v2218
        %v2283 = vadd.f32 %v2087, %v2219
        %v2284 = vadd.f32 %v2088, %v2220
        %s2285 = scalar_lea.vmem [#allocation2], 64
        %v2286 = vld [vmem:[%s2285 + $0x7] sm:$0xff]
        %v2287 = vld [vmem:[%s2285 + $0xf] sm:$0xff]
        %v2288 = vld [vmem:[%s2285 + $0x27] sm:$0xff]
        %v2289 = vld [vmem:[%s2285 + $0x2f] sm:$0xff]
        %v2290 = vld [vmem:[%s2285 + $0x47] sm:$0xff]
        %v2291 = vld [vmem:[%s2285 + $0x4f] sm:$0xff]
        %v2292 = vld [vmem:[%s2285 + $0x67] sm:$0xff]
        %v2293 = vld [vmem:[%s2285 + $0x6f] sm:$0xff]
        %v2294 = vld [vmem:[%s2285 + $0x87] sm:$0xff]
        %v2295 = vld [vmem:[%s2285 + $0x8f] sm:$0xff]
        %v2296 = vld [vmem:[%s2285 + $0xa7] sm:$0xff]
        %v2297 = vld [vmem:[%s2285 + $0xaf] sm:$0xff]
        %v2298 = vld [vmem:[%s2285 + $0xc7] sm:$0xff]
        %v2299 = vld [vmem:[%s2285 + $0xcf] sm:$0xff]
        %v2300 = vld [vmem:[%s2285 + $0xe7] sm:$0xff]
        %v2301 = vld [vmem:[%s2285 + $0xef] sm:$0xff]
        %v2302 = vld [vmem:[%s2285 + $0x107] sm:$0xff]
        %v2303 = vld [vmem:[%s2285 + $0x10f] sm:$0xff]
        %v2304 = vld [vmem:[%s2285 + $0x127] sm:$0xff]
        %v2305 = vld [vmem:[%s2285 + $0x12f] sm:$0xff]
        %v2306 = vld [vmem:[%s2285 + $0x147] sm:$0xff]
        %v2307 = vld [vmem:[%s2285 + $0x14f] sm:$0xff]
        %v2308 = vld [vmem:[%s2285 + $0x167] sm:$0xff]
        %v2309 = vld [vmem:[%s2285 + $0x16f] sm:$0xff]
        %v2310 = vld [vmem:[%s2285 + $0x187] sm:$0xff]
        %v2311 = vld [vmem:[%s2285 + $0x18f] sm:$0xff]
        %v2312 = vld [vmem:[%s2285 + $0x1a7] sm:$0xff]
        %v2313 = vld [vmem:[%s2285 + $0x1af] sm:$0xff]
        %v2314 = vld [vmem:[%s2285 + $0x1c7] sm:$0xff]
        %v2315 = vld [vmem:[%s2285 + $0x1cf] sm:$0xff]
        %v2316 = vld [vmem:[%s2285 + $0x1e7] sm:$0xff]
        %v2317 = vld [vmem:[%s2285 + $0x1ef] sm:$0xff]
        %v2318 = vld [vmem:[%s2285 + $0x247] sm:$0xff]
        %v2319 = vld [vmem:[%s2285 + $0x24f] sm:$0xff]
        %v2320 = vld [vmem:[%s2285 + $0x267] sm:$0xff]
        %v2321 = vld [vmem:[%s2285 + $0x26f] sm:$0xff]
        %v2322 = vld [vmem:[%s2285 + $0x287] sm:$0xff]
        %v2323 = vld [vmem:[%s2285 + $0x28f] sm:$0xff]
        %v2324 = vld [vmem:[%s2285 + $0x2a7] sm:$0xff]
        %v2325 = vld [vmem:[%s2285 + $0x2af] sm:$0xff]
        %v2326 = vld [vmem:[%s2285 + $0x2c7] sm:$0xff]
        %v2327 = vld [vmem:[%s2285 + $0x2cf] sm:$0xff]
        %v2328 = vld [vmem:[%s2285 + $0x2e7] sm:$0xff]
        %v2329 = vld [vmem:[%s2285 + $0x2ef] sm:$0xff]
        %v2330 = vld [vmem:[%s2285 + $0x307] sm:$0xff]
        %v2331 = vld [vmem:[%s2285 + $0x30f] sm:$0xff]
        %v2332 = vld [vmem:[%s2285 + $0x327] sm:$0xff]
        %v2333 = vld [vmem:[%s2285 + $0x32f] sm:$0xff]
        %v2334 = vld [vmem:[%s2285 + $0x347] sm:$0xff]
        %v2335 = vld [vmem:[%s2285 + $0x34f] sm:$0xff]
        %v2336 = vld [vmem:[%s2285 + $0x367] sm:$0xff]
        %v2337 = vld [vmem:[%s2285 + $0x36f] sm:$0xff]
        %v2338 = vld [vmem:[%s2285 + $0x387] sm:$0xff]
        %v2339 = vld [vmem:[%s2285 + $0x38f] sm:$0xff]
        %v2340 = vld [vmem:[%s2285 + $0x3a7] sm:$0xff]
        %v2341 = vld [vmem:[%s2285 + $0x3af] sm:$0xff]
        %v2342 = vld [vmem:[%s2285 + $0x3c7] sm:$0xff]
        %v2343 = vld [vmem:[%s2285 + $0x3cf] sm:$0xff]
        %v2344 = vld [vmem:[%s2285 + $0x3e7] sm:$0xff]
        %v2345 = vld [vmem:[%s2285 + $0x3ef] sm:$0xff]
        %v2346 = vld [vmem:[%s2285 + $0x407] sm:$0xff]
        %v2347 = vld [vmem:[%s2285 + $0x40f] sm:$0xff]
        %v2348 = vld [vmem:[%s2285 + $0x427] sm:$0xff]
        %v2349 = vld [vmem:[%s2285 + $0x42f] sm:$0xff]
        %v2350 = vlaneseq
        %v2351 = vshrl.u32 %v2350, 7
        %v2352 = vsub.s32 6, %v2351
        %v2353 = vrot.slane %v1171, %v2352
        %v2354 = vmul.f32 %v2286, %v2353
        %v2355 = vmul.f32 %v2287, %v2353
        %v2356 = vmul.f32 %v2288, %v2353
        %v2357 = vmul.f32 %v2289, %v2353
        %v2358 = vmul.f32 %v2290, %v2353
        %v2359 = vmul.f32 %v2291, %v2353
        %v2360 = vmul.f32 %v2292, %v2353
        %v2361 = vmul.f32 %v2293, %v2353
        %v2362 = vmul.f32 %v2294, %v2353
        %v2363 = vmul.f32 %v2295, %v2353
        %v2364 = vmul.f32 %v2296, %v2353
        %v2365 = vmul.f32 %v2297, %v2353
        %v2366 = vmul.f32 %v2298, %v2353
        %v2367 = vmul.f32 %v2299, %v2353
        %v2368 = vmul.f32 %v2300, %v2353
        %v2369 = vmul.f32 %v2301, %v2353
        %v2370 = vmul.f32 %v2302, %v2353
        %v2371 = vmul.f32 %v2303, %v2353
        %v2372 = vmul.f32 %v2304, %v2353
        %v2373 = vmul.f32 %v2305, %v2353
        %v2374 = vmul.f32 %v2306, %v2353
        %v2375 = vmul.f32 %v2307, %v2353
        %v2376 = vmul.f32 %v2308, %v2353
        %v2377 = vmul.f32 %v2309, %v2353
        %v2378 = vmul.f32 %v2310, %v2353
        %v2379 = vmul.f32 %v2311, %v2353
        %v2380 = vmul.f32 %v2312, %v2353
        %v2381 = vmul.f32 %v2313, %v2353
        %v2382 = vmul.f32 %v2314, %v2353
        %v2383 = vmul.f32 %v2315, %v2353
        %v2384 = vmul.f32 %v2316, %v2353
        %v2385 = vmul.f32 %v2317, %v2353
        %v2386 = vmul.f32 %v2318, %v2353
        %v2387 = vmul.f32 %v2319, %v2353
        %v2388 = vmul.f32 %v2320, %v2353
        %v2389 = vmul.f32 %v2321, %v2353
        %v2390 = vmul.f32 %v2322, %v2353
        %v2391 = vmul.f32 %v2323, %v2353
        %v2392 = vmul.f32 %v2324, %v2353
        %v2393 = vmul.f32 %v2325, %v2353
        %v2394 = vmul.f32 %v2326, %v2353
        %v2395 = vmul.f32 %v2327, %v2353
        %v2396 = vmul.f32 %v2328, %v2353
        %v2397 = vmul.f32 %v2329, %v2353
        %v2398 = vmul.f32 %v2330, %v2353
        %v2399 = vmul.f32 %v2331, %v2353
        %v2400 = vmul.f32 %v2332, %v2353
        %v2401 = vmul.f32 %v2333, %v2353
        %v2402 = vmul.f32 %v2334, %v2353
        %v2403 = vmul.f32 %v2335, %v2353
        %v2404 = vmul.f32 %v2336, %v2353
        %v2405 = vmul.f32 %v2337, %v2353
        %v2406 = vmul.f32 %v2338, %v2353
        %v2407 = vmul.f32 %v2339, %v2353
        %v2408 = vmul.f32 %v2340, %v2353
        %v2409 = vmul.f32 %v2341, %v2353
        %v2410 = vmul.f32 %v2342, %v2353
        %v2411 = vmul.f32 %v2343, %v2353
        %v2412 = vmul.f32 %v2344, %v2353
        %v2413 = vmul.f32 %v2345, %v2353
        %v2414 = vmul.f32 %v2346, %v2353
        %v2415 = vmul.f32 %v2347, %v2353
        %v2416 = vmul.f32 %v2348, %v2353
        %v2417 = vmul.f32 %v2349, %v2353
        %v2418 = vadd.f32 %v2221, %v2354
        %v2419 = vadd.f32 %v2222, %v2355
        %v2420 = vadd.f32 %v2223, %v2356
        %v2421 = vadd.f32 %v2224, %v2357
        %v2422 = vadd.f32 %v2225, %v2358
        %v2423 = vadd.f32 %v2226, %v2359
        %v2424 = vadd.f32 %v2227, %v2360
        %v2425 = vadd.f32 %v2228, %v2361
        %v2426 = vadd.f32 %v2229, %v2362
        %v2427 = vadd.f32 %v2230, %v2363
        %v2428 = vadd.f32 %v2231, %v2364
        %v2429 = vadd.f32 %v2232, %v2365
        %v2430 = vadd.f32 %v2233, %v2366
        %v2431 = vadd.f32 %v2234, %v2367
        %v2432 = vadd.f32 %v2235, %v2368
        %v2433 = vadd.f32 %v2236, %v2369
        %v2434 = vadd.f32 %v2237, %v2370
        %v2435 = vadd.f32 %v2238, %v2371
        %v2436 = vadd.f32 %v2239, %v2372
        %v2437 = vadd.f32 %v2240, %v2373
        %v2438 = vadd.f32 %v2241, %v2374
        %v2439 = vadd.f32 %v2242, %v2375
        %v2440 = vadd.f32 %v2243, %v2376
        %v2441 = vadd.f32 %v2244, %v2377
        %v2442 = vadd.f32 %v2245, %v2378
        %v2443 = vadd.f32 %v2246, %v2379
        %v2444 = vadd.f32 %v2247, %v2380
        %v2445 = vadd.f32 %v2248, %v2381
        %v2446 = vadd.f32 %v2249, %v2382
        %v2447 = vadd.f32 %v2250, %v2383
        %v2448 = vadd.f32 %v2251, %v2384
        %v2449 = vadd.f32 %v2252, %v2385
        %v2450 = vadd.f32 %v2253, %v2386
        %v2451 = vadd.f32 %v2254, %v2387
        %v2452 = vadd.f32 %v2255, %v2388
        %v2453 = vadd.f32 %v2256, %v2389
        %v2454 = vadd.f32 %v2257, %v2390
        %v2455 = vadd.f32 %v2258, %v2391
        %v2456 = vadd.f32 %v2259, %v2392
        %v2457 = vadd.f32 %v2260, %v2393
        %v2458 = vadd.f32 %v2261, %v2394
        %v2459 = vadd.f32 %v2262, %v2395
        %v2460 = vadd.f32 %v2263, %v2396
        %v2461 = vadd.f32 %v2264, %v2397
        %v2462 = vadd.f32 %v2265, %v2398
        %v2463 = vadd.f32 %v2266, %v2399
        %v2464 = vadd.f32 %v2267, %v2400
        %v2465 = vadd.f32 %v2268, %v2401
        %v2466 = vadd.f32 %v2269, %v2402
        %v2467 = vadd.f32 %v2270, %v2403
        %v2468 = vadd.f32 %v2271, %v2404
        %v2469 = vadd.f32 %v2272, %v2405
        %v2470 = vadd.f32 %v2273, %v2406
        %v2471 = vadd.f32 %v2274, %v2407
        %v2472 = vadd.f32 %v2275, %v2408
        %v2473 = vadd.f32 %v2276, %v2409
        %v2474 = vadd.f32 %v2277, %v2410
        %v2475 = vadd.f32 %v2278, %v2411
        %v2476 = vadd.f32 %v2279, %v2412
        %v2477 = vadd.f32 %v2280, %v2413
        %v2478 = vadd.f32 %v2281, %v2414
        %v2479 = vadd.f32 %v2282, %v2415
        %v2480 = vadd.f32 %v2283, %v2416
        %v2481 = vadd.f32 %v2284, %v2417
        %v2482 = vld [vmem:[%s2285 + $0x8] sm:$0xff]
        %v2483 = vld [vmem:[%s2285 + $0x10] sm:$0xff]
        %v2484 = vld [vmem:[%s2285 + $0x28] sm:$0xff]
        %v2485 = vld [vmem:[%s2285 + $0x30] sm:$0xff]
        %v2486 = vld [vmem:[%s2285 + $0x48] sm:$0xff]
        %v2487 = vld [vmem:[%s2285 + $0x50] sm:$0xff]
        %v2488 = vld [vmem:[%s2285 + $0x68] sm:$0xff]
        %v2489 = vld [vmem:[%s2285 + $0x70] sm:$0xff]
        %v2490 = vld [vmem:[%s2285 + $0x88] sm:$0xff]
        %v2491 = vld [vmem:[%s2285 + $0x90] sm:$0xff]
        %v2492 = vld [vmem:[%s2285 + $0xa8] sm:$0xff]
        %v2493 = vld [vmem:[%s2285 + $0xb0] sm:$0xff]
        %v2494 = vld [vmem:[%s2285 + $0xc8] sm:$0xff]
        %v2495 = vld [vmem:[%s2285 + $0xd0] sm:$0xff]
        %v2496 = vld [vmem:[%s2285 + $0xe8] sm:$0xff]
        %v2497 = vld [vmem:[%s2285 + $0xf0] sm:$0xff]
        %v2498 = vld [vmem:[%s2285 + $0x108] sm:$0xff]
        %v2499 = vld [vmem:[%s2285 + $0x110] sm:$0xff]
        %v2500 = vld [vmem:[%s2285 + $0x128] sm:$0xff]
        %v2501 = vld [vmem:[%s2285 + $0x130] sm:$0xff]
        %v2502 = vld [vmem:[%s2285 + $0x148] sm:$0xff]
        %v2503 = vld [vmem:[%s2285 + $0x150] sm:$0xff]
        %v2504 = vld [vmem:[%s2285 + $0x168] sm:$0xff]
        %v2505 = vld [vmem:[%s2285 + $0x170] sm:$0xff]
        %v2506 = vld [vmem:[%s2285 + $0x188] sm:$0xff]
        %v2507 = vld [vmem:[%s2285 + $0x190] sm:$0xff]
        %v2508 = vld [vmem:[%s2285 + $0x1a8] sm:$0xff]
        %v2509 = vld [vmem:[%s2285 + $0x1b0] sm:$0xff]
        %v2510 = vld [vmem:[%s2285 + $0x1c8] sm:$0xff]
        %v2511 = vld [vmem:[%s2285 + $0x1d0] sm:$0xff]
        %v2512 = vld [vmem:[%s2285 + $0x1e8] sm:$0xff]
        %v2513 = vld [vmem:[%s2285 + $0x1f0] sm:$0xff]
        %v2514 = vld [vmem:[%s2285 + $0x248] sm:$0xff]
        %v2515 = vld [vmem:[%s2285 + $0x250] sm:$0xff]
        %v2516 = vld [vmem:[%s2285 + $0x268] sm:$0xff]
        %v2517 = vld [vmem:[%s2285 + $0x270] sm:$0xff]
        %v2518 = vld [vmem:[%s2285 + $0x288] sm:$0xff]
        %v2519 = vld [vmem:[%s2285 + $0x290] sm:$0xff]
        %v2520 = vld [vmem:[%s2285 + $0x2a8] sm:$0xff]
        %v2521 = vld [vmem:[%s2285 + $0x2b0] sm:$0xff]
        %v2522 = vld [vmem:[%s2285 + $0x2c8] sm:$0xff]
        %v2523 = vld [vmem:[%s2285 + $0x2d0] sm:$0xff]
        %v2524 = vld [vmem:[%s2285 + $0x2e8] sm:$0xff]
        %v2525 = vld [vmem:[%s2285 + $0x2f0] sm:$0xff]
        %v2526 = vld [vmem:[%s2285 + $0x308] sm:$0xff]
        %v2527 = vld [vmem:[%s2285 + $0x310] sm:$0xff]
        %v2528 = vld [vmem:[%s2285 + $0x328] sm:$0xff]
        %v2529 = vld [vmem:[%s2285 + $0x330] sm:$0xff]
        %v2530 = vld [vmem:[%s2285 + $0x348] sm:$0xff]
        %v2531 = vld [vmem:[%s2285 + $0x350] sm:$0xff]
        %v2532 = vld [vmem:[%s2285 + $0x368] sm:$0xff]
        %v2533 = vld [vmem:[%s2285 + $0x370] sm:$0xff]
        %v2534 = vld [vmem:[%s2285 + $0x388] sm:$0xff]
        %v2535 = vld [vmem:[%s2285 + $0x390] sm:$0xff]
        %v2536 = vld [vmem:[%s2285 + $0x3a8] sm:$0xff]
        %v2537 = vld [vmem:[%s2285 + $0x3b0] sm:$0xff]
        %v2538 = vld [vmem:[%s2285 + $0x3c8] sm:$0xff]
        %v2539 = vld [vmem:[%s2285 + $0x3d0] sm:$0xff]
        %v2540 = vld [vmem:[%s2285 + $0x3e8] sm:$0xff]
        %v2541 = vld [vmem:[%s2285 + $0x3f0] sm:$0xff]
        %v2542 = vld [vmem:[%s2285 + $0x408] sm:$0xff]
        %v2543 = vld [vmem:[%s2285 + $0x410] sm:$0xff]
        %v2544 = vld [vmem:[%s2285 + $0x428] sm:$0xff]
        %v2545 = vld [vmem:[%s2285 + $0x430] sm:$0xff]
        %v2546 = vlaneseq
        %v2547 = vshrl.u32 %v2546, 7
        %v2548 = vsub.s32 7, %v2547
        %v2549 = vrot.slane %v1171, %v2548
        %v2550 = vmul.f32 %v2482, %v2549
        %v2551 = vmul.f32 %v2483, %v2549
        %v2552 = vmul.f32 %v2484, %v2549
        %v2553 = vmul.f32 %v2485, %v2549
        %v2554 = vmul.f32 %v2486, %v2549
        %v2555 = vmul.f32 %v2487, %v2549
        %v2556 = vmul.f32 %v2488, %v2549
        %v2557 = vmul.f32 %v2489, %v2549
        %v2558 = vmul.f32 %v2490, %v2549
        %v2559 = vmul.f32 %v2491, %v2549
        %v2560 = vmul.f32 %v2492, %v2549
        %v2561 = vmul.f32 %v2493, %v2549
        %v2562 = vmul.f32 %v2494, %v2549
        %v2563 = vmul.f32 %v2495, %v2549
        %v2564 = vmul.f32 %v2496, %v2549
        %v2565 = vmul.f32 %v2497, %v2549
        %v2566 = vmul.f32 %v2498, %v2549
        %v2567 = vmul.f32 %v2499, %v2549
        %v2568 = vmul.f32 %v2500, %v2549
        %v2569 = vmul.f32 %v2501, %v2549
        %v2570 = vmul.f32 %v2502, %v2549
        %v2571 = vmul.f32 %v2503, %v2549
        %v2572 = vmul.f32 %v2504, %v2549
        %v2573 = vmul.f32 %v2505, %v2549
        %v2574 = vmul.f32 %v2506, %v2549
        %v2575 = vmul.f32 %v2507, %v2549
        %v2576 = vmul.f32 %v2508, %v2549
        %v2577 = vmul.f32 %v2509, %v2549
        %v2578 = vmul.f32 %v2510, %v2549
        %v2579 = vmul.f32 %v2511, %v2549
        %v2580 = vmul.f32 %v2512, %v2549
        %v2581 = vmul.f32 %v2513, %v2549
        %v2582 = vmul.f32 %v2514, %v2549
        %v2583 = vmul.f32 %v2515, %v2549
        %v2584 = vmul.f32 %v2516, %v2549
        %v2585 = vmul.f32 %v2517, %v2549
        %v2586 = vmul.f32 %v2518, %v2549
        %v2587 = vmul.f32 %v2519, %v2549
        %v2588 = vmul.f32 %v2520, %v2549
        %v2589 = vmul.f32 %v2521, %v2549
        %v2590 = vmul.f32 %v2522, %v2549
        %v2591 = vmul.f32 %v2523, %v2549
        %v2592 = vmul.f32 %v2524, %v2549
        %v2593 = vmul.f32 %v2525, %v2549
        %v2594 = vmul.f32 %v2526, %v2549
        %v2595 = vmul.f32 %v2527, %v2549
        %v2596 = vmul.f32 %v2528, %v2549
        %v2597 = vmul.f32 %v2529, %v2549
        %v2598 = vmul.f32 %v2530, %v2549
        %v2599 = vmul.f32 %v2531, %v2549
        %v2600 = vmul.f32 %v2532, %v2549
        %v2601 = vmul.f32 %v2533, %v2549
        %v2602 = vmul.f32 %v2534, %v2549
        %v2603 = vmul.f32 %v2535, %v2549
        %v2604 = vmul.f32 %v2536, %v2549
        %v2605 = vmul.f32 %v2537, %v2549
        %v2606 = vmul.f32 %v2538, %v2549
        %v2607 = vmul.f32 %v2539, %v2549
        %v2608 = vmul.f32 %v2540, %v2549
        %v2609 = vmul.f32 %v2541, %v2549
        %v2610 = vmul.f32 %v2542, %v2549
        %v2611 = vmul.f32 %v2543, %v2549
        %v2612 = vmul.f32 %v2544, %v2549
        %v2613 = vmul.f32 %v2545, %v2549
        %v2614 = vadd.f32 %v2418, %v2550
        %v2615 = vadd.f32 %v2419, %v2551
        %v2616 = vadd.f32 %v2420, %v2552
        %v2617 = vadd.f32 %v2421, %v2553
        %v2618 = vadd.f32 %v2422, %v2554
        %v2619 = vadd.f32 %v2423, %v2555
        %v2620 = vadd.f32 %v2424, %v2556
        %v2621 = vadd.f32 %v2425, %v2557
        %v2622 = vadd.f32 %v2426, %v2558
        %v2623 = vadd.f32 %v2427, %v2559
        %v2624 = vadd.f32 %v2428, %v2560
        %v2625 = vadd.f32 %v2429, %v2561
        %v2626 = vadd.f32 %v2430, %v2562
        %v2627 = vadd.f32 %v2431, %v2563
        %v2628 = vadd.f32 %v2432, %v2564
        %v2629 = vadd.f32 %v2433, %v2565
        %v2630 = vadd.f32 %v2434, %v2566
        %v2631 = vadd.f32 %v2435, %v2567
        %v2632 = vadd.f32 %v2436, %v2568
        %v2633 = vadd.f32 %v2437, %v2569
        %v2634 = vadd.f32 %v2438, %v2570
        %v2635 = vadd.f32 %v2439, %v2571
        %v2636 = vadd.f32 %v2440, %v2572
        %v2637 = vadd.f32 %v2441, %v2573
        %v2638 = vadd.f32 %v2442, %v2574
        %v2639 = vadd.f32 %v2443, %v2575
        %v2640 = vadd.f32 %v2444, %v2576
        %v2641 = vadd.f32 %v2445, %v2577
        %v2642 = vadd.f32 %v2446, %v2578
        %v2643 = vadd.f32 %v2447, %v2579
        %v2644 = vadd.f32 %v2448, %v2580
        %v2645 = vadd.f32 %v2449, %v2581
        %v2646 = vadd.f32 %v2450, %v2582
        %v2647 = vadd.f32 %v2451, %v2583
        %v2648 = vadd.f32 %v2452, %v2584
        %v2649 = vadd.f32 %v2453, %v2585
        %v2650 = vadd.f32 %v2454, %v2586
        %v2651 = vadd.f32 %v2455, %v2587
        %v2652 = vadd.f32 %v2456, %v2588
        %v2653 = vadd.f32 %v2457, %v2589
        %v2654 = vadd.f32 %v2458, %v2590
        %v2655 = vadd.f32 %v2459, %v2591
        %v2656 = vadd.f32 %v2460, %v2592
        %v2657 = vadd.f32 %v2461, %v2593
        %v2658 = vadd.f32 %v2462, %v2594
        %v2659 = vadd.f32 %v2463, %v2595
        %v2660 = vadd.f32 %v2464, %v2596
        %v2661 = vadd.f32 %v2465, %v2597
        %v2662 = vadd.f32 %v2466, %v2598
        %v2663 = vadd.f32 %v2467, %v2599
        %v2664 = vadd.f32 %v2468, %v2600
        %v2665 = vadd.f32 %v2469, %v2601
        %v2666 = vadd.f32 %v2470, %v2602
        %v2667 = vadd.f32 %v2471, %v2603
        %v2668 = vadd.f32 %v2472, %v2604
        %v2669 = vadd.f32 %v2473, %v2605
        %v2670 = vadd.f32 %v2474, %v2606
        %v2671 = vadd.f32 %v2475, %v2607
        %v2672 = vadd.f32 %v2476, %v2608
        %v2673 = vadd.f32 %v2477, %v2609
        %v2674 = vadd.f32 %v2478, %v2610
        %v2675 = vadd.f32 %v2479, %v2611
        %v2676 = vadd.f32 %v2480, %v2612
        %v2677 = vadd.f32 %v2481, %v2613
        %v2678 = vld [vmem:[%s2285 + $0x9] sm:$0xff]
        %v2679 = vld [vmem:[%s2285 + $0x11] sm:$0xff]
        %v2680 = vld [vmem:[%s2285 + $0x29] sm:$0xff]
        %v2681 = vld [vmem:[%s2285 + $0x31] sm:$0xff]
        %v2682 = vld [vmem:[%s2285 + $0x49] sm:$0xff]
        %v2683 = vld [vmem:[%s2285 + $0x51] sm:$0xff]
        %v2684 = vld [vmem:[%s2285 + $0x69] sm:$0xff]
        %v2685 = vld [vmem:[%s2285 + $0x71] sm:$0xff]
        %v2686 = vld [vmem:[%s2285 + $0x89] sm:$0xff]
        %v2687 = vld [vmem:[%s2285 + $0x91] sm:$0xff]
        %v2688 = vld [vmem:[%s2285 + $0xa9] sm:$0xff]
        %v2689 = vld [vmem:[%s2285 + $0xb1] sm:$0xff]
        %v2690 = vld [vmem:[%s2285 + $0xc9] sm:$0xff]
        %v2691 = vld [vmem:[%s2285 + $0xd1] sm:$0xff]
        %v2692 = vld [vmem:[%s2285 + $0xe9] sm:$0xff]
        %v2693 = vld [vmem:[%s2285 + $0xf1] sm:$0xff]
        %v2694 = vld [vmem:[%s2285 + $0x109] sm:$0xff]
        %v2695 = vld [vmem:[%s2285 + $0x111] sm:$0xff]
        %v2696 = vld [vmem:[%s2285 + $0x129] sm:$0xff]
        %v2697 = vld [vmem:[%s2285 + $0x131] sm:$0xff]
        %v2698 = vld [vmem:[%s2285 + $0x149] sm:$0xff]
        %v2699 = vld [vmem:[%s2285 + $0x151] sm:$0xff]
        %v2700 = vld [vmem:[%s2285 + $0x169] sm:$0xff]
        %v2701 = vld [vmem:[%s2285 + $0x171] sm:$0xff]
        %v2702 = vld [vmem:[%s2285 + $0x189] sm:$0xff]
        %v2703 = vld [vmem:[%s2285 + $0x191] sm:$0xff]
        %v2704 = vld [vmem:[%s2285 + $0x1a9] sm:$0xff]
        %v2705 = vld [vmem:[%s2285 + $0x1b1] sm:$0xff]
        %v2706 = vld [vmem:[%s2285 + $0x1c9] sm:$0xff]
        %v2707 = vld [vmem:[%s2285 + $0x1d1] sm:$0xff]
        %v2708 = vld [vmem:[%s2285 + $0x1e9] sm:$0xff]
        %v2709 = vld [vmem:[%s2285 + $0x1f1] sm:$0xff]
        %v2710 = vld [vmem:[%s2285 + $0x249] sm:$0xff]
        %v2711 = vld [vmem:[%s2285 + $0x251] sm:$0xff]
        %v2712 = vld [vmem:[%s2285 + $0x269] sm:$0xff]
        %v2713 = vld [vmem:[%s2285 + $0x271] sm:$0xff]
        %v2714 = vld [vmem:[%s2285 + $0x289] sm:$0xff]
        %v2715 = vld [vmem:[%s2285 + $0x291] sm:$0xff]
        %v2716 = vld [vmem:[%s2285 + $0x2a9] sm:$0xff]
        %v2717 = vld [vmem:[%s2285 + $0x2b1] sm:$0xff]
        %v2718 = vld [vmem:[%s2285 + $0x2c9] sm:$0xff]
        %v2719 = vld [vmem:[%s2285 + $0x2d1] sm:$0xff]
        %v2720 = vld [vmem:[%s2285 + $0x2e9] sm:$0xff]
        %v2721 = vld [vmem:[%s2285 + $0x2f1] sm:$0xff]
        %v2722 = vld [vmem:[%s2285 + $0x309] sm:$0xff]
        %v2723 = vld [vmem:[%s2285 + $0x311] sm:$0xff]
        %v2724 = vld [vmem:[%s2285 + $0x329] sm:$0xff]
        %v2725 = vld [vmem:[%s2285 + $0x331] sm:$0xff]
        %v2726 = vld [vmem:[%s2285 + $0x349] sm:$0xff]
        %v2727 = vld [vmem:[%s2285 + $0x351] sm:$0xff]
        %v2728 = vld [vmem:[%s2285 + $0x369] sm:$0xff]
        %v2729 = vld [vmem:[%s2285 + $0x371] sm:$0xff]
        %v2730 = vld [vmem:[%s2285 + $0x389] sm:$0xff]
        %v2731 = vld [vmem:[%s2285 + $0x391] sm:$0xff]
        %v2732 = vld [vmem:[%s2285 + $0x3a9] sm:$0xff]
        %v2733 = vld [vmem:[%s2285 + $0x3b1] sm:$0xff]
        %v2734 = vld [vmem:[%s2285 + $0x3c9] sm:$0xff]
        %v2735 = vld [vmem:[%s2285 + $0x3d1] sm:$0xff]
        %v2736 = vld [vmem:[%s2285 + $0x3e9] sm:$0xff]
        %v2737 = vld [vmem:[%s2285 + $0x3f1] sm:$0xff]
        %v2738 = vld [vmem:[%s2285 + $0x409] sm:$0xff]
        %v2739 = vld [vmem:[%s2285 + $0x411] sm:$0xff]
        %v2740 = vld [vmem:[%s2285 + $0x429] sm:$0xff]
        %v2741 = vld [vmem:[%s2285 + $0x431] sm:$0xff]
        %v2742 = vlaneseq
        %v2743 = vshrl.u32 %v2742, 7
        %v2744 = vsub.s32 0, %v2743
        %v2745 = vrot.slane %v1172, %v2744
        %v2746 = vmul.f32 %v2678, %v2745
        %v2747 = vmul.f32 %v2679, %v2745
        %v2748 = vmul.f32 %v2680, %v2745
        %v2749 = vmul.f32 %v2681, %v2745
        %v2750 = vmul.f32 %v2682, %v2745
        %v2751 = vmul.f32 %v2683, %v2745
        %v2752 = vmul.f32 %v2684, %v2745
        %v2753 = vmul.f32 %v2685, %v2745
        %v2754 = vmul.f32 %v2686, %v2745
        %v2755 = vmul.f32 %v2687, %v2745
        %v2756 = vmul.f32 %v2688, %v2745
        %v2757 = vmul.f32 %v2689, %v2745
        %v2758 = vmul.f32 %v2690, %v2745
        %v2759 = vmul.f32 %v2691, %v2745
        %v2760 = vmul.f32 %v2692, %v2745
        %v2761 = vmul.f32 %v2693, %v2745
        %v2762 = vmul.f32 %v2694, %v2745
        %v2763 = vmul.f32 %v2695, %v2745
        %v2764 = vmul.f32 %v2696, %v2745
        %v2765 = vmul.f32 %v2697, %v2745
        %v2766 = vmul.f32 %v2698, %v2745
        %v2767 = vmul.f32 %v2699, %v2745
        %v2768 = vmul.f32 %v2700, %v2745
        %v2769 = vmul.f32 %v2701, %v2745
        %v2770 = vmul.f32 %v2702, %v2745
        %v2771 = vmul.f32 %v2703, %v2745
        %v2772 = vmul.f32 %v2704, %v2745
        %v2773 = vmul.f32 %v2705, %v2745
        %v2774 = vmul.f32 %v2706, %v2745
        %v2775 = vmul.f32 %v2707, %v2745
        %v2776 = vmul.f32 %v2708, %v2745
        %v2777 = vmul.f32 %v2709, %v2745
        %v2778 = vmul.f32 %v2710, %v2745
        %v2779 = vmul.f32 %v2711, %v2745
        %v2780 = vmul.f32 %v2712, %v2745
        %v2781 = vmul.f32 %v2713, %v2745
        %v2782 = vmul.f32 %v2714, %v2745
        %v2783 = vmul.f32 %v2715, %v2745
        %v2784 = vmul.f32 %v2716, %v2745
        %v2785 = vmul.f32 %v2717, %v2745
        %v2786 = vmul.f32 %v2718, %v2745
        %v2787 = vmul.f32 %v2719, %v2745
        %v2788 = vmul.f32 %v2720, %v2745
        %v2789 = vmul.f32 %v2721, %v2745
        %v2790 = vmul.f32 %v2722, %v2745
        %v2791 = vmul.f32 %v2723, %v2745
        %v2792 = vmul.f32 %v2724, %v2745
        %v2793 = vmul.f32 %v2725, %v2745
        %v2794 = vmul.f32 %v2726, %v2745
        %v2795 = vmul.f32 %v2727, %v2745
        %v2796 = vmul.f32 %v2728, %v2745
        %v2797 = vmul.f32 %v2729, %v2745
        %v2798 = vmul.f32 %v2730, %v2745
        %v2799 = vmul.f32 %v2731, %v2745
        %v2800 = vmul.f32 %v2732, %v2745
        %v2801 = vmul.f32 %v2733, %v2745
        %v2802 = vmul.f32 %v2734, %v2745
        %v2803 = vmul.f32 %v2735, %v2745
        %v2804 = vmul.f32 %v2736, %v2745
        %v2805 = vmul.f32 %v2737, %v2745
        %v2806 = vmul.f32 %v2738, %v2745
        %v2807 = vmul.f32 %v2739, %v2745
        %v2808 = vmul.f32 %v2740, %v2745
        %v2809 = vmul.f32 %v2741, %v2745
        %v2810 = vadd.f32 %v2614, %v2746
        %v2811 = vadd.f32 %v2615, %v2747
        %v2812 = vadd.f32 %v2616, %v2748
        %v2813 = vadd.f32 %v2617, %v2749
        %v2814 = vadd.f32 %v2618, %v2750
        %v2815 = vadd.f32 %v2619, %v2751
        %v2816 = vadd.f32 %v2620, %v2752
        %v2817 = vadd.f32 %v2621, %v2753
        %v2818 = vadd.f32 %v2622, %v2754
        %v2819 = vadd.f32 %v2623, %v2755
        %v2820 = vadd.f32 %v2624, %v2756
        %v2821 = vadd.f32 %v2625, %v2757
        %v2822 = vadd.f32 %v2626, %v2758
        %v2823 = vadd.f32 %v2627, %v2759
        %v2824 = vadd.f32 %v2628, %v2760
        %v2825 = vadd.f32 %v2629, %v2761
        %v2826 = vadd.f32 %v2630, %v2762
        %v2827 = vadd.f32 %v2631, %v2763
        %v2828 = vadd.f32 %v2632, %v2764
        %v2829 = vadd.f32 %v2633, %v2765
        %v2830 = vadd.f32 %v2634, %v2766
        %v2831 = vadd.f32 %v2635, %v2767
        %v2832 = vadd.f32 %v2636, %v2768
        %v2833 = vadd.f32 %v2637, %v2769
        %v2834 = vadd.f32 %v2638, %v2770
        %v2835 = vadd.f32 %v2639, %v2771
        %v2836 = vadd.f32 %v2640, %v2772
        %v2837 = vadd.f32 %v2641, %v2773
        %v2838 = vadd.f32 %v2642, %v2774
        %v2839 = vadd.f32 %v2643, %v2775
        %v2840 = vadd.f32 %v2644, %v2776
        %v2841 = vadd.f32 %v2645, %v2777
        %v2842 = vadd.f32 %v2646, %v2778
        %v2843 = vadd.f32 %v2647, %v2779
        %v2844 = vadd.f32 %v2648, %v2780
        %v2845 = vadd.f32 %v2649, %v2781
        %v2846 = vadd.f32 %v2650, %v2782
        %v2847 = vadd.f32 %v2651, %v2783
        %v2848 = vadd.f32 %v2652, %v2784
        %v2849 = vadd.f32 %v2653, %v2785
        %v2850 = vadd.f32 %v2654, %v2786
        %v2851 = vadd.f32 %v2655, %v2787
        %v2852 = vadd.f32 %v2656, %v2788
        %v2853 = vadd.f32 %v2657, %v2789
        %v2854 = vadd.f32 %v2658, %v2790
        %v2855 = vadd.f32 %v2659, %v2791
        %v2856 = vadd.f32 %v2660, %v2792
        %v2857 = vadd.f32 %v2661, %v2793
        %v2858 = vadd.f32 %v2662, %v2794
        %v2859 = vadd.f32 %v2663, %v2795
        %v2860 = vadd.f32 %v2664, %v2796
        %v2861 = vadd.f32 %v2665, %v2797
        %v2862 = vadd.f32 %v2666, %v2798
        %v2863 = vadd.f32 %v2667, %v2799
        %v2864 = vadd.f32 %v2668, %v2800
        %v2865 = vadd.f32 %v2669, %v2801
        %v2866 = vadd.f32 %v2670, %v2802
        %v2867 = vadd.f32 %v2671, %v2803
        %v2868 = vadd.f32 %v2672, %v2804
        %v2869 = vadd.f32 %v2673, %v2805
        %v2870 = vadd.f32 %v2674, %v2806
        %v2871 = vadd.f32 %v2675, %v2807
        %v2872 = vadd.f32 %v2676, %v2808
        %v2873 = vadd.f32 %v2677, %v2809
        %v2874 = vld [vmem:[%s4] sm:$0x1]
        %v2876 = vlaneseq
        %v2877 = vshrl.u32 %v2876, 7
        %v2878 = vsub.s32 0, %v2877
        %v2879 = vrot.slane %v2874, %v2878
        %v2881 = vadd.f32 %v2810, %v2879
        %v2882 = vadd.f32 %v2811, %v2879
        %v2883 = vadd.f32 %v2812, %v2879
        %v2884 = vadd.f32 %v2813, %v2879
        %v2885 = vadd.f32 %v2814, %v2879
        %v2886 = vadd.f32 %v2815, %v2879
        %v2887 = vadd.f32 %v2816, %v2879
        %v2888 = vadd.f32 %v2817, %v2879
        %v2889 = vadd.f32 %v2818, %v2879
        %v2890 = vadd.f32 %v2819, %v2879
        %v2891 = vadd.f32 %v2820, %v2879
        %v2892 = vadd.f32 %v2821, %v2879
        %v2893 = vadd.f32 %v2822, %v2879
        %v2894 = vadd.f32 %v2823, %v2879
        %v2895 = vadd.f32 %v2824, %v2879
        %v2896 = vadd.f32 %v2825, %v2879
        %v2897 = vadd.f32 %v2826, %v2879
        %v2898 = vadd.f32 %v2827, %v2879
        %v2899 = vadd.f32 %v2828, %v2879
        %v2900 = vadd.f32 %v2829, %v2879
        %v2901 = vadd.f32 %v2830, %v2879
        %v2902 = vadd.f32 %v2831, %v2879
        %v2903 = vadd.f32 %v2832, %v2879
        %v2904 = vadd.f32 %v2833, %v2879
        %v2905 = vadd.f32 %v2834, %v2879
        %v2906 = vadd.f32 %v2835, %v2879
        %v2907 = vadd.f32 %v2836, %v2879
        %v2908 = vadd.f32 %v2837, %v2879
        %v2909 = vadd.f32 %v2838, %v2879
        %v2910 = vadd.f32 %v2839, %v2879
        %v2911 = vadd.f32 %v2840, %v2879
        %v2912 = vadd.f32 %v2841, %v2879
        %v2913 = vadd.f32 %v2842, %v2879
        %v2914 = vadd.f32 %v2843, %v2879
        %v2915 = vadd.f32 %v2844, %v2879
        %v2916 = vadd.f32 %v2845, %v2879
        %v2917 = vadd.f32 %v2846, %v2879
        %v2918 = vadd.f32 %v2847, %v2879
        %v2919 = vadd.f32 %v2848, %v2879
        %v2920 = vadd.f32 %v2849, %v2879
        %v2921 = vadd.f32 %v2850, %v2879
        %v2922 = vadd.f32 %v2851, %v2879
        %v2923 = vadd.f32 %v2852, %v2879
        %v2924 = vadd.f32 %v2853, %v2879
        %v2925 = vadd.f32 %v2854, %v2879
        %v2926 = vadd.f32 %v2855, %v2879
        %v2927 = vadd.f32 %v2856, %v2879
        %v2928 = vadd.f32 %v2857, %v2879
        %v2929 = vadd.f32 %v2858, %v2879
        %v2930 = vadd.f32 %v2859, %v2879
        %v2931 = vadd.f32 %v2860, %v2879
        %v2932 = vadd.f32 %v2861, %v2879
        %v2933 = vadd.f32 %v2862, %v2879
        %v2934 = vadd.f32 %v2863, %v2879
        %v2935 = vadd.f32 %v2864, %v2879
        %v2936 = vadd.f32 %v2865, %v2879
        %v2937 = vadd.f32 %v2866, %v2879
        %v2938 = vadd.f32 %v2867, %v2879
        %v2939 = vadd.f32 %v2868, %v2879
        %v2940 = vadd.f32 %v2869, %v2879
        %v2941 = vadd.f32 %v2870, %v2879
        %v2942 = vadd.f32 %v2871, %v2879
        %v2943 = vadd.f32 %v2872, %v2879
        %v2944 = vadd.f32 %v2873, %v2879
        %v2945 = vmax.f32 %v2881, 0.0
        %v2946 = vmax.f32 %v2882, 0.0
        %v2947 = vmax.f32 %v2883, 0.0
        %v2948 = vmax.f32 %v2884, 0.0
        %v2949 = vmax.f32 %v2885, 0.0
        %v2950 = vmax.f32 %v2886, 0.0
        %v2951 = vmax.f32 %v2887, 0.0
        %v2952 = vmax.f32 %v2888, 0.0
        %v2953 = vmax.f32 %v2889, 0.0
        %v2954 = vmax.f32 %v2890, 0.0
        %v2955 = vmax.f32 %v2891, 0.0
        %v2956 = vmax.f32 %v2892, 0.0
        %v2957 = vmax.f32 %v2893, 0.0
        %v2958 = vmax.f32 %v2894, 0.0
        %v2959 = vmax.f32 %v2895, 0.0
        %v2960 = vmax.f32 %v2896, 0.0
        %v2961 = vmax.f32 %v2897, 0.0
        %v2962 = vmax.f32 %v2898, 0.0
        %v2963 = vmax.f32 %v2899, 0.0
        %v2964 = vmax.f32 %v2900, 0.0
        %v2965 = vmax.f32 %v2901, 0.0
        %v2966 = vmax.f32 %v2902, 0.0
        %v2967 = vmax.f32 %v2903, 0.0
        %v2968 = vmax.f32 %v2904, 0.0
        %v2969 = vmax.f32 %v2905, 0.0
        %v2970 = vmax.f32 %v2906, 0.0
        %v2971 = vmax.f32 %v2907, 0.0
        %v2972 = vmax.f32 %v2908, 0.0
        %v2973 = vmax.f32 %v2909, 0.0
        %v2974 = vmax.f32 %v2910, 0.0
        %v2975 = vmax.f32 %v2911, 0.0
        %v2976 = vmax.f32 %v2912, 0.0
        %v2977 = vmax.f32 %v2913, 0.0
        %v2978 = vmax.f32 %v2914, 0.0
        %v2979 = vmax.f32 %v2915, 0.0
        %v2980 = vmax.f32 %v2916, 0.0
        %v2981 = vmax.f32 %v2917, 0.0
        %v2982 = vmax.f32 %v2918, 0.0
        %v2983 = vmax.f32 %v2919, 0.0
        %v2984 = vmax.f32 %v2920, 0.0
        %v2985 = vmax.f32 %v2921, 0.0
        %v2986 = vmax.f32 %v2922, 0.0
        %v2987 = vmax.f32 %v2923, 0.0
        %v2988 = vmax.f32 %v2924, 0.0
        %v2989 = vmax.f32 %v2925, 0.0
        %v2990 = vmax.f32 %v2926, 0.0
        %v2991 = vmax.f32 %v2927, 0.0
        %v2992 = vmax.f32 %v2928, 0.0
        %v2993 = vmax.f32 %v2929, 0.0
        %v2994 = vmax.f32 %v2930, 0.0
        %v2995 = vmax.f32 %v2931, 0.0
        %v2996 = vmax.f32 %v2932, 0.0
        %v2997 = vmax.f32 %v2933, 0.0
        %v2998 = vmax.f32 %v2934, 0.0
        %v2999 = vmax.f32 %v2935, 0.0
        %v3000 = vmax.f32 %v2936, 0.0
        %v3001 = vmax.f32 %v2937, 0.0
        %v3002 = vmax.f32 %v2938, 0.0
        %v3003 = vmax.f32 %v2939, 0.0
        %v3004 = vmax.f32 %v2940, 0.0
        %v3005 = vmax.f32 %v2941, 0.0
        %v3006 = vmax.f32 %v2942, 0.0
        %v3007 = vmax.f32 %v2943, 0.0
        %v3008 = vmax.f32 %v2944, 0.0
        %v3009 = vpack.c.bf16 %v2946, %v2945
        %v3010 = vpack.c.bf16 %v2948, %v2947
        %v3011 = vpack.c.bf16 %v2950, %v2949
        %v3012 = vpack.c.bf16 %v2952, %v2951
        %v3013 = vpack.c.bf16 %v2954, %v2953
        %v3014 = vpack.c.bf16 %v2956, %v2955
        %v3015 = vpack.c.bf16 %v2958, %v2957
        %v3016 = vpack.c.bf16 %v2960, %v2959
        %v3017 = vpack.c.bf16 %v2962, %v2961
        %v3018 = vpack.c.bf16 %v2964, %v2963
        %v3019 = vpack.c.bf16 %v2966, %v2965
        %v3020 = vpack.c.bf16 %v2968, %v2967
        %v3021 = vpack.c.bf16 %v2970, %v2969
        %v3022 = vpack.c.bf16 %v2972, %v2971
        %v3023 = vpack.c.bf16 %v2974, %v2973
        %v3024 = vpack.c.bf16 %v2976, %v2975
        %v3025 = vpack.c.bf16 %v2978, %v2977
        %v3026 = vpack.c.bf16 %v2980, %v2979
        %v3027 = vpack.c.bf16 %v2982, %v2981
        %v3028 = vpack.c.bf16 %v2984, %v2983
        %v3029 = vpack.c.bf16 %v2986, %v2985
        %v3030 = vpack.c.bf16 %v2988, %v2987
        %v3031 = vpack.c.bf16 %v2990, %v2989
        %v3032 = vpack.c.bf16 %v2992, %v2991
        %v3033 = vpack.c.bf16 %v2994, %v2993
        %v3034 = vpack.c.bf16 %v2996, %v2995
        %v3035 = vpack.c.bf16 %v2998, %v2997
        %v3036 = vpack.c.bf16 %v3000, %v2999
        %v3037 = vpack.c.bf16 %v3002, %v3001
        %v3038 = vpack.c.bf16 %v3004, %v3003
        %v3039 = vpack.c.bf16 %v3006, %v3005
        %v3040 = vpack.c.bf16 %v3008, %v3007
        %v3041 = vld [vmem:[#allocation9] sm:$0xf]
        %v3042 = vld [vmem:[#allocation9 + $0x4] sm:$0xf]
        %v3043 = vld [vmem:[#allocation9 + $0x8] sm:$0xf]
        %v3044 = vld [vmem:[#allocation9 + $0xc] sm:$0xf]
        %v3045 = vld [vmem:[#allocation9 + $0x10] sm:$0xf]
        %v3046 = vld [vmem:[#allocation9 + $0x14] sm:$0xf]
        %v3047 = vld [vmem:[#allocation9 + $0x18] sm:$0xf]
        %v3048 = vld [vmem:[#allocation9 + $0x1c] sm:$0xf]
        %v3049 = vld [vmem:[#allocation9 + $0x20] sm:$0xf]
        %v3050 = vld [vmem:[#allocation9 + $0x24] sm:$0xf]
        %v3051 = vld [vmem:[#allocation9 + $0x28] sm:$0xf]
        %v3052 = vld [vmem:[#allocation9 + $0x2c] sm:$0xf]
        %v3053 = vld [vmem:[#allocation9 + $0x30] sm:$0xf]
        %v3054 = vld [vmem:[#allocation9 + $0x34] sm:$0xf]
        %v3055 = vld [vmem:[#allocation9 + $0x38] sm:$0xf]
        %v3056 = vld [vmem:[#allocation9 + $0x3c] sm:$0xf]
        %v3057 = vld [vmem:[%s6] sm:$0x1]
        %v3059 = vlaneseq
        %v3060 = vshrl.u32 %v3059, 7
        %v3061 = vsub.s32 0, %v3060
        %v3062 = vrot.slane %v3057, %v3061
        %v3080 = vunpack.c.l.b16 %v3041
        %v3081 = vunpack.c.l.b16 %v3042
        %v3082 = vunpack.c.l.b16 %v3043
        %v3083 = vunpack.c.l.b16 %v3044
        %v3084 = vunpack.c.l.b16 %v3045
        %v3085 = vunpack.c.l.b16 %v3046
        %v3086 = vunpack.c.l.b16 %v3047
        %v3087 = vunpack.c.l.b16 %v3048
        %v3088 = vunpack.c.l.b16 %v3049
        %v3089 = vunpack.c.l.b16 %v3050
        %v3090 = vunpack.c.l.b16 %v3051
        %v3091 = vunpack.c.l.b16 %v3052
        %v3092 = vunpack.c.l.b16 %v3053
        %v3093 = vunpack.c.l.b16 %v3054
        %v3094 = vunpack.c.l.b16 %v3055
        %v3095 = vunpack.c.l.b16 %v3056
        %v3096 = vpack.c.b16 %v3081, %v3080
        %v3097 = vpack.c.b16 %v3083, %v3082
        %v3098 = vpack.c.b16 %v3085, %v3084
        %v3099 = vpack.c.b16 %v3087, %v3086
        %v3100 = vpack.c.b16 %v3089, %v3088
        %v3101 = vpack.c.b16 %v3091, %v3090
        %v3102 = vpack.c.b16 %v3093, %v3092
        %v3103 = vpack.c.b16 %v3095, %v3094
        %3112 = vmatprep.subr.bf16.mxu0 0
        %3113 = vmatpush1.bf16.msra.mxu0 %v3096
        %3114 = vmatprep.subr.bf16.mxu0 0
        %3115 = vmatpush1.bf16.msra.mxu0 %v3097
        %3116 = vmatprep.subr.bf16.mxu0 0
        %3117 = vmatpush1.bf16.msra.mxu0 %v3098
        %3118 = vmatprep.subr.bf16.mxu0 0
        %3119 = vmatpush1.bf16.msra.mxu0 %v3099
        %3120 = vmatprep.subr.bf16.mxu0 0
        %3121 = vmatpush1.bf16.msra.mxu0 %v3100
        %3122 = vmatprep.subr.bf16.mxu0 0
        %3123 = vmatpush1.bf16.msra.mxu0 %v3101
        %3124 = vmatprep.subr.bf16.mxu0 0
        %3125 = vmatpush1.bf16.msra.mxu0 %v3102
        %3126 = vmatprep.subr.bf16.mxu0 0
        %3127 = vmatpush1.bf16.msra.mxu0 %v3103
        %3128 = vmatprep.subr.bf16.mxu0 0
        %3129 = vmatpush1.bf16.msra.mxu0 0
        %3130 = vmatprep.subr.bf16.mxu0 0
        %3131 = vmatpush1.bf16.msra.mxu0 0
        %3132 = vmatprep.subr.bf16.mxu0 0
        %3133 = vmatpush1.bf16.msra.mxu0 0
        %3134 = vmatprep.subr.bf16.mxu0 0
        %3135 = vmatpush1.bf16.msra.mxu0 0
        %3136 = vmatprep.subr.bf16.mxu0 0
        %3137 = vmatpush1.bf16.msra.mxu0 0
        %3138 = vmatprep.subr.bf16.mxu0 0
        %3139 = vmatpush1.bf16.msra.mxu0 0
        %3140 = vmatprep.subr.bf16.mxu0 0
        %3141 = vmatpush1.bf16.msra.mxu0 0
        %3142 = vmatprep.subr.bf16.mxu0 0
        %3143 = vmatpush1.bf16.msra.mxu0 0
        %3144 = vmatprep.mubr.bf16.mxu0 0
        %3145 = vmatmul.mubr.bf16.gmra.mrb[0].mxu0 %v3009
        %v3146 = vpop.f32.mrb[0].mxu0
        %v3147 = vadd.f32 %v3062, %v3146
        %v3148 = vpop.f32.mrb[0].mxu0
        %v3149 = vpop.f32.mrb[0].mxu0
        %v3150 = vadd.f32 %v3062, %v3149
        %v3151 = vpop.f32.mrb[0].mxu0
        %3152 = vmatprep.mubr.bf16.mxu0 0
        %3153 = vmatmul.mubr.bf16.gmra.mrb[0].mxu0 %v3010
        %v3154 = vpop.f32.mrb[0].mxu0
        %v3155 = vadd.f32 %v3062, %v3154
        %v3156 = vpop.f32.mrb[0].mxu0
        %v3157 = vpop.f32.mrb[0].mxu0
        %v3158 = vadd.f32 %v3062, %v3157
        %v3159 = vpop.f32.mrb[0].mxu0
        %3160 = vmatprep.mubr.bf16.mxu0 0
        %3161 = vmatmul.mubr.bf16.gmra.mrb[0].mxu0 %v3011
        %v3162 = vpop.f32.mrb[0].mxu0
        %v3163 = vadd.f32 %v3062, %v3162
        %v3164 = vpop.f32.mrb[0].mxu0
        %v3165 = vpop.f32.mrb[0].mxu0
        %v3166 = vadd.f32 %v3062, %v3165
        %v3167 = vpop.f32.mrb[0].mxu0
        %3168 = vmatprep.mubr.bf16.mxu0 0
        %3169 = vmatmul.mubr.bf16.gmra.mrb[0].mxu0 %v3012
        %v3170 = vpop.f32.mrb[0].mxu0
        %v3171 = vadd.f32 %v3062, %v3170
        %v3172 = vpop.f32.mrb[0].mxu0
        %v3173 = vpop.f32.mrb[0].mxu0
        %v3174 = vadd.f32 %v3062, %v3173
        %v3175 = vpop.f32.mrb[0].mxu0
        %3176 = vmatprep.mubr.bf16.mxu0 0
        %3177 = vmatmul.mubr.bf16.gmra.mrb[0].mxu0 %v3013
        %v3178 = vpop.f32.mrb[0].mxu0
        %v3179 = vadd.f32 %v3062, %v3178
        %v3180 = vpop.f32.mrb[0].mxu0
        %v3181 = vpop.f32.mrb[0].mxu0
        %v3182 = vadd.f32 %v3062, %v3181
        %v3183 = vpop.f32.mrb[0].mxu0
        %3184 = vmatprep.mubr.bf16.mxu0 0
        %3185 = vmatmul.mubr.bf16.gmra.mrb[0].mxu0 %v3014
        %v3186 = vpop.f32.mrb[0].mxu0
        %v3187 = vadd.f32 %v3062, %v3186
        %v3188 = vpop.f32.mrb[0].mxu0
        %v3189 = vpop.f32.mrb[0].mxu0
        %v3190 = vadd.f32 %v3062, %v3189
        %v3191 = vpop.f32.mrb[0].mxu0
        %3192 = vmatprep.mubr.bf16.mxu0 0
        %3193 = vmatmul.mubr.bf16.gmra.mrb[0].mxu0 %v3015
        %v3194 = vpop.f32.mrb[0].mxu0
        %v3195 = vadd.f32 %v3062, %v3194
        %v3196 = vpop.f32.mrb[0].mxu0
        %v3197 = vpop.f32.mrb[0].mxu0
        %v3198 = vadd.f32 %v3062, %v3197
        %v3199 = vpop.f32.mrb[0].mxu0
        %3200 = vmatprep.mubr.bf16.mxu0 0
        %3201 = vmatmul.mubr.bf16.gmra.mrb[0].mxu0 %v3016
        %v3202 = vpop.f32.mrb[0].mxu0
        %v3203 = vadd.f32 %v3062, %v3202
        %v3204 = vpop.f32.mrb[0].mxu0
        %v3205 = vpop.f32.mrb[0].mxu0
        %v3206 = vadd.f32 %v3062, %v3205
        %v3207 = vpop.f32.mrb[0].mxu0
        %3208 = vmatprep.mubr.bf16.mxu0 0
        %3209 = vmatmul.mubr.bf16.gmra.mrb[0].mxu0 %v3017
        %v3210 = vpop.f32.mrb[0].mxu0
        %v3211 = vadd.f32 %v3062, %v3210
        %v3212 = vpop.f32.mrb[0].mxu0
        %v3213 = vpop.f32.mrb[0].mxu0
        %v3214 = vadd.f32 %v3062, %v3213
        %v3215 = vpop.f32.mrb[0].mxu0
        %3216 = vmatprep.mubr.bf16.mxu0 0
        %3217 = vmatmul.mubr.bf16.gmra.mrb[0].mxu0 %v3018
        %v3218 = vpop.f32.mrb[0].mxu0
        %v3219 = vadd.f32 %v3062, %v3218
        %v3220 = vpop.f32.mrb[0].mxu0
        %v3221 = vpop.f32.mrb[0].mxu0
        %v3222 = vadd.f32 %v3062, %v3221
        %v3223 = vpop.f32.mrb[0].mxu0
        %3224 = vmatprep.mubr.bf16.mxu0 0
        %3225 = vmatmul.mubr.bf16.gmra.mrb[0].mxu0 %v3019
        %v3226 = vpop.f32.mrb[0].mxu0
        %v3227 = vadd.f32 %v3062, %v3226
        %v3228 = vpop.f32.mrb[0].mxu0
        %v3229 = vpop.f32.mrb[0].mxu0
        %v3230 = vadd.f32 %v3062, %v3229
        %v3231 = vpop.f32.mrb[0].mxu0
        %3232 = vmatprep.mubr.bf16.mxu0 0
        %3233 = vmatmul.mubr.bf16.gmra.mrb[0].mxu0 %v3020
        %v3234 = vpop.f32.mrb[0].mxu0
        %v3235 = vadd.f32 %v3062, %v3234
        %v3236 = vpop.f32.mrb[0].mxu0
        %v3237 = vpop.f32.mrb[0].mxu0
        %v3238 = vadd.f32 %v3062, %v3237
        %v3239 = vpop.f32.mrb[0].mxu0
        %3240 = vmatprep.mubr.bf16.mxu0 0
        %3241 = vmatmul.mubr.bf16.gmra.mrb[0].mxu0 %v3021
        %v3242 = vpop.f32.mrb[0].mxu0
        %v3243 = vadd.f32 %v3062, %v3242
        %v3244 = vpop.f32.mrb[0].mxu0
        %v3245 = vpop.f32.mrb[0].mxu0
        %v3246 = vadd.f32 %v3062, %v3245
        %v3247 = vpop.f32.mrb[0].mxu0
        %3248 = vmatprep.mubr.bf16.mxu0 0
        %3249 = vmatmul.mubr.bf16.gmra.mrb[0].mxu0 %v3022
        %v3250 = vpop.f32.mrb[0].mxu0
        %v3251 = vadd.f32 %v3062, %v3250
        %v3252 = vpop.f32.mrb[0].mxu0
        %v3253 = vpop.f32.mrb[0].mxu0
        %v3254 = vadd.f32 %v3062, %v3253
        %v3255 = vpop.f32.mrb[0].mxu0
        %3256 = vmatprep.mubr.bf16.mxu0 0
        %3257 = vmatmul.mubr.bf16.gmra.mrb[0].mxu0 %v3023
        %v3258 = vpop.f32.mrb[0].mxu0
        %v3259 = vadd.f32 %v3062, %v3258
        %v3260 = vpop.f32.mrb[0].mxu0
        %v3261 = vpop.f32.mrb[0].mxu0
        %v3262 = vadd.f32 %v3062, %v3261
        %v3263 = vpop.f32.mrb[0].mxu0
        %3264 = vmatprep.mubr.bf16.mxu0 0
        %3265 = vmatmul.mubr.bf16.gmra.mrb[0].mxu0 %v3024
        %v3266 = vpop.f32.mrb[0].mxu0
        %v3267 = vadd.f32 %v3062, %v3266
        %v3268 = vpop.f32.mrb[0].mxu0
        %v3269 = vpop.f32.mrb[0].mxu0
        %v3270 = vadd.f32 %v3062, %v3269
        %v3271 = vpop.f32.mrb[0].mxu0
        %3272 = vmatprep.mubr.bf16.mxu0 0
        %3273 = vmatmul.mubr.bf16.gmra.mrb[0].mxu0 %v3025
        %v3274 = vpop.f32.mrb[0].mxu0
        %v3275 = vadd.f32 %v3062, %v3274
        %v3276 = vpop.f32.mrb[0].mxu0
        %v3277 = vpop.f32.mrb[0].mxu0
        %v3278 = vadd.f32 %v3062, %v3277
        %v3279 = vpop.f32.mrb[0].mxu0
        %3280 = vmatprep.mubr.bf16.mxu0 0
        %3281 = vmatmul.mubr.bf16.gmra.mrb[0].mxu0 %v3026
        %v3282 = vpop.f32.mrb[0].mxu0
        %v3283 = vadd.f32 %v3062, %v3282
        %v3284 = vpop.f32.mrb[0].mxu0
        %v3285 = vpop.f32.mrb[0].mxu0
        %v3286 = vadd.f32 %v3062, %v3285
        %v3287 = vpop.f32.mrb[0].mxu0
        %3288 = vmatprep.mubr.bf16.mxu0 0
        %3289 = vmatmul.mubr.bf16.gmra.mrb[0].mxu0 %v3027
        %v3290 = vpop.f32.mrb[0].mxu0
        %v3291 = vadd.f32 %v3062, %v3290
        %v3292 = vpop.f32.mrb[0].mxu0
        %v3293 = vpop.f32.mrb[0].mxu0
        %v3294 = vadd.f32 %v3062, %v3293
        %v3295 = vpop.f32.mrb[0].mxu0
        %3296 = vmatprep.mubr.bf16.mxu0 0
        %3297 = vmatmul.mubr.bf16.gmra.mrb[0].mxu0 %v3028
        %v3298 = vpop.f32.mrb[0].mxu0
        %v3299 = vadd.f32 %v3062, %v3298
        %v3300 = vpop.f32.mrb[0].mxu0
        %v3301 = vpop.f32.mrb[0].mxu0
        %v3302 = vadd.f32 %v3062, %v3301
        %v3303 = vpop.f32.mrb[0].mxu0
        %3304 = vmatprep.mubr.bf16.mxu0 0
        %3305 = vmatmul.mubr.bf16.gmra.mrb[0].mxu0 %v3029
        %v3306 = vpop.f32.mrb[0].mxu0
        %v3307 = vadd.f32 %v3062, %v3306
        %v3308 = vpop.f32.mrb[0].mxu0
        %v3309 = vpop.f32.mrb[0].mxu0
        %v3310 = vadd.f32 %v3062, %v3309
        %v3311 = vpop.f32.mrb[0].mxu0
        %3312 = vmatprep.mubr.bf16.mxu0 0
        %3313 = vmatmul.mubr.bf16.gmra.mrb[0].mxu0 %v3030
        %v3314 = vpop.f32.mrb[0].mxu0
        %v3315 = vadd.f32 %v3062, %v3314
        %v3316 = vpop.f32.mrb[0].mxu0
        %v3317 = vpop.f32.mrb[0].mxu0
        %v3318 = vadd.f32 %v3062, %v3317
        %v3319 = vpop.f32.mrb[0].mxu0
        %3320 = vmatprep.mubr.bf16.mxu0 0
        %3321 = vmatmul.mubr.bf16.gmra.mrb[0].mxu0 %v3031
        %v3322 = vpop.f32.mrb[0].mxu0
        %v3323 = vadd.f32 %v3062, %v3322
        %v3324 = vpop.f32.mrb[0].mxu0
        %v3325 = vpop.f32.mrb[0].mxu0
        %v3326 = vadd.f32 %v3062, %v3325
        %v3327 = vpop.f32.mrb[0].mxu0
        %3328 = vmatprep.mubr.bf16.mxu0 0
        %3329 = vmatmul.mubr.bf16.gmra.mrb[0].mxu0 %v3032
        %v3330 = vpop.f32.mrb[0].mxu0
        %v3331 = vadd.f32 %v3062, %v3330
        %v3332 = vpop.f32.mrb[0].mxu0
        %v3333 = vpop.f32.mrb[0].mxu0
        %v3334 = vadd.f32 %v3062, %v3333
        %v3335 = vpop.f32.mrb[0].mxu0
        %3336 = vmatprep.mubr.bf16.mxu0 0
        %3337 = vmatmul.mubr.bf16.gmra.mrb[0].mxu0 %v3033
        %v3338 = vpop.f32.mrb[0].mxu0
        %v3339 = vadd.f32 %v3062, %v3338
        %v3340 = vpop.f32.mrb[0].mxu0
        %v3341 = vpop.f32.mrb[0].mxu0
        %v3342 = vadd.f32 %v3062, %v3341
        %v3343 = vpop.f32.mrb[0].mxu0
        %3344 = vmatprep.mubr.bf16.mxu0 0
        %3345 = vmatmul.mubr.bf16.gmra.mrb[0].mxu0 %v3034
        %v3346 = vpop.f32.mrb[0].mxu0
        %v3347 = vadd.f32 %v3062, %v3346
        %v3348 = vpop.f32.mrb[0].mxu0
        %v3349 = vpop.f32.mrb[0].mxu0
        %v3350 = vadd.f32 %v3062, %v3349
        %v3351 = vpop.f32.mrb[0].mxu0
        %3352 = vmatprep.mubr.bf16.mxu0 0
        %3353 = vmatmul.mubr.bf16.gmra.mrb[0].mxu0 %v3035
        %v3354 = vpop.f32.mrb[0].mxu0
        %v3355 = vadd.f32 %v3062, %v3354
        %v3356 = vpop.f32.mrb[0].mxu0
        %v3357 = vpop.f32.mrb[0].mxu0
        %v3358 = vadd.f32 %v3062, %v3357
        %v3359 = vpop.f32.mrb[0].mxu0
        %3360 = vmatprep.mubr.bf16.mxu0 0
        %3361 = vmatmul.mubr.bf16.gmra.mrb[0].mxu0 %v3036
        %v3362 = vpop.f32.mrb[0].mxu0
        %v3363 = vadd.f32 %v3062, %v3362
        %v3364 = vpop.f32.mrb[0].mxu0
        %v3365 = vpop.f32.mrb[0].mxu0
        %v3366 = vadd.f32 %v3062, %v3365
        %v3367 = vpop.f32.mrb[0].mxu0
        %3368 = vmatprep.mubr.bf16.mxu0 0
        %3369 = vmatmul.mubr.bf16.gmra.mrb[0].mxu0 %v3037
        %v3370 = vpop.f32.mrb[0].mxu0
        %v3371 = vadd.f32 %v3062, %v3370
        %v3372 = vpop.f32.mrb[0].mxu0
        %v3373 = vpop.f32.mrb[0].mxu0
        %v3374 = vadd.f32 %v3062, %v3373
        %v3375 = vpop.f32.mrb[0].mxu0
        %3376 = vmatprep.mubr.bf16.mxu0 0
        %3377 = vmatmul.mubr.bf16.gmra.mrb[0].mxu0 %v3038
        %v3378 = vpop.f32.mrb[0].mxu0
        %v3379 = vadd.f32 %v3062, %v3378
        %v3380 = vpop.f32.mrb[0].mxu0
        %v3381 = vpop.f32.mrb[0].mxu0
        %v3382 = vadd.f32 %v3062, %v3381
        %v3383 = vpop.f32.mrb[0].mxu0
        %3384 = vmatprep.mubr.bf16.mxu0 0
        %3385 = vmatmul.mubr.bf16.gmra.mrb[0].mxu0 %v3039
        %v3386 = vpop.f32.mrb[0].mxu0
        %v3387 = vadd.f32 %v3062, %v3386
        %v3388 = vpop.f32.mrb[0].mxu0
        %v3389 = vpop.f32.mrb[0].mxu0
        %v3390 = vadd.f32 %v3062, %v3389
        %v3391 = vpop.f32.mrb[0].mxu0
        %3392 = vmatprep.mubr.bf16.mxu0 0
        %3393 = vmatmul.mubr.bf16.gmra.mrb[0].mxu0 %v3040
        %v3394 = vpop.f32.mrb[0].mxu0
        %v3395 = vadd.f32 %v3062, %v3394
        %v3396 = vpop.f32.mrb[0].mxu0
        %v3397 = vpop.f32.mrb[0].mxu0
        %v3398 = vadd.f32 %v3062, %v3397
        %v3399 = vpop.f32.mrb[0].mxu0
        %3400 = vdwg.mxu0
        %v3401 = vunpack.c.l.bf16 %v345
        %v3402 = vunpack.c.l.bf16 %v346
        %v3403 = vunpack.c.l.bf16 %v347
        %v3404 = vunpack.c.l.bf16 %v348
        %v3405 = vunpack.c.l.bf16 %v349
        %v3406 = vunpack.c.l.bf16 %v350
        %v3407 = vunpack.c.l.bf16 %v351
        %v3408 = vunpack.c.l.bf16 %v352
        %v3409 = vunpack.c.l.bf16 %v353
        %v3410 = vunpack.c.l.bf16 %v354
        %v3411 = vunpack.c.l.bf16 %v355
        %v3412 = vunpack.c.l.bf16 %v356
        %v3413 = vunpack.c.l.bf16 %v357
        %v3414 = vunpack.c.l.bf16 %v358
        %v3415 = vunpack.c.l.bf16 %v359
        %v3416 = vunpack.c.l.bf16 %v360
        %v3417 = vunpack.c.l.bf16 %v361
        %v3418 = vunpack.c.l.bf16 %v362
        %v3419 = vunpack.c.l.bf16 %v363
        %v3420 = vunpack.c.l.bf16 %v364
        %v3421 = vunpack.c.l.bf16 %v365
        %v3422 = vunpack.c.l.bf16 %v366
        %v3423 = vunpack.c.l.bf16 %v367
        %v3424 = vunpack.c.l.bf16 %v368
        %v3425 = vunpack.c.l.bf16 %v369
        %v3426 = vunpack.c.l.bf16 %v370
        %v3427 = vunpack.c.l.bf16 %v371
        %v3428 = vunpack.c.l.bf16 %v372
        %v3429 = vunpack.c.l.bf16 %v373
        %v3430 = vunpack.c.l.bf16 %v374
        %v3431 = vunpack.c.l.bf16 %v375
        %v3432 = vunpack.c.l.bf16 %v376
        %v3433 = vunpack.c.l.bf16 %v377
        %v3434 = vunpack.c.l.bf16 %v378
        %v3435 = vunpack.c.l.bf16 %v379
        %v3436 = vunpack.c.l.bf16 %v380
        %v3437 = vunpack.c.l.bf16 %v381
        %v3438 = vunpack.c.l.bf16 %v382
        %v3439 = vunpack.c.l.bf16 %v383
        %v3440 = vunpack.c.l.bf16 %v384
        %v3441 = vunpack.c.l.bf16 %v385
        %v3442 = vunpack.c.l.bf16 %v386
        %v3443 = vunpack.c.l.bf16 %v387
        %v3444 = vunpack.c.l.bf16 %v388
        %v3445 = vunpack.c.l.bf16 %v389
        %v3446 = vunpack.c.l.bf16 %v390
        %v3447 = vunpack.c.l.bf16 %v391
        %v3448 = vunpack.c.l.bf16 %v392
        %v3449 = vunpack.c.l.bf16 %v393
        %v3450 = vunpack.c.l.bf16 %v394
        %v3451 = vunpack.c.l.bf16 %v395
        %v3452 = vunpack.c.l.bf16 %v396
        %v3453 = vunpack.c.l.bf16 %v397
        %v3454 = vunpack.c.l.bf16 %v398
        %v3455 = vunpack.c.l.bf16 %v399
        %v3456 = vunpack.c.l.bf16 %v400
        %v3457 = vunpack.c.l.bf16 %v401
        %v3458 = vunpack.c.l.bf16 %v402
        %v3459 = vunpack.c.l.bf16 %v403
        %v3460 = vunpack.c.l.bf16 %v404
        %v3461 = vunpack.c.l.bf16 %v405
        %v3462 = vunpack.c.l.bf16 %v406
        %v3463 = vunpack.c.l.bf16 %v407
        %v3464 = vunpack.c.l.bf16 %v408
        %v3465 = vadd.f32 %v3147, %v3401
        %v3466 = vadd.f32 %v3150, %v3402
        %v3467 = vadd.f32 %v3155, %v3403
        %v3468 = vadd.f32 %v3158, %v3404
        %v3469 = vadd.f32 %v3163, %v3405
        %v3470 = vadd.f32 %v3166, %v3406
        %v3471 = vadd.f32 %v3171, %v3407
        %v3472 = vadd.f32 %v3174, %v3408
        %v3473 = vadd.f32 %v3179, %v3409
        %v3474 = vadd.f32 %v3182, %v3410
        %v3475 = vadd.f32 %v3187, %v3411
        %v3476 = vadd.f32 %v3190, %v3412
        %v3477 = vadd.f32 %v3195, %v3413
        %v3478 = vadd.f32 %v3198, %v3414
        %v3479 = vadd.f32 %v3203, %v3415
        %v3480 = vadd.f32 %v3206, %v3416
        %v3481 = vadd.f32 %v3211, %v3417
        %v3482 = vadd.f32 %v3214, %v3418
        %v3483 = vadd.f32 %v3219, %v3419
        %v3484 = vadd.f32 %v3222, %v3420
        %v3485 = vadd.f32 %v3227, %v3421
        %v3486 = vadd.f32 %v3230, %v3422
        %v3487 = vadd.f32 %v3235, %v3423
        %v3488 = vadd.f32 %v3238, %v3424
        %v3489 = vadd.f32 %v3243, %v3425
        %v3490 = vadd.f32 %v3246, %v3426
        %v3491 = vadd.f32 %v3251, %v3427
        %v3492 = vadd.f32 %v3254, %v3428
        %v3493 = vadd.f32 %v3259, %v3429
        %v3494 = vadd.f32 %v3262, %v3430
        %v3495 = vadd.f32 %v3267, %v3431
        %v3496 = vadd.f32 %v3270, %v3432
        %v3497 = vadd.f32 %v3275, %v3433
        %v3498 = vadd.f32 %v3278, %v3434
        %v3499 = vadd.f32 %v3283, %v3435
        %v3500 = vadd.f32 %v3286, %v3436
        %v3501 = vadd.f32 %v3291, %v3437
        %v3502 = vadd.f32 %v3294, %v3438
        %v3503 = vadd.f32 %v3299, %v3439
        %v3504 = vadd.f32 %v3302, %v3440
        %v3505 = vadd.f32 %v3307, %v3441
        %v3506 = vadd.f32 %v3310, %v3442
        %v3507 = vadd.f32 %v3315, %v3443
        %v3508 = vadd.f32 %v3318, %v3444
        %v3509 = vadd.f32 %v3323, %v3445
        %v3510 = vadd.f32 %v3326, %v3446
        %v3511 = vadd.f32 %v3331, %v3447
        %v3512 = vadd.f32 %v3334, %v3448
        %v3513 = vadd.f32 %v3339, %v3449
        %v3514 = vadd.f32 %v3342, %v3450
        %v3515 = vadd.f32 %v3347, %v3451
        %v3516 = vadd.f32 %v3350, %v3452
        %v3517 = vadd.f32 %v3355, %v3453
        %v3518 = vadd.f32 %v3358, %v3454
        %v3519 = vadd.f32 %v3363, %v3455
        %v3520 = vadd.f32 %v3366, %v3456
        %v3521 = vadd.f32 %v3371, %v3457
        %v3522 = vadd.f32 %v3374, %v3458
        %v3523 = vadd.f32 %v3379, %v3459
        %v3524 = vadd.f32 %v3382, %v3460
        %v3525 = vadd.f32 %v3387, %v3461
        %v3526 = vadd.f32 %v3390, %v3462
        %v3527 = vadd.f32 %v3395, %v3463
        %v3528 = vadd.f32 %v3398, %v3464
        %v3529 = vmax.f32 %v3465, 0.0
        %v3530 = vmax.f32 %v3466, 0.0
        %v3531 = vmax.f32 %v3467, 0.0
        %v3532 = vmax.f32 %v3468, 0.0
        %v3533 = vmax.f32 %v3469, 0.0
        %v3534 = vmax.f32 %v3470, 0.0
        %v3535 = vmax.f32 %v3471, 0.0
        %v3536 = vmax.f32 %v3472, 0.0
        %v3537 = vmax.f32 %v3473, 0.0
        %v3538 = vmax.f32 %v3474, 0.0
        %v3539 = vmax.f32 %v3475, 0.0
        %v3540 = vmax.f32 %v3476, 0.0
        %v3541 = vmax.f32 %v3477, 0.0
        %v3542 = vmax.f32 %v3478, 0.0
        %v3543 = vmax.f32 %v3479, 0.0
        %v3544 = vmax.f32 %v3480, 0.0
        %v3545 = vmax.f32 %v3481, 0.0
        %v3546 = vmax.f32 %v3482, 0.0
        %v3547 = vmax.f32 %v3483, 0.0
        %v3548 = vmax.f32 %v3484, 0.0
        %v3549 = vmax.f32 %v3485, 0.0
        %v3550 = vmax.f32 %v3486, 0.0
        %v3551 = vmax.f32 %v3487, 0.0
        %v3552 = vmax.f32 %v3488, 0.0
        %v3553 = vmax.f32 %v3489, 0.0
        %v3554 = vmax.f32 %v3490, 0.0
        %v3555 = vmax.f32 %v3491, 0.0
        %v3556 = vmax.f32 %v3492, 0.0
        %v3557 = vmax.f32 %v3493, 0.0
        %v3558 = vmax.f32 %v3494, 0.0
        %v3559 = vmax.f32 %v3495, 0.0
        %v3560 = vmax.f32 %v3496, 0.0
        %v3561 = vmax.f32 %v3497, 0.0
        %v3562 = vmax.f32 %v3498, 0.0
        %v3563 = vmax.f32 %v3499, 0.0
        %v3564 = vmax.f32 %v3500, 0.0
        %v3565 = vmax.f32 %v3501, 0.0
        %v3566 = vmax.f32 %v3502, 0.0
        %v3567 = vmax.f32 %v3503, 0.0
        %v3568 = vmax.f32 %v3504, 0.0
        %v3569 = vmax.f32 %v3505, 0.0
        %v3570 = vmax.f32 %v3506, 0.0
        %v3571 = vmax.f32 %v3507, 0.0
        %v3572 = vmax.f32 %v3508, 0.0
        %v3573 = vmax.f32 %v3509, 0.0
        %v3574 = vmax.f32 %v3510, 0.0
        %v3575 = vmax.f32 %v3511, 0.0
        %v3576 = vmax.f32 %v3512, 0.0
        %v3577 = vmax.f32 %v3513, 0.0
        %v3578 = vmax.f32 %v3514, 0.0
        %v3579 = vmax.f32 %v3515, 0.0
        %v3580 = vmax.f32 %v3516, 0.0
        %v3581 = vmax.f32 %v3517, 0.0
        %v3582 = vmax.f32 %v3518, 0.0
        %v3583 = vmax.f32 %v3519, 0.0
        %v3584 = vmax.f32 %v3520, 0.0
        %v3585 = vmax.f32 %v3521, 0.0
        %v3586 = vmax.f32 %v3522, 0.0
        %v3587 = vmax.f32 %v3523, 0.0
        %v3588 = vmax.f32 %v3524, 0.0
        %v3589 = vmax.f32 %v3525, 0.0
        %v3590 = vmax.f32 %v3526, 0.0
        %v3591 = vmax.f32 %v3527, 0.0
        %v3592 = vmax.f32 %v3528, 0.0
        %v3593 = vpack.c.bf16 %v3530, %v3529
        %v3594 = vpack.c.bf16 %v3532, %v3531
        %v3595 = vpack.c.bf16 %v3534, %v3533
        %v3596 = vpack.c.bf16 %v3536, %v3535
        %v3597 = vpack.c.bf16 %v3538, %v3537
        %v3598 = vpack.c.bf16 %v3540, %v3539
        %v3599 = vpack.c.bf16 %v3542, %v3541
        %v3600 = vpack.c.bf16 %v3544, %v3543
        %v3601 = vpack.c.bf16 %v3546, %v3545
        %v3602 = vpack.c.bf16 %v3548, %v3547
        %v3603 = vpack.c.bf16 %v3550, %v3549
        %v3604 = vpack.c.bf16 %v3552, %v3551
        %v3605 = vpack.c.bf16 %v3554, %v3553
        %v3606 = vpack.c.bf16 %v3556, %v3555
        %v3607 = vpack.c.bf16 %v3558, %v3557
        %v3608 = vpack.c.bf16 %v3560, %v3559
        %v3609 = vpack.c.bf16 %v3562, %v3561
        %v3610 = vpack.c.bf16 %v3564, %v3563
        %v3611 = vpack.c.bf16 %v3566, %v3565
        %v3612 = vpack.c.bf16 %v3568, %v3567
        %v3613 = vpack.c.bf16 %v3570, %v3569
        %v3614 = vpack.c.bf16 %v3572, %v3571
        %v3615 = vpack.c.bf16 %v3574, %v3573
        %v3616 = vpack.c.bf16 %v3576, %v3575
        %v3617 = vpack.c.bf16 %v3578, %v3577
        %v3618 = vpack.c.bf16 %v3580, %v3579
        %v3619 = vpack.c.bf16 %v3582, %v3581
        %v3620 = vpack.c.bf16 %v3584, %v3583
        %v3621 = vpack.c.bf16 %v3586, %v3585
        %v3622 = vpack.c.bf16 %v3588, %v3587
        %v3623 = vpack.c.bf16 %v3590, %v3589
        %v3624 = vpack.c.bf16 %v3592, %v3591
        %v3657 = vunpack.c.l.b16 %v3593
        %v3658 = vunpack.c.h.b16 %v3593
        %v3659 = vunpack.c.l.b16 %v3594
        %v3660 = vunpack.c.h.b16 %v3594
        %v3661 = vunpack.c.l.b16 %v3595
        %v3662 = vunpack.c.h.b16 %v3595
        %v3663 = vunpack.c.l.b16 %v3596
        %v3664 = vunpack.c.h.b16 %v3596
        %v3665 = vunpack.c.l.b16 %v3597
        %v3666 = vunpack.c.h.b16 %v3597
        %v3667 = vunpack.c.l.b16 %v3598
        %v3668 = vunpack.c.h.b16 %v3598
        %v3669 = vunpack.c.l.b16 %v3599
        %v3670 = vunpack.c.h.b16 %v3599
        %v3671 = vunpack.c.l.b16 %v3600
        %v3672 = vunpack.c.h.b16 %v3600
        %v3673 = vunpack.c.l.b16 %v3601
        %v3674 = vunpack.c.h.b16 %v3601
        %v3675 = vunpack.c.l.b16 %v3602
        %v3676 = vunpack.c.h.b16 %v3602
        %v3677 = vunpack.c.l.b16 %v3603
        %v3678 = vunpack.c.h.b16 %v3603
        %v3679 = vunpack.c.l.b16 %v3604
        %v3680 = vunpack.c.h.b16 %v3604
        %v3681 = vunpack.c.l.b16 %v3605
        %v3682 = vunpack.c.h.b16 %v3605
        %v3683 = vunpack.c.l.b16 %v3606
        %v3684 = vunpack.c.h.b16 %v3606
        %v3685 = vunpack.c.l.b16 %v3607
        %v3686 = vunpack.c.h.b16 %v3607
        %v3687 = vunpack.c.l.b16 %v3608
        %v3688 = vunpack.c.h.b16 %v3608
        %v3689 = vunpack.c.l.b16 %v3609
        %v3690 = vunpack.c.h.b16 %v3609
        %v3691 = vunpack.c.l.b16 %v3610
        %v3692 = vunpack.c.h.b16 %v3610
        %v3693 = vunpack.c.l.b16 %v3611
        %v3694 = vunpack.c.h.b16 %v3611
        %v3695 = vunpack.c.l.b16 %v3612
        %v3696 = vunpack.c.h.b16 %v3612
        %v3697 = vunpack.c.l.b16 %v3613
        %v3698 = vunpack.c.h.b16 %v3613
        %v3699 = vunpack.c.l.b16 %v3614
        %v3700 = vunpack.c.h.b16 %v3614
        %v3701 = vunpack.c.l.b16 %v3615
        %v3702 = vunpack.c.h.b16 %v3615
        %v3703 = vunpack.c.l.b16 %v3616
        %v3704 = vunpack.c.h.b16 %v3616
        %v3705 = vunpack.c.l.b16 %v3617
        %v3706 = vunpack.c.h.b16 %v3617
        %v3707 = vunpack.c.l.b16 %v3618
        %v3708 = vunpack.c.h.b16 %v3618
        %v3709 = vunpack.c.l.b16 %v3619
        %v3710 = vunpack.c.h.b16 %v3619
        %v3711 = vunpack.c.l.b16 %v3620
        %v3712 = vunpack.c.h.b16 %v3620
        %v3713 = vunpack.c.l.b16 %v3621
        %v3714 = vunpack.c.h.b16 %v3621
        %v3715 = vunpack.c.l.b16 %v3622
        %v3716 = vunpack.c.h.b16 %v3622
        %v3717 = vunpack.c.l.b16 %v3623
        %v3718 = vunpack.c.h.b16 %v3623
        %v3719 = vunpack.c.l.b16 %v3624
        %v3720 = vunpack.c.h.b16 %v3624
        %v3721 = vpack.c.b16 %v3657, %v3657
        %v3722 = vpack.c.b16 %v3658, %v3658
        %v3723 = vpack.c.b16 %v3659, %v3659
        %v3724 = vpack.c.b16 %v3660, %v3660
        %v3725 = vpack.c.b16 %v3661, %v3661
        %v3726 = vpack.c.b16 %v3662, %v3662
        %v3727 = vpack.c.b16 %v3663, %v3663
        %v3728 = vpack.c.b16 %v3664, %v3664
        %v3729 = vpack.c.b16 %v3665, %v3665
        %v3730 = vpack.c.b16 %v3666, %v3666
        %v3731 = vpack.c.b16 %v3667, %v3667
        %v3732 = vpack.c.b16 %v3668, %v3668
        %v3733 = vpack.c.b16 %v3669, %v3669
        %v3734 = vpack.c.b16 %v3670, %v3670
        %v3735 = vpack.c.b16 %v3671, %v3671
        %v3736 = vpack.c.b16 %v3672, %v3672
        %v3737 = vpack.c.b16 %v3673, %v3673
        %v3738 = vpack.c.b16 %v3674, %v3674
        %v3739 = vpack.c.b16 %v3675, %v3675
        %v3740 = vpack.c.b16 %v3676, %v3676
        %v3741 = vpack.c.b16 %v3677, %v3677
        %v3742 = vpack.c.b16 %v3678, %v3678
        %v3743 = vpack.c.b16 %v3679, %v3679
        %v3744 = vpack.c.b16 %v3680, %v3680
        %v3745 = vpack.c.b16 %v3681, %v3681
        %v3746 = vpack.c.b16 %v3682, %v3682
        %v3747 = vpack.c.b16 %v3683, %v3683
        %v3748 = vpack.c.b16 %v3684, %v3684
        %v3749 = vpack.c.b16 %v3685, %v3685
        %v3750 = vpack.c.b16 %v3686, %v3686
        %v3751 = vpack.c.b16 %v3687, %v3687
        %v3752 = vpack.c.b16 %v3688, %v3688
        %v3753 = vpack.c.b16 %v3689, %v3689
        %v3754 = vpack.c.b16 %v3690, %v3690
        %v3755 = vpack.c.b16 %v3691, %v3691
        %v3756 = vpack.c.b16 %v3692, %v3692
        %v3757 = vpack.c.b16 %v3693, %v3693
        %v3758 = vpack.c.b16 %v3694, %v3694
        %v3759 = vpack.c.b16 %v3695, %v3695
        %v3760 = vpack.c.b16 %v3696, %v3696
        %v3761 = vpack.c.b16 %v3697, %v3697
        %v3762 = vpack.c.b16 %v3698, %v3698
        %v3763 = vpack.c.b16 %v3699, %v3699
        %v3764 = vpack.c.b16 %v3700, %v3700
        %v3765 = vpack.c.b16 %v3701, %v3701
        %v3766 = vpack.c.b16 %v3702, %v3702
        %v3767 = vpack.c.b16 %v3703, %v3703
        %v3768 = vpack.c.b16 %v3704, %v3704
        %v3769 = vpack.c.b16 %v3705, %v3705
        %v3770 = vpack.c.b16 %v3706, %v3706
        %v3771 = vpack.c.b16 %v3707, %v3707
        %v3772 = vpack.c.b16 %v3708, %v3708
        %v3773 = vpack.c.b16 %v3709, %v3709
        %v3774 = vpack.c.b16 %v3710, %v3710
        %v3775 = vpack.c.b16 %v3711, %v3711
        %v3776 = vpack.c.b16 %v3712, %v3712
        %v3777 = vpack.c.b16 %v3713, %v3713
        %v3778 = vpack.c.b16 %v3714, %v3714
        %v3779 = vpack.c.b16 %v3715, %v3715
        %v3780 = vpack.c.b16 %v3716, %v3716
        %v3781 = vpack.c.b16 %v3717, %v3717
        %v3782 = vpack.c.b16 %v3718, %v3718
        %v3783 = vpack.c.b16 %v3719, %v3719
        %v3784 = vpack.c.b16 %v3720, %v3720
        %3849 = vst [vmem:[%s341] sm:$0xf] %v3721
        %3850 = vst [vmem:[%s341 + $0x4] sm:$0xf] %v3722
        %3851 = vst [vmem:[%s341 + $0x8] sm:$0xf] %v3723
        %3852 = vst [vmem:[%s341 + $0xc] sm:$0xf] %v3724
        %3853 = vst [vmem:[%s341 + $0x10] sm:$0xf] %v3725
        %3854 = vst [vmem:[%s341 + $0x14] sm:$0xf] %v3726
        %3855 = vst [vmem:[%s341 + $0x18] sm:$0xf] %v3727
        %3856 = vst [vmem:[%s341 + $0x1c] sm:$0xf] %v3728
        %3857 = vst [vmem:[%s341 + $0x20] sm:$0xf] %v3729
        %3858 = vst [vmem:[%s341 + $0x24] sm:$0xf] %v3730
        %3859 = vst [vmem:[%s341 + $0x28] sm:$0xf] %v3731
        %3860 = vst [vmem:[%s341 + $0x2c] sm:$0xf] %v3732
        %3861 = vst [vmem:[%s341 + $0x30] sm:$0xf] %v3733
        %3862 = vst [vmem:[%s341 + $0x34] sm:$0xf] %v3734
        %3863 = vst [vmem:[%s341 + $0x38] sm:$0xf] %v3735
        %3864 = vst [vmem:[%s341 + $0x3c] sm:$0xf] %v3736
        %3865 = vst [vmem:[%s341 + $0x40] sm:$0xf] %v3737
        %3866 = vst [vmem:[%s341 + $0x44] sm:$0xf] %v3738
        %3867 = vst [vmem:[%s341 + $0x48] sm:$0xf] %v3739
        %3868 = vst [vmem:[%s341 + $0x4c] sm:$0xf] %v3740
        %3869 = vst [vmem:[%s341 + $0x50] sm:$0xf] %v3741
        %3870 = vst [vmem:[%s341 + $0x54] sm:$0xf] %v3742
        %3871 = vst [vmem:[%s341 + $0x58] sm:$0xf] %v3743
        %3872 = vst [vmem:[%s341 + $0x5c] sm:$0xf] %v3744
        %3873 = vst [vmem:[%s341 + $0x60] sm:$0xf] %v3745
        %3874 = vst [vmem:[%s341 + $0x64] sm:$0xf] %v3746
        %3875 = vst [vmem:[%s341 + $0x68] sm:$0xf] %v3747
        %3876 = vst [vmem:[%s341 + $0x6c] sm:$0xf] %v3748
        %3877 = vst [vmem:[%s341 + $0x70] sm:$0xf] %v3749
        %3878 = vst [vmem:[%s341 + $0x74] sm:$0xf] %v3750
        %3879 = vst [vmem:[%s341 + $0x78] sm:$0xf] %v3751
        %3880 = vst [vmem:[%s341 + $0x7c] sm:$0xf] %v3752
        %3881 = vst [vmem:[%s341 + $0x80] sm:$0xf] %v3753
        %3882 = vst [vmem:[%s341 + $0x84] sm:$0xf] %v3754
        %3883 = vst [vmem:[%s341 + $0x88] sm:$0xf] %v3755
        %3884 = vst [vmem:[%s341 + $0x8c] sm:$0xf] %v3756
        %3885 = vst [vmem:[%s341 + $0x90] sm:$0xf] %v3757
        %3886 = vst [vmem:[%s341 + $0x94] sm:$0xf] %v3758
        %3887 = vst [vmem:[%s341 + $0x98] sm:$0xf] %v3759
        %3888 = vst [vmem:[%s341 + $0x9c] sm:$0xf] %v3760
        %3889 = vst [vmem:[%s341 + $0xa0] sm:$0xf] %v3761
        %3890 = vst [vmem:[%s341 + $0xa4] sm:$0xf] %v3762
        %3891 = vst [vmem:[%s341 + $0xa8] sm:$0xf] %v3763
        %3892 = vst [vmem:[%s341 + $0xac] sm:$0xf] %v3764
        %3893 = vst [vmem:[%s341 + $0xb0] sm:$0xf] %v3765
        %3894 = vst [vmem:[%s341 + $0xb4] sm:$0xf] %v3766
        %3895 = vst [vmem:[%s341 + $0xb8] sm:$0xf] %v3767
        %3896 = vst [vmem:[%s341 + $0xbc] sm:$0xf] %v3768
        %3897 = vst [vmem:[%s341 + $0xc0] sm:$0xf] %v3769
        %3898 = vst [vmem:[%s341 + $0xc4] sm:$0xf] %v3770
        %3899 = vst [vmem:[%s341 + $0xc8] sm:$0xf] %v3771
        %3900 = vst [vmem:[%s341 + $0xcc] sm:$0xf] %v3772
        %3901 = vst [vmem:[%s341 + $0xd0] sm:$0xf] %v3773
        %3902 = vst [vmem:[%s341 + $0xd4] sm:$0xf] %v3774
        %3903 = vst [vmem:[%s341 + $0xd8] sm:$0xf] %v3775
        %3904 = vst [vmem:[%s341 + $0xdc] sm:$0xf] %v3776
        %3905 = vst [vmem:[%s341 + $0xe0] sm:$0xf] %v3777
        %3906 = vst [vmem:[%s341 + $0xe4] sm:$0xf] %v3778
        %3907 = vst [vmem:[%s341 + $0xe8] sm:$0xf] %v3779
        %3908 = vst [vmem:[%s341 + $0xec] sm:$0xf] %v3780
        %3909 = vst [vmem:[%s341 + $0xf0] sm:$0xf] %v3781
        %3910 = vst [vmem:[%s341 + $0xf4] sm:$0xf] %v3782
        %3911 = vst [vmem:[%s341 + $0xf8] sm:$0xf] %v3783
        %3912 = vst [vmem:[%s341 + $0xfc] sm:$0xf] %v3784
        %s3913 = sand.u32 %s186, 1
        %s3914 = scalar_lea.sflag [#allocation5], %s3913
        %s3915 = sand.u32 %s186, 1
        %s3916 = smul.addr %s3915, 256
        %s3917 = scalar_lea.vmem [#allocation11], %s3916
        // Predicated region
        $region65: #{tpu_custom_call.1} parent=47 // pred_check
          %p3918 = pneg %p196
        $region66: #{tpu_custom_call.1} parent=47 // pred_check_branch
          %3920 = sbr.rel (%p3918) target = $region68
        $region67: #{tpu_custom_call.1} parent=47 // pred_region
          %s3921 = smul.u32 2, %s26
          %s3923 = ssub.s32 4096, 4096
          %3924 = vsyncadd %s3914, %s3923
          %s3925 = smul.addr %s3921, 32
          %s3926 = smul.addr %s3925, 64
          %s3927 = scalar_lea.hbm %s7, %s3926
          %s3928 = sshll.u32 %s3917, 4
          %s3929 = int_to_ptr.vmem [resolvable:$true] %s3928
          %3934 = dma.vmem_to_hbm [thread:$0]  %s3929, 4096, %s3927, %s3914, 64, 64, 4
        $region68: #{tpu_custom_call.1} parent=47 // pred_fallthru
          _
      $region48: #{tpu_custom_call.1} parent=5 // pred_fallthru
        _
      %p3935 = scmp.le.s32.totalorder 2, %s21
      // Predicated region
      $region69: #{tpu_custom_call.1} parent=5 // pred_check
        %p3936 = pneg %p3935
      $region70: #{tpu_custom_call.1} parent=5 // pred_check_branch
        %3938 = sbr.rel (%p3936) target = $region72
      $region71: #{tpu_custom_call.1} parent=5 // pred_region
        %s3939 = ssub.s32 %s21, 2
        // Predicated region
        $region73: #{tpu_custom_call.1} parent=71 // pred_check
          %p3940 = pneg %p202
        $region74: #{tpu_custom_call.1} parent=71 // pred_check_branch
          %3942 = sbr.rel (%p3940) target = $region76
        $region75: #{tpu_custom_call.1} parent=71 // pred_region
          %s3943 = sand.u32 %s187, 1
          %s3944 = scalar_lea.sflag [#allocation5], %s3943
          %s3945 = sand.u32 %s187, 1
          %s3946 = smul.addr %s3945, 256
          %s3947 = scalar_lea.vmem [#allocation11], %s3946
          %3948 = dma.done %s3944, 4096
        $region76: #{tpu_custom_call.1} parent=71 // pred_fallthru
          _
      $region72: #{tpu_custom_call.1} parent=5 // pred_fallthru
        _
    $region6: #{tpu_custom_call.1} parent=1 // loop_footer
      %s25 = sadd.s32 1, %s21
    $region7: #{tpu_custom_call.1} parent=1 // loop_footer_branch
      %20 = sbr.rel target = $region3
    $region8: #{tpu_custom_call.1} parent=1 // loop_exit
      _
    %3949 = vsyncpa [#allocation4], 1
    %s3950 = scalar_lea.sflag [#allocation4], 1
    %3951 = vsyncpa %s3950, 1
    %3952 = vsyncpa [#allocation7], 1
    %3953 = vsyncpa [#allocation10], 1
    %3954 = vsyncpa [#allocation5], 1
    %s3955 = scalar_lea.sflag [#allocation5], 1
    %3956 = vsyncpa %s3955, 1

</llo_original>
